<compile_context>
chip_gen: v7x
topology: tpu7x:2x2x1
jax: 0.10.0
libtpu: 0.0.40
codegen_flags: <defaults>
</compile_context>

<pallas_src>
import functools

import jax
import jax.numpy as jnp
from jax.experimental import pallas as pl
from jax.experimental.pallas import tpu as pltpu


_LAYERS = (("conv1", 8, 4), ("conv2", 4, 2), ("conv3", 3, 1))  # (name, k, stride)
_LEAKY_SLOPE = 0.01


def _round_up(x, m):
    return ((x + m - 1) // m) * m


# ----------------------------------------------------------------------------
# Pallas kernel: fused  out = leaky_relu(A @ B + bias)   (bf16 in, f32 acc)
# ----------------------------------------------------------------------------
def _mm_bias_leaky_kernel(a_ref, b_ref, bias_ref, o_ref, *, slope, apply_act):
    acc = jnp.dot(a_ref[...], b_ref[...], preferred_element_type=jnp.float32)
    acc = acc + bias_ref[...]          # (O,1) or (1,N) broadcasts over the tile
    if apply_act:
        acc = jnp.where(acc >= 0.0, acc, slope * acc)
    o_ref[...] = acc.astype(o_ref.dtype)


def conv_matmul_leaky(w, p, bias_col, *, out_dtype=jnp.bfloat16):
    """Transposed conv matmul: (O, K) @ (K, M) -> (O, M), M = B*OH*OW on lanes.

    w: (O, K) bf16, p: (K, M) bf16, bias_col: (O, 1) f32.
    Weight + bias stay VMEM-resident across the (parallel) M-tile grid.
    """
    O, K = w.shape
    K2, M = p.shape
    assert K == K2, (K, K2)

    tn = min(512, _round_up(M, 128))           # lane-dense tiles, <= 512 lanes
    m_pad = _round_up(M, tn)
    if m_pad != M:
        p = jnp.pad(p, ((0, 0), (0, m_pad - M)))

    out = pl.pallas_call(
        functools.partial(_mm_bias_leaky_kernel,
                          slope=_LEAKY_SLOPE, apply_act=True),
        out_shape=jax.ShapeDtypeStruct((O, m_pad), out_dtype),
        grid=(m_pad // tn,),
        in_specs=[
            pl.BlockSpec((O, K), lambda j: (0, 0)),    # weight, resident
            pl.BlockSpec((K, tn), lambda j: (0, j)),   # patch-column tile
            pl.BlockSpec((O, 1), lambda j: (0, 0)),    # per-channel bias
        ],
        out_specs=pl.BlockSpec((O, tn), lambda j: (0, j)),
        compiler_params=pltpu.CompilerParams(dimension_semantics=("parallel",)),
    )(w, p, bias_col)
    return out[:, :M] if m_pad != M else out


def dense_matmul_leaky(x, w, bias_row, *, out_dtype=jnp.float32, apply_act=True):
    """(B, K) @ (K, N) -> (B, N); N = 256 is already lane-dense."""
    Bm, K = x.shape
    K2, N = w.shape
    assert K == K2, (K, K2)

    tm = min(256, _round_up(Bm, 8))
    m_pad = _round_up(Bm, tm)
    if m_pad != Bm:
        x = jnp.pad(x, ((0, m_pad - Bm), (0, 0)))

    out = pl.pallas_call(
        functools.partial(_mm_bias_leaky_kernel,
                          slope=_LEAKY_SLOPE, apply_act=apply_act),
        out_shape=jax.ShapeDtypeStruct((m_pad, N), out_dtype),
        grid=(m_pad // tm,),
        in_specs=[
            pl.BlockSpec((tm, K), lambda i: (i, 0)),   # activation rows
            pl.BlockSpec((K, N), lambda i: (0, 0)),    # weight, resident
            pl.BlockSpec((1, N), lambda i: (0, 0)),    # bias row
        ],
        out_specs=pl.BlockSpec((tm, N), lambda i: (i, 0)),
        compiler_params=pltpu.CompilerParams(dimension_semantics=("parallel",)),
    )(x, w, bias_row)
    return out[:Bm] if m_pad != Bm else out


# ----------------------------------------------------------------------------
# im2col glue (XLA), channel-major layout -> directly produces the (K, M)
# operand for the transposed conv matmul.
# ----------------------------------------------------------------------------
def _im2col_T(a, k, s):
    """a: (C, B, H, W) -> (C*k*k, B*OH*OW); K ordered (c, ki, kj) to match
    PyTorch OIHW weights reshaped to (O, C*k*k)."""
    C, B, H, W = a.shape
    OH = (H - k) // s + 1
    OW = (W - k) // s + 1
    slabs = []
    for di in range(k):
        for dj in range(k):
            slabs.append(jax.lax.slice(
                a, (0, 0, di, dj),
                (C, B, di + s * (OH - 1) + 1, dj + s * (OW - 1) + 1),
                (1, 1, s, s)))                       # (C, B, OH, OW)
    p = jnp.stack(slabs, axis=1)                     # (C, k*k, B, OH, OW)
    return p.reshape(C * k * k, B * OH * OW), OH, OW


# ----------------------------------------------------------------------------
# One-time parameter packing (hoists all reshapes/transposes/bf16 casts)
# ----------------------------------------------------------------------------
def pack_params(params):
    packed = {}
    for name, _, _ in _LAYERS:
        w = params[f"{name}_w"]                                  # (O, C, KH, KW)
        o = w.shape[0]
        packed[f"{name}_w"] = w.reshape(o, -1).astype(jnp.bfloat16)   # (O, K)
        packed[f"{name}_b"] = params[f"{name}_b"].reshape(o, 1).astype(jnp.float32)
    packed["fc_w"] = params["fc_w"].T.astype(jnp.bfloat16)       # (3136, 256)
    packed["fc_b"] = params["fc_b"].reshape(1, -1).astype(jnp.float32)
    return packed


# ----------------------------------------------------------------------------
# ActorNetwork.forward
# ----------------------------------------------------------------------------
def actor_forward(packed, x_nchw):
    B = x_nchw.shape[0]
    # channel-major activations (C, B, H, W); bf16 storage between layers
    a = jnp.transpose(x_nchw, (1, 0, 2, 3)).astype(jnp.bfloat16)
    for name, k, s in _LAYERS:
        p, oh, ow = _im2col_T(a, k, s)
        y = conv_matmul_leaky(packed[f"{name}_w"], p, packed[f"{name}_b"])
        a = y.reshape(y.shape[0], B, oh, ow)         # (O, B, OH, OW)
    # PyTorch x.view(B, -1) flattens NCHW (channel-major).
    flat = jnp.transpose(a, (1, 0, 2, 3)).reshape(B, -1)          # (B, 3136)
    feats = dense_matmul_leaky(flat, packed["fc_w"], packed["fc_b"])
    return feats
    # TODO(synk): pi() actor head (Linear 256->2 + softmax + clamp) is not part
    # of forward(); it would reuse dense_matmul_leaky(apply_act=False) + jax ops.


# ----------------------------------------------------------------------------
# References (pure JAX, no Pallas) for correctness checks
# ----------------------------------------------------------------------------
def _leaky(v):
    return jnp.where(v >= 0, v, _LEAKY_SLOPE * v)


def reference_forward_f32(params, x_nchw):
    """Exact-semantics f32 reference (HIGHEST precision)."""
    dn = ("NCHW", "OIHW", "NCHW")
    y = x_nchw
    for name, _, s in _LAYERS:
        y = jax.lax.conv_general_dilated(
            y, params[f"{name}_w"], window_strides=(s, s), padding="VALID",
            dimension_numbers=dn, precision=jax.lax.Precision.HIGHEST,
        ) + params[f"{name}_b"][None, :, None, None]
        y = _leaky(y)
    B = y.shape[0]
    y = y.reshape(B, -1)
    y = jnp.dot(y, params["fc_w"].T, precision=jax.lax.Precision.HIGHEST)
    return _leaky(y + params["fc_b"])


def reference_forward_bf16(params, x_nchw):
    """Same rounding model as the Pallas path: bf16 operands, f32 accumulation,
    bias/LeakyReLU in f32, bf16 storage between layers."""
    dn = ("NCHW", "OIHW", "NCHW")
    y = x_nchw.astype(jnp.bfloat16)
    for name, _, s in _LAYERS:
        z = jax.lax.conv_general_dilated(
            y, params[f"{name}_w"].astype(jnp.bfloat16),
            window_strides=(s, s), padding="VALID", dimension_numbers=dn,
            preferred_element_type=jnp.float32,
        ) + params[f"{name}_b"][None, :, None, None]
        y = _leaky(z).astype(jnp.bfloat16)
    B = y.shape[0]
    flat = y.reshape(B, -1)
    z = jnp.dot(flat, params["fc_w"].T.astype(jnp.bfloat16),
                preferred_element_type=jnp.float32) + params["fc_b"]
    return _leaky(z)


# ----------------------------------------------------------------------------
# Deterministic parameter init (module shapes; uniform(-0.01, 0.01) weights).
# The PyTorch module zero-inits biases; we use small non-zero biases here
# purely to exercise the bias path in the correctness check.
# ----------------------------------------------------------------------------
def init_params(key):
    ks = jax.random.split(key, 8)
    u = lambda k, shape: jax.random.uniform(
        k, shape, dtype=jnp.float32, minval=-0.01, maxval=0.01)
    return {
        "conv1_w": u(ks[0], (16, 4, 8, 8)),   "conv1_b": u(ks[4], (16,)),
        "conv2_w": u(ks[1], (32, 16, 4, 4)),  "conv2_b": u(ks[5], (32,)),
        "conv3_w": u(ks[2], (64, 32, 3, 3)),  "conv3_b": u(ks[6], (64,)),
        "fc_w":    u(ks[3], (256, 7 * 7 * 64)),
        "fc_b":    u(ks[7], (256,)),
    }


if __name__ == "__main__":
    key = jax.random.PRNGKey(0)
    k_param, k_x = jax.random.split(key)
    params = init_params(k_param)
    # 84x84 spatial is forced by the module's hard-coded 7*7*64 Linear.
    x = jax.random.normal(k_x, (2, 4, 84, 84), dtype=jnp.float32)

    packed = pack_params(params)                       # one-time weight packing
    feats = jax.block_until_ready(jax.jit(actor_forward)(packed, x))
    assert feats.shape == (2, 256), feats.shape

    ref_bf16 = jax.block_until_ready(jax.jit(reference_forward_bf16)(params, x))
    ref_f32 = jax.block_until_ready(jax.jit(reference_forward_f32)(params, x))

    scale = float(jnp.max(jnp.abs(ref_f32))) + 1e-12
    # Tight check vs the matched-precision reference (catches layout/index bugs).
    err_matched = float(jnp.max(jnp.abs(feats - ref_bf16))) / scale
    # Loose sanity check vs the full-f32 reference (bounds bf16 drift).
    err_f32 = float(jnp.max(jnp.abs(feats - ref_f32))) / scale
    assert err_matched < 2e-3, f"mismatch vs matched-precision ref: {err_matched}"
    assert err_f32 < 0.1, f"excessive drift vs f32 reference: {err_f32}"

    print("KERNEL_OK")
</pallas_src>

<mosaic_0001>
module attributes {stable_mosaic.version = 11 : i64} {
  func.func @_mm_bias_leaky_kernel(%arg0: i32, %arg1: memref<16x256xbf16, #tpu.memory_space<vmem>>, %arg2: memref<256x512xbf16, #tpu.memory_space<vmem>>, %arg3: memref<16x1xf32, #tpu.memory_space<vmem>>, %arg4: memref<16x512xbf16, #tpu.memory_space<vmem>>) attributes {dimension_semantics = [#tpu.dimension_semantics<parallel>], iteration_bounds = array<i64: 2>, scalar_prefetch = 0 : i64, scratch_operands = 0 : i64, tpu.core_type = #tpu.core_type<tc>, window_params = [{pipeline_mode = #tpu.pipeline_mode<synchronous>, transform_indices = @transform_0, window_bounds = array<i64: 16, 256>}, {transform_indices = @transform_1, window_bounds = array<i64: 256, 512>}, {pipeline_mode = #tpu.pipeline_mode<synchronous>, transform_indices = @transform_2, window_bounds = array<i64: 16, 1>}, {transform_indices = @transform_3, window_bounds = array<i64: 16, 512>}]} {
    %c0 = arith.constant 0 : index
    %c0_0 = arith.constant 0 : index
    %0 = vector.load %arg1[%c0, %c0_0] : memref<16x256xbf16, #tpu.memory_space<vmem>>, vector<16x256xbf16>
    %c0_1 = arith.constant 0 : index
    %c0_2 = arith.constant 0 : index
    %1 = vector.load %arg2[%c0_1, %c0_2] : memref<256x512xbf16, #tpu.memory_space<vmem>>, vector<256x512xbf16>
    %cst = arith.constant dense<0.000000e+00> : vector<16x512xf32>
    %2 = tpu.matmul %0, %1, %cst {dimension_numbers = #tpu.dot_dimension_numbers<[1], [0], [0], [1], [0, 0, 1, 1], [], []>} : vector<16x256xbf16>, vector<256x512xbf16>, vector<16x512xf32> -> vector<16x512xf32>
    %c0_3 = arith.constant 0 : index
    %c0_4 = arith.constant 0 : index
    %3 = vector.load %arg3[%c0_3, %c0_4] : memref<16x1xf32, #tpu.memory_space<vmem>>, vector<16x1xf32>
    %4 = vector.broadcast %3 : vector<16x1xf32> to vector<16x512xf32>
    %5 = arith.addf %2, %4 : vector<16x512xf32>
    %cst_5 = arith.constant 0.000000e+00 : f32
    %6 = vector.broadcast %cst_5 : f32 to vector<16x512xf32>
    %7 = arith.cmpf oge, %5, %6 : vector<16x512xf32>
    %cst_6 = arith.constant 0.00999999977 : f32
    %8 = vector.broadcast %cst_6 : f32 to vector<16x512xf32>
    %9 = arith.mulf %8, %5 : vector<16x512xf32>
    %10 = arith.select %7, %5, %9 : vector<16x512xi1>, vector<16x512xf32>
    %11 = arith.truncf %10 : vector<16x512xf32> to vector<16x512xbf16>
    %c0_7 = arith.constant 0 : index
    %c0_8 = arith.constant 0 : index
    %12 = vector.load %arg4[%c0_7, %c0_8] : memref<16x512xbf16, #tpu.memory_space<vmem>>, vector<16x512xbf16>
    tpu.vector_store %arg4[%c0_7, %c0_8], %11 {strides = array<i32>} : memref<16x512xbf16, #tpu.memory_space<vmem>>, vector<16x512xbf16>,
    return
  }
  func.func @transform_0(%arg0: i32) -> (i32, i32) {
    %c0_i32 = arith.constant 0 : i32
    %c0_i32_0 = arith.constant 0 : i32
    %c0_i32_1 = arith.constant 0 : i32
    return %c0_i32, %c0_i32_0 : i32, i32
  }
  func.func @transform_1(%arg0: i32) -> (i32, i32) {
    %c0_i32 = arith.constant 0 : i32
    %c0_i32_0 = arith.constant 0 : i32
    return %c0_i32, %arg0 : i32, i32
  }
  func.func @transform_2(%arg0: i32) -> (i32, i32) {
    %c0_i32 = arith.constant 0 : i32
    %c0_i32_0 = arith.constant 0 : i32
    %c0_i32_1 = arith.constant 0 : i32
    return %c0_i32, %c0_i32_0 : i32, i32
  }
  func.func @transform_3(%arg0: i32) -> (i32, i32) {
    %c0_i32 = arith.constant 0 : i32
    %c0_i32_0 = arith.constant 0 : i32
    return %c0_i32, %arg0 : i32, i32
  }
}

module attributes {stable_mosaic.version = 11 : i64} {
  func.func @_mm_bias_leaky_kernel(%arg0: i32, %arg1: memref<32x256xbf16, #tpu.memory_space<vmem>>, %arg2: memref<256x256xbf16, #tpu.memory_space<vmem>>, %arg3: memref<32x1xf32, #tpu.memory_space<vmem>>, %arg4: memref<32x256xbf16, #tpu.memory_space<vmem>>) attributes {dimension_semantics = [#tpu.dimension_semantics<parallel>], iteration_bounds = array<i64: 1>, scalar_prefetch = 0 : i64, scratch_operands = 0 : i64, tpu.core_type = #tpu.core_type<tc>, window_params = [{pipeline_mode = #tpu.pipeline_mode<synchronous>, transform_indices = @transform_0, window_bounds = array<i64: 32, 256>}, {transform_indices = @transform_1, window_bounds = array<i64: 256, 256>}, {pipeline_mode = #tpu.pipeline_mode<synchronous>, transform_indices = @transform_2, window_bounds = array<i64: 32, 1>}, {transform_indices = @transform_3, window_bounds = array<i64: 32, 256>}]} {
    %c0 = arith.constant 0 : index
    %c0_0 = arith.constant 0 : index
    %0 = vector.load %arg1[%c0, %c0_0] : memref<32x256xbf16, #tpu.memory_space<vmem>>, vector<32x256xbf16>
    %c0_1 = arith.constant 0 : index
    %c0_2 = arith.constant 0 : index
    %1 = vector.load %arg2[%c0_1, %c0_2] : memref<256x256xbf16, #tpu.memory_space<vmem>>, vector<256x256xbf16>
    %cst = arith.constant dense<0.000000e+00> : vector<32x256xf32>
    %2 = tpu.matmul %0, %1, %cst {dimension_numbers = #tpu.dot_dimension_numbers<[1], [0], [0], [1], [0, 0, 1, 1], [], []>} : vector<32x256xbf16>, vector<256x256xbf16>, vector<32x256xf32> -> vector<32x256xf32>
    %c0_3 = arith.constant 0 : index
    %c0_4 = arith.constant 0 : index
    %3 = vector.load %arg3[%c0_3, %c0_4] : memref<32x1xf32, #tpu.memory_space<vmem>>, vector<32x1xf32>
    %4 = vector.broadcast %3 : vector<32x1xf32> to vector<32x256xf32>
    %5 = arith.addf %2, %4 : vector<32x256xf32>
    %cst_5 = arith.constant 0.000000e+00 : f32
    %6 = vector.broadcast %cst_5 : f32 to vector<32x256xf32>
    %7 = arith.cmpf oge, %5, %6 : vector<32x256xf32>
    %cst_6 = arith.constant 0.00999999977 : f32
    %8 = vector.broadcast %cst_6 : f32 to vector<32x256xf32>
    %9 = arith.mulf %8, %5 : vector<32x256xf32>
    %10 = arith.select %7, %5, %9 : vector<32x256xi1>, vector<32x256xf32>
    %11 = arith.truncf %10 : vector<32x256xf32> to vector<32x256xbf16>
    %c0_7 = arith.constant 0 : index
    %c0_8 = arith.constant 0 : index
    %12 = vector.load %arg4[%c0_7, %c0_8] : memref<32x256xbf16, #tpu.memory_space<vmem>>, vector<32x256xbf16>
    tpu.vector_store %arg4[%c0_7, %c0_8], %11 {strides = array<i32>} : memref<32x256xbf16, #tpu.memory_space<vmem>>, vector<32x256xbf16>,
    return
  }
  func.func @transform_0(%arg0: i32) -> (i32, i32) {
    %c0_i32 = arith.constant 0 : i32
    %c0_i32_0 = arith.constant 0 : i32
    %c0_i32_1 = arith.constant 0 : i32
    return %c0_i32, %c0_i32_0 : i32, i32
  }
  func.func @transform_1(%arg0: i32) -> (i32, i32) {
    %c0_i32 = arith.constant 0 : i32
    %c0_i32_0 = arith.constant 0 : i32
    return %c0_i32, %arg0 : i32, i32
  }
  func.func @transform_2(%arg0: i32) -> (i32, i32) {
    %c0_i32 = arith.constant 0 : i32
    %c0_i32_0 = arith.constant 0 : i32
    %c0_i32_1 = arith.constant 0 : i32
    return %c0_i32, %c0_i32_0 : i32, i32
  }
  func.func @transform_3(%arg0: i32) -> (i32, i32) {
    %c0_i32 = arith.constant 0 : i32
    %c0_i32_0 = arith.constant 0 : i32
    return %c0_i32, %arg0 : i32, i32
  }
}

module attributes {stable_mosaic.version = 11 : i64} {
  func.func @_mm_bias_leaky_kernel(%arg0: i32, %arg1: memref<64x288xbf16, #tpu.memory_space<vmem>>, %arg2: memref<288x128xbf16, #tpu.memory_space<vmem>>, %arg3: memref<64x1xf32, #tpu.memory_space<vmem>>, %arg4: memref<64x128xbf16, #tpu.memory_space<vmem>>) attributes {dimension_semantics = [#tpu.dimension_semantics<parallel>], iteration_bounds = array<i64: 1>, scalar_prefetch = 0 : i64, scratch_operands = 0 : i64, tpu.core_type = #tpu.core_type<tc>, window_params = [{pipeline_mode = #tpu.pipeline_mode<synchronous>, transform_indices = @transform_0, window_bounds = array<i64: 64, 288>}, {transform_indices = @transform_1, window_bounds = array<i64: 288, 128>}, {pipeline_mode = #tpu.pipeline_mode<synchronous>, transform_indices = @transform_2, window_bounds = array<i64: 64, 1>}, {transform_indices = @transform_3, window_bounds = array<i64: 64, 128>}]} {
    %c0 = arith.constant 0 : index
    %c0_0 = arith.constant 0 : index
    %0 = vector.load %arg1[%c0, %c0_0] : memref<64x288xbf16, #tpu.memory_space<vmem>>, vector<64x288xbf16>
    %c0_1 = arith.constant 0 : index
    %c0_2 = arith.constant 0 : index
    %1 = vector.load %arg2[%c0_1, %c0_2] : memref<288x128xbf16, #tpu.memory_space<vmem>>, vector<288x128xbf16>
    %cst = arith.constant dense<0.000000e+00> : vector<64x128xf32>
    %2 = tpu.matmul %0, %1, %cst {dimension_numbers = #tpu.dot_dimension_numbers<[1], [0], [0], [1], [0, 0, 1, 1], [], []>} : vector<64x288xbf16>, vector<288x128xbf16>, vector<64x128xf32> -> vector<64x128xf32>
    %c0_3 = arith.constant 0 : index
    %c0_4 = arith.constant 0 : index
    %3 = vector.load %arg3[%c0_3, %c0_4] : memref<64x1xf32, #tpu.memory_space<vmem>>, vector<64x1xf32>
    %4 = vector.broadcast %3 : vector<64x1xf32> to vector<64x128xf32>
    %5 = arith.addf %2, %4 : vector<64x128xf32>
    %cst_5 = arith.constant 0.000000e+00 : f32
    %6 = vector.broadcast %cst_5 : f32 to vector<64x128xf32>
    %7 = arith.cmpf oge, %5, %6 : vector<64x128xf32>
    %cst_6 = arith.constant 0.00999999977 : f32
    %8 = vector.broadcast %cst_6 : f32 to vector<64x128xf32>
    %9 = arith.mulf %8, %5 : vector<64x128xf32>
    %10 = arith.select %7, %5, %9 : vector<64x128xi1>, vector<64x128xf32>
    %11 = arith.truncf %10 : vector<64x128xf32> to vector<64x128xbf16>
    %c0_7 = arith.constant 0 : index
    %c0_8 = arith.constant 0 : index
    %12 = vector.load %arg4[%c0_7, %c0_8] : memref<64x128xbf16, #tpu.memory_space<vmem>>, vector<64x128xbf16>
    tpu.vector_store %arg4[%c0_7, %c0_8], %11 {strides = array<i32>} : memref<64x128xbf16, #tpu.memory_space<vmem>>, vector<64x128xbf16>,
    return
  }
  func.func @transform_0(%arg0: i32) -> (i32, i32) {
    %c0_i32 = arith.constant 0 : i32
    %c0_i32_0 = arith.constant 0 : i32
    %c0_i32_1 = arith.constant 0 : i32
    return %c0_i32, %c0_i32_0 : i32, i32
  }
  func.func @transform_1(%arg0: i32) -> (i32, i32) {
    %c0_i32 = arith.constant 0 : i32
    %c0_i32_0 = arith.constant 0 : i32
    return %c0_i32, %arg0 : i32, i32
  }
  func.func @transform_2(%arg0: i32) -> (i32, i32) {
    %c0_i32 = arith.constant 0 : i32
    %c0_i32_0 = arith.constant 0 : i32
    %c0_i32_1 = arith.constant 0 : i32
    return %c0_i32, %c0_i32_0 : i32, i32
  }
  func.func @transform_3(%arg0: i32) -> (i32, i32) {
    %c0_i32 = arith.constant 0 : i32
    %c0_i32_0 = arith.constant 0 : i32
    return %c0_i32, %arg0 : i32, i32
  }
}

module attributes {stable_mosaic.version = 11 : i64} {
  func.func @_mm_bias_leaky_kernel(%arg0: i32, %arg1: memref<8x3136xbf16, #tpu.memory_space<vmem>>, %arg2: memref<3136x256xbf16, #tpu.memory_space<vmem>>, %arg3: memref<1x256xf32, #tpu.memory_space<vmem>>, %arg4: memref<8x256xf32, #tpu.memory_space<vmem>>) attributes {dimension_semantics = [#tpu.dimension_semantics<parallel>], iteration_bounds = array<i64: 1>, scalar_prefetch = 0 : i64, scratch_operands = 0 : i64, tpu.core_type = #tpu.core_type<tc>, window_params = [{transform_indices = @transform_0, window_bounds = array<i64: 8, 3136>}, {pipeline_mode = #tpu.pipeline_mode<synchronous>, transform_indices = @transform_1, window_bounds = array<i64: 3136, 256>}, {pipeline_mode = #tpu.pipeline_mode<synchronous>, transform_indices = @transform_2, window_bounds = array<i64: 1, 256>}, {transform_indices = @transform_3, window_bounds = array<i64: 8, 256>}]} {
    %c0 = arith.constant 0 : index
    %c0_0 = arith.constant 0 : index
    %0 = vector.load %arg1[%c0, %c0_0] : memref<8x3136xbf16, #tpu.memory_space<vmem>>, vector<8x3136xbf16>
    %c0_1 = arith.constant 0 : index
    %c0_2 = arith.constant 0 : index
    %1 = vector.load %arg2[%c0_1, %c0_2] : memref<3136x256xbf16, #tpu.memory_space<vmem>>, vector<3136x256xbf16>
    %cst = arith.constant dense<0.000000e+00> : vector<8x256xf32>
    %2 = tpu.matmul %0, %1, %cst {dimension_numbers = #tpu.dot_dimension_numbers<[1], [0], [0], [1], [0, 0, 1, 1], [], []>} : vector<8x3136xbf16>, vector<3136x256xbf16>, vector<8x256xf32> -> vector<8x256xf32>
    %c0_3 = arith.constant 0 : index
    %c0_4 = arith.constant 0 : index
    %3 = vector.load %arg3[%c0_3, %c0_4] : memref<1x256xf32, #tpu.memory_space<vmem>>, vector<1x256xf32>
    %4 = vector.broadcast %3 : vector<1x256xf32> to vector<8x256xf32>
    %5 = arith.addf %2, %4 : vector<8x256xf32>
    %cst_5 = arith.constant 0.000000e+00 : f32
    %6 = vector.broadcast %cst_5 : f32 to vector<8x256xf32>
    %7 = arith.cmpf oge, %5, %6 : vector<8x256xf32>
    %cst_6 = arith.constant 0.00999999977 : f32
    %8 = vector.broadcast %cst_6 : f32 to vector<8x256xf32>
    %9 = arith.mulf %8, %5 : vector<8x256xf32>
    %10 = arith.select %7, %5, %9 : vector<8x256xi1>, vector<8x256xf32>
    %c0_7 = arith.constant 0 : index
    %c0_8 = arith.constant 0 : index
    %11 = vector.load %arg4[%c0_7, %c0_8] : memref<8x256xf32, #tpu.memory_space<vmem>>, vector<8x256xf32>
    tpu.vector_store %arg4[%c0_7, %c0_8], %10 {strides = array<i32>} : memref<8x256xf32, #tpu.memory_space<vmem>>, vector<8x256xf32>,
    return
  }
  func.func @transform_0(%arg0: i32) -> (i32, i32) {
    %c0_i32 = arith.constant 0 : i32
    %c0_i32_0 = arith.constant 0 : i32
    return %arg0, %c0_i32 : i32, i32
  }
  func.func @transform_1(%arg0: i32) -> (i32, i32) {
    %c0_i32 = arith.constant 0 : i32
    %c0_i32_0 = arith.constant 0 : i32
    %c0_i32_1 = arith.constant 0 : i32
    return %c0_i32, %c0_i32_0 : i32, i32
  }
  func.func @transform_2(%arg0: i32) -> (i32, i32) {
    %c0_i32 = arith.constant 0 : i32
    %c0_i32_0 = arith.constant 0 : i32
    %c0_i32_1 = arith.constant 0 : i32
    return %c0_i32, %c0_i32_0 : i32, i32
  }
  func.func @transform_3(%arg0: i32) -> (i32, i32) {
    %c0_i32 = arith.constant 0 : i32
    %c0_i32_0 = arith.constant 0 : i32
    return %arg0, %c0_i32 : i32, i32
  }
}

</mosaic_0001>

<llo_original>
// kernel: actor_forward.4
$region0: #{actor_forward.4}
  #allocation0 [shape = 'u32[]', space=smem, size = 0x4, offset = 0x4, fixed_abs, tag = 'smem constant byte address 0x4 - core index']
  #allocation1 [shape = 'u32[144,128]{1,0:T(1,128)}', space=vmem, size = 0x12000, scoped, tag = 'internal scratch']
  %s0 = inlined_call_operand.vmem [shape: bf16[16,256], index: 0, kind: input, shape index: {}]
  %s1 = inlined_call_operand.vmem [shape: bf16[256,1024], index: 1, kind: input, shape index: {}]
  %s2 = inlined_call_operand.vmem [shape: f32[16,1], index: 2, kind: input, shape index: {}]
  %s3 = inlined_call_operand.vmem [shape: bf16[16,1024], index: 3, kind: output, shape index: {}]
  %s4 = sld [smem:[#allocation0]]
  $region87: #{actor_forward.4} parent=0
    _
  %s6 = ssub.s32 1, %s4
  %s7 = scalar_select 0, %s6, %s4
  $region1: #{actor_forward.4} parent=0
    #allocation2 [shape = 'u8[524288]{0}', space=vmem, size = 0x80000, scoped, tag = 'input window, operand 1']
    #allocation3 [shape = 'u8[32768]{0}', space=vmem, size = 0x8000, scoped, tag = 'output window, operand 0']
    loop: start=0, step=1, limit=4
    $region2: #{actor_forward.4} parent=1 // loop_pre_header
      _
    $region3: #{actor_forward.4} parent=1 // loop_header
      %s9 = sphi 0, %s13
      %p10 = scmp.ge.s32.totalorder %s9, 4
      %s17 = sphi 0, %s17
      %s19 = sphi 0, %s17
      %s20 = sphi 0, %s19
      %s34 = sphi 0, %s20
      %s40 = sphi 0, %s42
      %s43 = sphi 0, %s40
      %s44 = sphi 0, %s43
      %s60 = sphi 0, %s44
      %s64 = sphi 0, %s64
      %s66 = sphi 0, %s64
      %s67 = sphi 0, %s66
      %s81 = sphi 0, %s67
      %s87 = sphi 0, %s89
      %s90 = sphi 0, %s87
      %s91 = sphi 0, %s90
      %s107 = sphi 0, %s91
    $region4: #{actor_forward.4} parent=1 // loop_header_branch
      %12 = sbr.rel (%p10) target = $region8
    $region5: #{actor_forward.4} parent=1 // loop_body
      %s14 = ssub.s32 %s9, 1
      %s15 = ssub.s32 %s9, 2
      %s16 = sadd.s32 %s9, 1
      %s18 = sadd.s32 %s17, 1
      %p21 = scmp.eq.s32.totalorder %s9, 1
      %p22 = scmp.ne.s32.totalorder %s17, %s19
      %p23 = scmp.eq.s32.totalorder %s9, 0
      %p24 = por %p22, %p23
      %p25 = scmp.ne.s32.totalorder %s17, %s19
      %p26 = scmp.eq.s32.totalorder %s14, 1
      %p27 = por %p25, %p26
      %p28 = scmp.ne.s32.totalorder %s19, %s20
      %p29 = scmp.eq.s32.totalorder %s14, 0
      %p30 = por %p28, %p29
      %p31 = scmp.ne.s32.totalorder %s19, %s20
      %p32 = scmp.eq.s32.totalorder %s15, 1
      %p33 = por %p31, %p32
      %p35 = scmp.ne.s32.totalorder %s20, %s34
      %p36 = scmp.eq.s32.totalorder %s15, 0
      %p37 = por %p35, %p36
      %s38 = ssub.s32 %s9, %s16
      %p39 = scmp.eq.s32.totalorder %s38, 0
      %s41 = sadd.s32 %s40, 1
      %s42 = scalar_select %p39, %s40, %s41
      %p45 = pneg %p39
      %p46 = scmp.eq.s32.totalorder %s9, 1
      %p47 = por %p45, %p46
      %p48 = scmp.ne.s32.totalorder %s40, %s43
      %p49 = scmp.eq.s32.totalorder %s9, 0
      %p50 = por %p48, %p49
      %p51 = scmp.ne.s32.totalorder %s40, %s43
      %p52 = scmp.eq.s32.totalorder %s14, 1
      %p53 = por %p51, %p52
      %p54 = scmp.ne.s32.totalorder %s43, %s44
      %p55 = scmp.eq.s32.totalorder %s14, 0
      %p56 = por %p54, %p55
      %p57 = scmp.ne.s32.totalorder %s43, %s44
      %p58 = scmp.eq.s32.totalorder %s15, 1
      %p59 = por %p57, %p58
      %p61 = scmp.ne.s32.totalorder %s44, %s60
      %p62 = scmp.eq.s32.totalorder %s15, 0
      %p63 = por %p61, %p62
      %s65 = sadd.s32 %s64, 1
      %p68 = scmp.eq.s32.totalorder %s9, 1
      %p69 = scmp.ne.s32.totalorder %s64, %s66
      %p70 = scmp.eq.s32.totalorder %s9, 0
      %p71 = por %p69, %p70
      %p72 = scmp.ne.s32.totalorder %s64, %s66
      %p73 = scmp.eq.s32.totalorder %s14, 1
      %p74 = por %p72, %p73
      %p75 = scmp.ne.s32.totalorder %s66, %s67
      %p76 = scmp.eq.s32.totalorder %s14, 0
      %p77 = por %p75, %p76
      %p78 = scmp.ne.s32.totalorder %s66, %s67
      %p79 = scmp.eq.s32.totalorder %s15, 1
      %p80 = por %p78, %p79
      %p82 = scmp.ne.s32.totalorder %s67, %s81
      %p83 = scmp.eq.s32.totalorder %s15, 0
      %p84 = por %p82, %p83
      %s85 = ssub.s32 %s9, %s16
      %p86 = scmp.eq.s32.totalorder %s85, 0
      %s88 = sadd.s32 %s87, 1
      %s89 = scalar_select %p86, %s87, %s88
      %p92 = pneg %p86
      %p93 = scmp.eq.s32.totalorder %s9, 1
      %p94 = por %p92, %p93
      %p95 = scmp.ne.s32.totalorder %s87, %s90
      %p96 = scmp.eq.s32.totalorder %s9, 0
      %p97 = por %p95, %p96
      %p98 = scmp.ne.s32.totalorder %s87, %s90
      %p99 = scmp.eq.s32.totalorder %s14, 1
      %p100 = por %p98, %p99
      %p101 = scmp.ne.s32.totalorder %s90, %s91
      %p102 = scmp.eq.s32.totalorder %s14, 0
      %p103 = por %p101, %p102
      %p104 = scmp.ne.s32.totalorder %s90, %s91
      %p105 = scmp.eq.s32.totalorder %s15, 1
      %p106 = por %p104, %p105
      %p108 = scmp.ne.s32.totalorder %s91, %s107
      %p109 = scmp.eq.s32.totalorder %s15, 0
      %p110 = por %p108, %p109
      %p111 = scmp.le.s32.totalorder 1, %s9
      %p112 = scmp.lt.s32.totalorder %s9, 3
      %p113 = pnand %p111, %p112
      %p114 = pneg %p113
      // Predicated region
      $region9: #{actor_forward.4} parent=5 // pred_check
        _
      $region10: #{actor_forward.4} parent=5 // pred_check_branch
        %116 = sbr.rel (%p113) target = $region12
      $region11: #{actor_forward.4} parent=5 // pred_region
        %s117 = ssub.s32 %s9, 1
        // Predicated region
        $region13: #{actor_forward.4} parent=11 // pred_check
          %p118 = pneg %p30
        $region14: #{actor_forward.4} parent=11 // pred_check_branch
          %120 = sbr.rel (%p118) target = $region16
        $region15: #{actor_forward.4} parent=11 // pred_region
          _
        $region16: #{actor_forward.4} parent=11 // pred_fallthru
          _
        // Predicated region
        $region17: #{actor_forward.4} parent=11 // pred_check
          %p121 = pneg %p77
        $region18: #{actor_forward.4} parent=11 // pred_check_branch
          %123 = sbr.rel (%p121) target = $region20
        $region19: #{actor_forward.4} parent=11 // pred_region
          _
        $region20: #{actor_forward.4} parent=11 // pred_fallthru
          _
      $region12: #{actor_forward.4} parent=5 // pred_fallthru
        _
      %p124 = scmp.lt.s32.totalorder %s9, 2
      // Predicated region
      $region21: #{actor_forward.4} parent=5 // pred_check
        %p125 = pneg %p124
      $region22: #{actor_forward.4} parent=5 // pred_check_branch
        %127 = sbr.rel (%p125) target = $region24
      $region23: #{actor_forward.4} parent=5 // pred_region
        // Predicated region
        $region25: #{actor_forward.4} parent=23 // pred_check
          %p128 = pneg %p50
        $region26: #{actor_forward.4} parent=23 // pred_check_branch
          %130 = sbr.rel (%p128) target = $region28
        $region27: #{actor_forward.4} parent=23 // pred_region
          %s131 = sand.u32 %s40, 1
          %s132 = sand.u32 %s40, 1
          %s133 = smul.addr %s132, 512
          %s134 = scalar_lea.vmem [#allocation2], %s133
          %s135 = smul.u32 4, %s9
          %s136 = smul.addr %s135, 4
          %s137 = scalar_lea.vmem %s1, %s136
          // Predicated region
          $region29: #{actor_forward.4} parent=27 // pred_check
            _
          $region30: #{actor_forward.4} parent=27 // pred_check_branch
            %139 = sbr.rel (0) target = $region32
          $region31: #{actor_forward.4} parent=27 // pred_region
            // Predicated region
            $region33: #{actor_forward.4} parent=31 // pred_check
              _
            $region34: #{actor_forward.4} parent=31 // pred_check_branch
              %141 = sbr.rel (0) target = $region36
            $region35: #{actor_forward.4} parent=31 // pred_region
              loop: start=0, step=1, limit=1
              $region37: #{actor_forward.4} parent=35 // loop_pre_header
                _
              $region38: #{actor_forward.4} parent=35 // loop_header
                %s143 = sphi 0, %s147
                %p144 = scmp.ge.s32.totalorder %s143, 1
                %s148 = sphi %s137, %s137
                %s149 = sphi %s134, %s134
              $region39: #{actor_forward.4} parent=35 // loop_header_branch
                %146 = sbr.rel (%p144) target = $region43
              $region40: #{actor_forward.4} parent=35 // loop_body
                %v150 = vld [vmem:[%s148] sm:$0xff]
                %151 = vst [vmem:[%s149] sm:$0xff] %v150
                %v152 = vld [vmem:[%s148 + $0x8] sm:$0xff]
                %153 = vst [vmem:[%s149 + $0x8] sm:$0xff] %v152
                %v154 = vld [vmem:[%s148 + $0x20] sm:$0xff]
                %155 = vst [vmem:[%s149 + $0x10] sm:$0xff] %v154
                %v156 = vld [vmem:[%s148 + $0x28] sm:$0xff]
                %157 = vst [vmem:[%s149 + $0x18] sm:$0xff] %v156
                %v158 = vld [vmem:[%s148 + $0x40] sm:$0xff]
                %159 = vst [vmem:[%s149 + $0x20] sm:$0xff] %v158
                %v160 = vld [vmem:[%s148 + $0x48] sm:$0xff]
                %161 = vst [vmem:[%s149 + $0x28] sm:$0xff] %v160
                %v162 = vld [vmem:[%s148 + $0x60] sm:$0xff]
                %163 = vst [vmem:[%s149 + $0x30] sm:$0xff] %v162
                %v164 = vld [vmem:[%s148 + $0x68] sm:$0xff]
                %165 = vst [vmem:[%s149 + $0x38] sm:$0xff] %v164
                %v166 = vld [vmem:[%s148 + $0x80] sm:$0xff]
                %167 = vst [vmem:[%s149 + $0x40] sm:$0xff] %v166
                %v168 = vld [vmem:[%s148 + $0x88] sm:$0xff]
                %169 = vst [vmem:[%s149 + $0x48] sm:$0xff] %v168
                %v170 = vld [vmem:[%s148 + $0xa0] sm:$0xff]
                %171 = vst [vmem:[%s149 + $0x50] sm:$0xff] %v170
                %v172 = vld [vmem:[%s148 + $0xa8] sm:$0xff]
                %173 = vst [vmem:[%s149 + $0x58] sm:$0xff] %v172
                %v174 = vld [vmem:[%s148 + $0xc0] sm:$0xff]
                %175 = vst [vmem:[%s149 + $0x60] sm:$0xff] %v174
                %v176 = vld [vmem:[%s148 + $0xc8] sm:$0xff]
                %177 = vst [vmem:[%s149 + $0x68] sm:$0xff] %v176
                %v178 = vld [vmem:[%s148 + $0xe0] sm:$0xff]
                %179 = vst [vmem:[%s149 + $0x70] sm:$0xff] %v178
                %v180 = vld [vmem:[%s148 + $0xe8] sm:$0xff]
                %181 = vst [vmem:[%s149 + $0x78] sm:$0xff] %v180
                %v182 = vld [vmem:[%s148 + $0x100] sm:$0xff]
                %183 = vst [vmem:[%s149 + $0x80] sm:$0xff] %v182
                %v184 = vld [vmem:[%s148 + $0x108] sm:$0xff]
                %185 = vst [vmem:[%s149 + $0x88] sm:$0xff] %v184
                %v186 = vld [vmem:[%s148 + $0x120] sm:$0xff]
                %187 = vst [vmem:[%s149 + $0x90] sm:$0xff] %v186
                %v188 = vld [vmem:[%s148 + $0x128] sm:$0xff]
                %189 = vst [vmem:[%s149 + $0x98] sm:$0xff] %v188
                %v190 = vld [vmem:[%s148 + $0x140] sm:$0xff]
                %191 = vst [vmem:[%s149 + $0xa0] sm:$0xff] %v190
                %v192 = vld [vmem:[%s148 + $0x148] sm:$0xff]
                %193 = vst [vmem:[%s149 + $0xa8] sm:$0xff] %v192
                %v194 = vld [vmem:[%s148 + $0x160] sm:$0xff]
                %195 = vst [vmem:[%s149 + $0xb0] sm:$0xff] %v194
                %v196 = vld [vmem:[%s148 + $0x168] sm:$0xff]
                %197 = vst [vmem:[%s149 + $0xb8] sm:$0xff] %v196
                %v198 = vld [vmem:[%s148 + $0x180] sm:$0xff]
                %199 = vst [vmem:[%s149 + $0xc0] sm:$0xff] %v198
                %v200 = vld [vmem:[%s148 + $0x188] sm:$0xff]
                %201 = vst [vmem:[%s149 + $0xc8] sm:$0xff] %v200
                %v202 = vld [vmem:[%s148 + $0x1a0] sm:$0xff]
                %203 = vst [vmem:[%s149 + $0xd0] sm:$0xff] %v202
                %v204 = vld [vmem:[%s148 + $0x1a8] sm:$0xff]
                %205 = vst [vmem:[%s149 + $0xd8] sm:$0xff] %v204
                %v206 = vld [vmem:[%s148 + $0x1c0] sm:$0xff]
                %207 = vst [vmem:[%s149 + $0xe0] sm:$0xff] %v206
                %v208 = vld [vmem:[%s148 + $0x1c8] sm:$0xff]
                %209 = vst [vmem:[%s149 + $0xe8] sm:$0xff] %v208
                %v210 = vld [vmem:[%s148 + $0x1e0] sm:$0xff]
                %211 = vst [vmem:[%s149 + $0xf0] sm:$0xff] %v210
                %v212 = vld [vmem:[%s148 + $0x1e8] sm:$0xff]
                %213 = vst [vmem:[%s149 + $0xf8] sm:$0xff] %v212
                %v214 = vld [vmem:[%s148 + $0x200] sm:$0xff]
                %215 = vst [vmem:[%s149 + $0x100] sm:$0xff] %v214
                %v216 = vld [vmem:[%s148 + $0x208] sm:$0xff]
                %217 = vst [vmem:[%s149 + $0x108] sm:$0xff] %v216
                %v218 = vld [vmem:[%s148 + $0x220] sm:$0xff]
                %219 = vst [vmem:[%s149 + $0x110] sm:$0xff] %v218
                %v220 = vld [vmem:[%s148 + $0x228] sm:$0xff]
                %221 = vst [vmem:[%s149 + $0x118] sm:$0xff] %v220
                %v222 = vld [vmem:[%s148 + $0x240] sm:$0xff]
                %223 = vst [vmem:[%s149 + $0x120] sm:$0xff] %v222
                %v224 = vld [vmem:[%s148 + $0x248] sm:$0xff]
                %225 = vst [vmem:[%s149 + $0x128] sm:$0xff] %v224
                %v226 = vld [vmem:[%s148 + $0x260] sm:$0xff]
                %227 = vst [vmem:[%s149 + $0x130] sm:$0xff] %v226
                %v228 = vld [vmem:[%s148 + $0x268] sm:$0xff]
                %229 = vst [vmem:[%s149 + $0x138] sm:$0xff] %v228
                %v230 = vld [vmem:[%s148 + $0x280] sm:$0xff]
                %231 = vst [vmem:[%s149 + $0x140] sm:$0xff] %v230
                %v232 = vld [vmem:[%s148 + $0x288] sm:$0xff]
                %233 = vst [vmem:[%s149 + $0x148] sm:$0xff] %v232
                %v234 = vld [vmem:[%s148 + $0x2a0] sm:$0xff]
                %235 = vst [vmem:[%s149 + $0x150] sm:$0xff] %v234
                %v236 = vld [vmem:[%s148 + $0x2a8] sm:$0xff]
                %237 = vst [vmem:[%s149 + $0x158] sm:$0xff] %v236
                %v238 = vld [vmem:[%s148 + $0x2c0] sm:$0xff]
                %239 = vst [vmem:[%s149 + $0x160] sm:$0xff] %v238
                %v240 = vld [vmem:[%s148 + $0x2c8] sm:$0xff]
                %241 = vst [vmem:[%s149 + $0x168] sm:$0xff] %v240
                %v242 = vld [vmem:[%s148 + $0x2e0] sm:$0xff]
                %243 = vst [vmem:[%s149 + $0x170] sm:$0xff] %v242
                %v244 = vld [vmem:[%s148 + $0x2e8] sm:$0xff]
                %245 = vst [vmem:[%s149 + $0x178] sm:$0xff] %v244
                %v246 = vld [vmem:[%s148 + $0x300] sm:$0xff]
                %247 = vst [vmem:[%s149 + $0x180] sm:$0xff] %v246
                %v248 = vld [vmem:[%s148 + $0x308] sm:$0xff]
                %249 = vst [vmem:[%s149 + $0x188] sm:$0xff] %v248
                %v250 = vld [vmem:[%s148 + $0x320] sm:$0xff]
                %251 = vst [vmem:[%s149 + $0x190] sm:$0xff] %v250
                %v252 = vld [vmem:[%s148 + $0x328] sm:$0xff]
                %253 = vst [vmem:[%s149 + $0x198] sm:$0xff] %v252
                %v254 = vld [vmem:[%s148 + $0x340] sm:$0xff]
                %255 = vst [vmem:[%s149 + $0x1a0] sm:$0xff] %v254
                %v256 = vld [vmem:[%s148 + $0x348] sm:$0xff]
                %257 = vst [vmem:[%s149 + $0x1a8] sm:$0xff] %v256
                %v258 = vld [vmem:[%s148 + $0x360] sm:$0xff]
                %259 = vst [vmem:[%s149 + $0x1b0] sm:$0xff] %v258
                %v260 = vld [vmem:[%s148 + $0x368] sm:$0xff]
                %261 = vst [vmem:[%s149 + $0x1b8] sm:$0xff] %v260
                %v262 = vld [vmem:[%s148 + $0x380] sm:$0xff]
                %263 = vst [vmem:[%s149 + $0x1c0] sm:$0xff] %v262
                %v264 = vld [vmem:[%s148 + $0x388] sm:$0xff]
                %265 = vst [vmem:[%s149 + $0x1c8] sm:$0xff] %v264
                %v266 = vld [vmem:[%s148 + $0x3a0] sm:$0xff]
                %267 = vst [vmem:[%s149 + $0x1d0] sm:$0xff] %v266
                %v268 = vld [vmem:[%s148 + $0x3a8] sm:$0xff]
                %269 = vst [vmem:[%s149 + $0x1d8] sm:$0xff] %v268
                %v270 = vld [vmem:[%s148 + $0x3c0] sm:$0xff]
                %271 = vst [vmem:[%s149 + $0x1e0] sm:$0xff] %v270
                %v272 = vld [vmem:[%s148 + $0x3c8] sm:$0xff]
                %273 = vst [vmem:[%s149 + $0x1e8] sm:$0xff] %v272
                %v274 = vld [vmem:[%s148 + $0x3e0] sm:$0xff]
                %275 = vst [vmem:[%s149 + $0x1f0] sm:$0xff] %v274
                %v276 = vld [vmem:[%s148 + $0x3e8] sm:$0xff]
                %277 = vst [vmem:[%s149 + $0x1f8] sm:$0xff] %v276
              $region41: #{actor_forward.4} parent=35 // loop_footer
                %s147 = sadd.s32 1, %s143
              $region42: #{actor_forward.4} parent=35 // loop_footer_branch
                %142 = sbr.rel target = $region38
              $region43: #{actor_forward.4} parent=35 // loop_exit
                _
            $region36: #{actor_forward.4} parent=31 // pred_fallthru
              _
            // Predicated region
            $region44: #{actor_forward.4} parent=31 // pred_check
              _
            $region45: #{actor_forward.4} parent=31 // pred_check_branch
              %279 = sbr.rel target = $region47
            $region46: #{actor_forward.4} parent=31 // pred_region
              _
            $region47: #{actor_forward.4} parent=31 // pred_fallthru
              _
          $region32: #{actor_forward.4} parent=27 // pred_fallthru
            _
          %280 = vnop
        $region28: #{actor_forward.4} parent=23 // pred_fallthru
          _
      $region24: #{actor_forward.4} parent=5 // pred_fallthru
        _
      %p281 = scmp.le.s32.totalorder 1, %s9
      %p282 = scmp.lt.s32.totalorder %s9, 3
      %p283 = pnand %p281, %p282
      %p284 = pneg %p283
      // Predicated region
      $region48: #{actor_forward.4} parent=5 // pred_check
        _
      $region49: #{actor_forward.4} parent=5 // pred_check_branch
        %286 = sbr.rel (%p283) target = $region51
      $region50: #{actor_forward.4} parent=5 // pred_region
        %s287 = ssub.s32 %s9, 1
        %s288 = sand.u32 %s43, 1
        %s289 = sand.u32 %s43, 1
        %s290 = smul.addr %s289, 512
        %s291 = scalar_lea.vmem [#allocation2], %s290
        // Predicated region
        $region52: #{actor_forward.4} parent=50 // pred_check
          %p292 = pneg %p56
        $region53: #{actor_forward.4} parent=50 // pred_check_branch
          %294 = sbr.rel (%p292) target = $region55
        $region54: #{actor_forward.4} parent=50 // pred_region
          _
        $region55: #{actor_forward.4} parent=50 // pred_fallthru
          _
        %p295 = pneg %p30
        %p296 = pneg %p27
        %s297 = sand.u32 %s43, 1
        %s298 = sand.u32 %s43, 1
        %s299 = smul.addr %s298, 512
        %s300 = scalar_lea.vmem [#allocation2], %s299
        %p301 = pneg %p56
        %p302 = pneg %p53
        %p303 = pneg %p77
        %p304 = pneg %p74
        %p305 = pneg %p103
        %p306 = pneg %p100
        %s307 = sand.u32 %s90, 1
        %s308 = sand.u32 %s90, 1
        %s309 = smul.addr %s308, 32
        %s310 = scalar_lea.vmem [#allocation3], %s309
        %s311 = smul.u32 4, %s14
        %s312 = smul.u32 4, %s14
        %v313 = vld [vmem:[%s0] sm:$0xff]
        %v314 = vld [vmem:[%s0 + $0x8] sm:$0xff]
        %v315 = vld [vmem:[%s291] sm:$0xff]
        %v316 = vld [vmem:[%s291 + $0x8] sm:$0xff]
        %v317 = vld [vmem:[%s291 + $0x10] sm:$0xff]
        %v318 = vld [vmem:[%s291 + $0x18] sm:$0xff]
        %v319 = vld [vmem:[%s291 + $0x20] sm:$0xff]
        %v320 = vld [vmem:[%s291 + $0x28] sm:$0xff]
        %v321 = vld [vmem:[%s291 + $0x30] sm:$0xff]
        %v322 = vld [vmem:[%s291 + $0x38] sm:$0xff]
        %v323 = vld [vmem:[%s291 + $0x40] sm:$0xff]
        %v324 = vld [vmem:[%s291 + $0x48] sm:$0xff]
        %v325 = vld [vmem:[%s291 + $0x50] sm:$0xff]
        %v326 = vld [vmem:[%s291 + $0x58] sm:$0xff]
        %v327 = vld [vmem:[%s291 + $0x60] sm:$0xff]
        %v328 = vld [vmem:[%s291 + $0x68] sm:$0xff]
        %v329 = vld [vmem:[%s291 + $0x70] sm:$0xff]
        %v330 = vld [vmem:[%s291 + $0x78] sm:$0xff]
        %v331 = vld [vmem:[%s291 + $0x80] sm:$0xff]
        %v332 = vld [vmem:[%s291 + $0x88] sm:$0xff]
        %v333 = vld [vmem:[%s291 + $0x90] sm:$0xff]
        %v334 = vld [vmem:[%s291 + $0x98] sm:$0xff]
        %v335 = vld [vmem:[%s291 + $0xa0] sm:$0xff]
        %v336 = vld [vmem:[%s291 + $0xa8] sm:$0xff]
        %v337 = vld [vmem:[%s291 + $0xb0] sm:$0xff]
        %v338 = vld [vmem:[%s291 + $0xb8] sm:$0xff]
        %v339 = vld [vmem:[%s291 + $0xc0] sm:$0xff]
        %v340 = vld [vmem:[%s291 + $0xc8] sm:$0xff]
        %v341 = vld [vmem:[%s291 + $0xd0] sm:$0xff]
        %v342 = vld [vmem:[%s291 + $0xd8] sm:$0xff]
        %v343 = vld [vmem:[%s291 + $0xe0] sm:$0xff]
        %v344 = vld [vmem:[%s291 + $0xe8] sm:$0xff]
        %v345 = vld [vmem:[%s291 + $0xf0] sm:$0xff]
        %v346 = vld [vmem:[%s291 + $0xf8] sm:$0xff]
        %v347 = vld [vmem:[%s291 + $0x100] sm:$0xff]
        %v348 = vld [vmem:[%s291 + $0x108] sm:$0xff]
        %v349 = vld [vmem:[%s291 + $0x110] sm:$0xff]
        %v350 = vld [vmem:[%s291 + $0x118] sm:$0xff]
        %v351 = vld [vmem:[%s291 + $0x120] sm:$0xff]
        %v352 = vld [vmem:[%s291 + $0x128] sm:$0xff]
        %v353 = vld [vmem:[%s291 + $0x130] sm:$0xff]
        %v354 = vld [vmem:[%s291 + $0x138] sm:$0xff]
        %v355 = vld [vmem:[%s291 + $0x140] sm:$0xff]
        %v356 = vld [vmem:[%s291 + $0x148] sm:$0xff]
        %v357 = vld [vmem:[%s291 + $0x150] sm:$0xff]
        %v358 = vld [vmem:[%s291 + $0x158] sm:$0xff]
        %v359 = vld [vmem:[%s291 + $0x160] sm:$0xff]
        %v360 = vld [vmem:[%s291 + $0x168] sm:$0xff]
        %v361 = vld [vmem:[%s291 + $0x170] sm:$0xff]
        %v362 = vld [vmem:[%s291 + $0x178] sm:$0xff]
        %v363 = vld [vmem:[%s291 + $0x180] sm:$0xff]
        %v364 = vld [vmem:[%s291 + $0x188] sm:$0xff]
        %v365 = vld [vmem:[%s291 + $0x190] sm:$0xff]
        %v366 = vld [vmem:[%s291 + $0x198] sm:$0xff]
        %v367 = vld [vmem:[%s291 + $0x1a0] sm:$0xff]
        %v368 = vld [vmem:[%s291 + $0x1a8] sm:$0xff]
        %v369 = vld [vmem:[%s291 + $0x1b0] sm:$0xff]
        %v370 = vld [vmem:[%s291 + $0x1b8] sm:$0xff]
        %v371 = vld [vmem:[%s291 + $0x1c0] sm:$0xff]
        %v372 = vld [vmem:[%s291 + $0x1c8] sm:$0xff]
        %v373 = vld [vmem:[%s291 + $0x1d0] sm:$0xff]
        %v374 = vld [vmem:[%s291 + $0x1d8] sm:$0xff]
        %v375 = vld [vmem:[%s291 + $0x1e0] sm:$0xff]
        %v376 = vld [vmem:[%s291 + $0x1e8] sm:$0xff]
        %v377 = vld [vmem:[%s291 + $0x1f0] sm:$0xff]
        %v378 = vld [vmem:[%s291 + $0x1f8] sm:$0xff]
        %v379 = vld [vmem:[%s2] sm:$0xff]
        %v380 = vld [vmem:[%s2 + $0x8] sm:$0xff]
        %382 = vset.pattern.permute.xlu0 0
        %383 = vperm.xlu0 %382, %v379
        %v384 = vpop.permute.xlu0 %383
        %387 = vset.pattern.permute.xlu0 0
        %388 = vperm.xlu0 %387, %v380
        %v389 = vpop.permute.xlu0 %388
        %v393 = vunpack.c.l.b16 %v313
        %v394 = vunpack.c.h.b16 %v313
        %v395 = vunpack.c.l.b16 %v314
        %v396 = vunpack.c.h.b16 %v314
        %v397 = vpack.c.b16 %v395, %v393
        %v398 = vpack.c.b16 %v396, %v394
        %v465 = vunpack.c.l.b16 %v315
        %v466 = vunpack.c.h.b16 %v315
        %v467 = vunpack.c.l.b16 %v316
        %v468 = vunpack.c.h.b16 %v316
        %v469 = vunpack.c.l.b16 %v317
        %v470 = vunpack.c.h.b16 %v317
        %v471 = vunpack.c.l.b16 %v318
        %v472 = vunpack.c.h.b16 %v318
        %v473 = vunpack.c.l.b16 %v319
        %v474 = vunpack.c.h.b16 %v319
        %v475 = vunpack.c.l.b16 %v320
        %v476 = vunpack.c.h.b16 %v320
        %v477 = vunpack.c.l.b16 %v321
        %v478 = vunpack.c.h.b16 %v321
        %v479 = vunpack.c.l.b16 %v322
        %v480 = vunpack.c.h.b16 %v322
        %v481 = vunpack.c.l.b16 %v323
        %v482 = vunpack.c.h.b16 %v323
        %v483 = vunpack.c.l.b16 %v324
        %v484 = vunpack.c.h.b16 %v324
        %v485 = vunpack.c.l.b16 %v325
        %v486 = vunpack.c.h.b16 %v325
        %v487 = vunpack.c.l.b16 %v326
        %v488 = vunpack.c.h.b16 %v326
        %v489 = vunpack.c.l.b16 %v327
        %v490 = vunpack.c.h.b16 %v327
        %v491 = vunpack.c.l.b16 %v328
        %v492 = vunpack.c.h.b16 %v328
        %v493 = vunpack.c.l.b16 %v329
        %v494 = vunpack.c.h.b16 %v329
        %v495 = vunpack.c.l.b16 %v330
        %v496 = vunpack.c.h.b16 %v330
        %v497 = vunpack.c.l.b16 %v331
        %v498 = vunpack.c.h.b16 %v331
        %v499 = vunpack.c.l.b16 %v332
        %v500 = vunpack.c.h.b16 %v332
        %v501 = vunpack.c.l.b16 %v333
        %v502 = vunpack.c.h.b16 %v333
        %v503 = vunpack.c.l.b16 %v334
        %v504 = vunpack.c.h.b16 %v334
        %v505 = vunpack.c.l.b16 %v335
        %v506 = vunpack.c.h.b16 %v335
        %v507 = vunpack.c.l.b16 %v336
        %v508 = vunpack.c.h.b16 %v336
        %v509 = vunpack.c.l.b16 %v337
        %v510 = vunpack.c.h.b16 %v337
        %v511 = vunpack.c.l.b16 %v338
        %v512 = vunpack.c.h.b16 %v338
        %v513 = vunpack.c.l.b16 %v339
        %v514 = vunpack.c.h.b16 %v339
        %v515 = vunpack.c.l.b16 %v340
        %v516 = vunpack.c.h.b16 %v340
        %v517 = vunpack.c.l.b16 %v341
        %v518 = vunpack.c.h.b16 %v341
        %v519 = vunpack.c.l.b16 %v342
        %v520 = vunpack.c.h.b16 %v342
        %v521 = vunpack.c.l.b16 %v343
        %v522 = vunpack.c.h.b16 %v343
        %v523 = vunpack.c.l.b16 %v344
        %v524 = vunpack.c.h.b16 %v344
        %v525 = vunpack.c.l.b16 %v345
        %v526 = vunpack.c.h.b16 %v345
        %v527 = vunpack.c.l.b16 %v346
        %v528 = vunpack.c.h.b16 %v346
        %v529 = vunpack.c.l.b16 %v347
        %v530 = vunpack.c.h.b16 %v347
        %v531 = vunpack.c.l.b16 %v348
        %v532 = vunpack.c.h.b16 %v348
        %v533 = vunpack.c.l.b16 %v349
        %v534 = vunpack.c.h.b16 %v349
        %v535 = vunpack.c.l.b16 %v350
        %v536 = vunpack.c.h.b16 %v350
        %v537 = vunpack.c.l.b16 %v351
        %v538 = vunpack.c.h.b16 %v351
        %v539 = vunpack.c.l.b16 %v352
        %v540 = vunpack.c.h.b16 %v352
        %v541 = vunpack.c.l.b16 %v353
        %v542 = vunpack.c.h.b16 %v353
        %v543 = vunpack.c.l.b16 %v354
        %v544 = vunpack.c.h.b16 %v354
        %v545 = vunpack.c.l.b16 %v355
        %v546 = vunpack.c.h.b16 %v355
        %v547 = vunpack.c.l.b16 %v356
        %v548 = vunpack.c.h.b16 %v356
        %v549 = vunpack.c.l.b16 %v357
        %v550 = vunpack.c.h.b16 %v357
        %v551 = vunpack.c.l.b16 %v358
        %v552 = vunpack.c.h.b16 %v358
        %v553 = vunpack.c.l.b16 %v359
        %v554 = vunpack.c.h.b16 %v359
        %v555 = vunpack.c.l.b16 %v360
        %v556 = vunpack.c.h.b16 %v360
        %v557 = vunpack.c.l.b16 %v361
        %v558 = vunpack.c.h.b16 %v361
        %v559 = vunpack.c.l.b16 %v362
        %v560 = vunpack.c.h.b16 %v362
        %v561 = vunpack.c.l.b16 %v363
        %v562 = vunpack.c.h.b16 %v363
        %v563 = vunpack.c.l.b16 %v364
        %v564 = vunpack.c.h.b16 %v364
        %v565 = vunpack.c.l.b16 %v365
        %v566 = vunpack.c.h.b16 %v365
        %v567 = vunpack.c.l.b16 %v366
        %v568 = vunpack.c.h.b16 %v366
        %v569 = vunpack.c.l.b16 %v367
        %v570 = vunpack.c.h.b16 %v367
        %v571 = vunpack.c.l.b16 %v368
        %v572 = vunpack.c.h.b16 %v368
        %v573 = vunpack.c.l.b16 %v369
        %v574 = vunpack.c.h.b16 %v369
        %v575 = vunpack.c.l.b16 %v370
        %v576 = vunpack.c.h.b16 %v370
        %v577 = vunpack.c.l.b16 %v371
        %v578 = vunpack.c.h.b16 %v371
        %v579 = vunpack.c.l.b16 %v372
        %v580 = vunpack.c.h.b16 %v372
        %v581 = vunpack.c.l.b16 %v373
        %v582 = vunpack.c.h.b16 %v373
        %v583 = vunpack.c.l.b16 %v374
        %v584 = vunpack.c.h.b16 %v374
        %v585 = vunpack.c.l.b16 %v375
        %v586 = vunpack.c.h.b16 %v375
        %v587 = vunpack.c.l.b16 %v376
        %v588 = vunpack.c.h.b16 %v376
        %v589 = vunpack.c.l.b16 %v377
        %v590 = vunpack.c.h.b16 %v377
        %v591 = vunpack.c.l.b16 %v378
        %v592 = vunpack.c.h.b16 %v378
        %v593 = vpack.c.b16 %v469, %v465
        %v594 = vpack.c.b16 %v470, %v466
        %v595 = vpack.c.b16 %v471, %v467
        %v596 = vpack.c.b16 %v472, %v468
        %v597 = vpack.c.b16 %v477, %v473
        %v598 = vpack.c.b16 %v478, %v474
        %v599 = vpack.c.b16 %v479, %v475
        %v600 = vpack.c.b16 %v480, %v476
        %v601 = vpack.c.b16 %v485, %v481
        %v602 = vpack.c.b16 %v486, %v482
        %v603 = vpack.c.b16 %v487, %v483
        %v604 = vpack.c.b16 %v488, %v484
        %v605 = vpack.c.b16 %v493, %v489
        %v606 = vpack.c.b16 %v494, %v490
        %v607 = vpack.c.b16 %v495, %v491
        %v608 = vpack.c.b16 %v496, %v492
        %v609 = vpack.c.b16 %v501, %v497
        %v610 = vpack.c.b16 %v502, %v498
        %v611 = vpack.c.b16 %v503, %v499
        %v612 = vpack.c.b16 %v504, %v500
        %v613 = vpack.c.b16 %v509, %v505
        %v614 = vpack.c.b16 %v510, %v506
        %v615 = vpack.c.b16 %v511, %v507
        %v616 = vpack.c.b16 %v512, %v508
        %v617 = vpack.c.b16 %v517, %v513
        %v618 = vpack.c.b16 %v518, %v514
        %v619 = vpack.c.b16 %v519, %v515
        %v620 = vpack.c.b16 %v520, %v516
        %v621 = vpack.c.b16 %v525, %v521
        %v622 = vpack.c.b16 %v526, %v522
        %v623 = vpack.c.b16 %v527, %v523
        %v624 = vpack.c.b16 %v528, %v524
        %v625 = vpack.c.b16 %v533, %v529
        %v626 = vpack.c.b16 %v534, %v530
        %v627 = vpack.c.b16 %v535, %v531
        %v628 = vpack.c.b16 %v536, %v532
        %v629 = vpack.c.b16 %v541, %v537
        %v630 = vpack.c.b16 %v542, %v538
        %v631 = vpack.c.b16 %v543, %v539
        %v632 = vpack.c.b16 %v544, %v540
        %v633 = vpack.c.b16 %v549, %v545
        %v634 = vpack.c.b16 %v550, %v546
        %v635 = vpack.c.b16 %v551, %v547
        %v636 = vpack.c.b16 %v552, %v548
        %v637 = vpack.c.b16 %v557, %v553
        %v638 = vpack.c.b16 %v558, %v554
        %v639 = vpack.c.b16 %v559, %v555
        %v640 = vpack.c.b16 %v560, %v556
        %v641 = vpack.c.b16 %v565, %v561
        %v642 = vpack.c.b16 %v566, %v562
        %v643 = vpack.c.b16 %v567, %v563
        %v644 = vpack.c.b16 %v568, %v564
        %v645 = vpack.c.b16 %v573, %v569
        %v646 = vpack.c.b16 %v574, %v570
        %v647 = vpack.c.b16 %v575, %v571
        %v648 = vpack.c.b16 %v576, %v572
        %v649 = vpack.c.b16 %v581, %v577
        %v650 = vpack.c.b16 %v582, %v578
        %v651 = vpack.c.b16 %v583, %v579
        %v652 = vpack.c.b16 %v584, %v580
        %v653 = vpack.c.b16 %v589, %v585
        %v654 = vpack.c.b16 %v590, %v586
        %v655 = vpack.c.b16 %v591, %v587
        %v656 = vpack.c.b16 %v592, %v588
        %721 = vmatprep.subr.bf16.mxu0 %v594
        %722 = vmatpush1.bf16.msra.mxu0 %v593
        %723 = vmatprep.subr.bf16.mxu0 %v598
        %724 = vmatpush1.bf16.msra.mxu0 %v597
        %725 = vmatprep.subr.bf16.mxu0 %v602
        %726 = vmatpush1.bf16.msra.mxu0 %v601
        %727 = vmatprep.subr.bf16.mxu0 %v606
        %728 = vmatpush1.bf16.msra.mxu0 %v605
        %729 = vmatprep.subr.bf16.mxu0 %v610
        %730 = vmatpush1.bf16.msra.mxu0 %v609
        %731 = vmatprep.subr.bf16.mxu0 %v614
        %732 = vmatpush1.bf16.msra.mxu0 %v613
        %733 = vmatprep.subr.bf16.mxu0 %v618
        %734 = vmatpush1.bf16.msra.mxu0 %v617
        %735 = vmatprep.subr.bf16.mxu0 %v622
        %736 = vmatpush1.bf16.msra.mxu0 %v621
        %737 = vmatprep.subr.bf16.mxu0 %v626
        %738 = vmatpush1.bf16.msra.mxu0 %v625
        %739 = vmatprep.subr.bf16.mxu0 %v630
        %740 = vmatpush1.bf16.msra.mxu0 %v629
        %741 = vmatprep.subr.bf16.mxu0 %v634
        %742 = vmatpush1.bf16.msra.mxu0 %v633
        %743 = vmatprep.subr.bf16.mxu0 %v638
        %744 = vmatpush1.bf16.msra.mxu0 %v637
        %745 = vmatprep.subr.bf16.mxu0 %v642
        %746 = vmatpush1.bf16.msra.mxu0 %v641
        %747 = vmatprep.subr.bf16.mxu0 %v646
        %748 = vmatpush1.bf16.msra.mxu0 %v645
        %749 = vmatprep.subr.bf16.mxu0 %v650
        %750 = vmatpush1.bf16.msra.mxu0 %v649
        %751 = vmatprep.subr.bf16.mxu0 %v654
        %752 = vmatpush1.bf16.msra.mxu0 %v653
        %753 = vmatprep.mubr.bf16.mxu0 %v398
        %754 = vmatmul.mubr.bf16.gmra.mrb[0].mxu0 %v397
        %v755 = vpop.f32.mrb[0].mxu0
        %v756 = vadd.f32 %v384, %v755
        %v757 = vpop.f32.mrb[0].mxu0
        %v758 = vadd.f32 %v384, %v757
        %v759 = vpop.f32.mrb[0].mxu0
        %v760 = vadd.f32 %v389, %v759
        %v761 = vpop.f32.mrb[0].mxu0
        %v762 = vadd.f32 %v389, %v761
        %763 = vdwg.mxu0
        %764 = vmatprep.subr.bf16.mxu0 %v596
        %765 = vmatpush1.bf16.msra.mxu0 %v595
        %766 = vmatprep.subr.bf16.mxu0 %v600
        %767 = vmatpush1.bf16.msra.mxu0 %v599
        %768 = vmatprep.subr.bf16.mxu0 %v604
        %769 = vmatpush1.bf16.msra.mxu0 %v603
        %770 = vmatprep.subr.bf16.mxu0 %v608
        %771 = vmatpush1.bf16.msra.mxu0 %v607
        %772 = vmatprep.subr.bf16.mxu0 %v612
        %773 = vmatpush1.bf16.msra.mxu0 %v611
        %774 = vmatprep.subr.bf16.mxu0 %v616
        %775 = vmatpush1.bf16.msra.mxu0 %v615
        %776 = vmatprep.subr.bf16.mxu0 %v620
        %777 = vmatpush1.bf16.msra.mxu0 %v619
        %778 = vmatprep.subr.bf16.mxu0 %v624
        %779 = vmatpush1.bf16.msra.mxu0 %v623
        %780 = vmatprep.subr.bf16.mxu0 %v628
        %781 = vmatpush1.bf16.msra.mxu0 %v627
        %782 = vmatprep.subr.bf16.mxu0 %v632
        %783 = vmatpush1.bf16.msra.mxu0 %v631
        %784 = vmatprep.subr.bf16.mxu0 %v636
        %785 = vmatpush1.bf16.msra.mxu0 %v635
        %786 = vmatprep.subr.bf16.mxu0 %v640
        %787 = vmatpush1.bf16.msra.mxu0 %v639
        %788 = vmatprep.subr.bf16.mxu0 %v644
        %789 = vmatpush1.bf16.msra.mxu0 %v643
        %790 = vmatprep.subr.bf16.mxu0 %v648
        %791 = vmatpush1.bf16.msra.mxu0 %v647
        %792 = vmatprep.subr.bf16.mxu0 %v652
        %793 = vmatpush1.bf16.msra.mxu0 %v651
        %794 = vmatprep.subr.bf16.mxu0 %v656
        %795 = vmatpush1.bf16.msra.mxu0 %v655
        %796 = vmatprep.mubr.bf16.mxu0 %v398
        %797 = vmatmul.mubr.bf16.gmra.mrb[0].mxu0 %v397
        %v798 = vpop.f32.mrb[0].mxu0
        %v799 = vadd.f32 %v384, %v798
        %v800 = vpop.f32.mrb[0].mxu0
        %v801 = vadd.f32 %v384, %v800
        %v802 = vpop.f32.mrb[0].mxu0
        %v803 = vadd.f32 %v389, %v802
        %v804 = vpop.f32.mrb[0].mxu0
        %v805 = vadd.f32 %v389, %v804
        %806 = vdwg.mxu0
        %vm807 = vcmp.ge.f32.partialorder %v756, 0.0
        %vm808 = vcmp.ge.f32.partialorder %v758, 0.0
        %vm809 = vcmp.ge.f32.partialorder %v799, 0.0
        %vm810 = vcmp.ge.f32.partialorder %v801, 0.0
        %vm811 = vcmp.ge.f32.partialorder %v760, 0.0
        %vm812 = vcmp.ge.f32.partialorder %v762, 0.0
        %vm813 = vcmp.ge.f32.partialorder %v803, 0.0
        %vm814 = vcmp.ge.f32.partialorder %v805, 0.0
        %v815 = vmul.f32 %v756, 0.01
        %v816 = vmul.f32 %v758, 0.01
        %v817 = vmul.f32 %v799, 0.01
        %v818 = vmul.f32 %v801, 0.01
        %v819 = vmul.f32 %v760, 0.01
        %v820 = vmul.f32 %v762, 0.01
        %v821 = vmul.f32 %v803, 0.01
        %v822 = vmul.f32 %v805, 0.01
        %v823 = vsel %vm807, %v756, %v815
        %v824 = vsel %vm808, %v758, %v816
        %v825 = vsel %vm809, %v799, %v817
        %v826 = vsel %vm810, %v801, %v818
        %v827 = vsel %vm811, %v760, %v819
        %v828 = vsel %vm812, %v762, %v820
        %v829 = vsel %vm813, %v803, %v821
        %v830 = vsel %vm814, %v805, %v822
        %v831 = vpack.c.bf16 %v827, %v823
        %v832 = vpack.c.bf16 %v828, %v824
        %v833 = vpack.c.bf16 %v829, %v825
        %v834 = vpack.c.bf16 %v830, %v826
        %v839 = vunpack.c.l.b16 %v831
        %v840 = vunpack.c.l.b16 %v832
        %v841 = vunpack.c.l.b16 %v833
        %v842 = vunpack.c.l.b16 %v834
        %v843 = vunpack.c.h.b16 %v831
        %v844 = vunpack.c.h.b16 %v832
        %v845 = vunpack.c.h.b16 %v833
        %v846 = vunpack.c.h.b16 %v834
        %v847 = vpack.c.b16 %v840, %v839
        %v848 = vpack.c.b16 %v842, %v841
        %v849 = vpack.c.b16 %v844, %v843
        %v850 = vpack.c.b16 %v846, %v845
        %855 = vst [vmem:[%s310] sm:$0xff] %v847
        %856 = vst [vmem:[%s310 + $0x8] sm:$0xff] %v848
        %857 = vst [vmem:[%s310 + $0x10] sm:$0xff] %v849
        %858 = vst [vmem:[%s310 + $0x18] sm:$0xff] %v850
        %s859 = sand.u32 %s90, 1
        %s860 = sand.u32 %s90, 1
        %s861 = smul.addr %s860, 32
        %s862 = scalar_lea.vmem [#allocation3], %s861
        // Predicated region
        $region56: #{actor_forward.4} parent=50 // pred_check
          %p863 = pneg %p100
        $region57: #{actor_forward.4} parent=50 // pred_check_branch
          %865 = sbr.rel (%p863) target = $region59
        $region58: #{actor_forward.4} parent=50 // pred_region
          %s866 = smul.u32 4, %s14
          %s867 = smul.addr %s866, 4
          %s868 = scalar_lea.vmem %s3, %s867
          // Predicated region
          $region60: #{actor_forward.4} parent=58 // pred_check
            _
          $region61: #{actor_forward.4} parent=58 // pred_check_branch
            %870 = sbr.rel (0) target = $region63
          $region62: #{actor_forward.4} parent=58 // pred_region
            // Predicated region
            $region64: #{actor_forward.4} parent=62 // pred_check
              _
            $region65: #{actor_forward.4} parent=62 // pred_check_branch
              %872 = sbr.rel (0) target = $region67
            $region66: #{actor_forward.4} parent=62 // pred_region
              loop: start=0, step=1, limit=1
              $region68: #{actor_forward.4} parent=66 // loop_pre_header
                _
              $region69: #{actor_forward.4} parent=66 // loop_header
                %s874 = sphi 0, %s878
                %p875 = scmp.ge.s32.totalorder %s874, 1
                %s879 = sphi %s862, %s862
                %s880 = sphi %s868, %s868
              $region70: #{actor_forward.4} parent=66 // loop_header_branch
                %877 = sbr.rel (%p875) target = $region74
              $region71: #{actor_forward.4} parent=66 // loop_body
                %v881 = vld [vmem:[%s879] sm:$0xff]
                %882 = vst [vmem:[%s880] sm:$0xff] %v881
                %v883 = vld [vmem:[%s879 + $0x8] sm:$0xff]
                %884 = vst [vmem:[%s880 + $0x8] sm:$0xff] %v883
                %v885 = vld [vmem:[%s879 + $0x10] sm:$0xff]
                %886 = vst [vmem:[%s880 + $0x20] sm:$0xff] %v885
                %v887 = vld [vmem:[%s879 + $0x18] sm:$0xff]
                %888 = vst [vmem:[%s880 + $0x28] sm:$0xff] %v887
              $region72: #{actor_forward.4} parent=66 // loop_footer
                %s878 = sadd.s32 1, %s874
              $region73: #{actor_forward.4} parent=66 // loop_footer_branch
                %873 = sbr.rel target = $region69
              $region74: #{actor_forward.4} parent=66 // loop_exit
                _
            $region67: #{actor_forward.4} parent=62 // pred_fallthru
              _
            // Predicated region
            $region75: #{actor_forward.4} parent=62 // pred_check
              _
            $region76: #{actor_forward.4} parent=62 // pred_check_branch
              %890 = sbr.rel target = $region78
            $region77: #{actor_forward.4} parent=62 // pred_region
              _
            $region78: #{actor_forward.4} parent=62 // pred_fallthru
              _
          $region63: #{actor_forward.4} parent=58 // pred_fallthru
            _
          %891 = vnop
        $region59: #{actor_forward.4} parent=50 // pred_fallthru
          _
      $region51: #{actor_forward.4} parent=5 // pred_fallthru
        _
      %p892 = scmp.le.s32.totalorder 2, %s9
      // Predicated region
      $region79: #{actor_forward.4} parent=5 // pred_check
        %p893 = pneg %p892
      $region80: #{actor_forward.4} parent=5 // pred_check_branch
        %895 = sbr.rel (%p893) target = $region82
      $region81: #{actor_forward.4} parent=5 // pred_region
        %s896 = ssub.s32 %s9, 2
        // Predicated region
        $region83: #{actor_forward.4} parent=81 // pred_check
          %p897 = pneg %p106
        $region84: #{actor_forward.4} parent=81 // pred_check_branch
          %899 = sbr.rel (%p897) target = $region86
        $region85: #{actor_forward.4} parent=81 // pred_region
          %s900 = sand.u32 %s91, 1
          %s901 = sand.u32 %s91, 1
          %s902 = smul.addr %s901, 32
          %s903 = scalar_lea.vmem [#allocation3], %s902
        $region86: #{actor_forward.4} parent=81 // pred_fallthru
          _
      $region82: #{actor_forward.4} parent=5 // pred_fallthru
        _
    $region6: #{actor_forward.4} parent=1 // loop_footer
      %s13 = sadd.s32 1, %s9
    $region7: #{actor_forward.4} parent=1 // loop_footer_branch
      %8 = sbr.rel target = $region3
    $region8: #{actor_forward.4} parent=1 // loop_exit
      _

// kernel: actor_forward.5
$region0: #{actor_forward.5}
  #allocation0 [shape = 'u32[]', space=smem, size = 0x4, offset = 0x4, fixed_abs, tag = 'smem constant byte address 0x4 - core index']
  #allocation1 [shape = 'u32[144,128]{1,0:T(1,128)}', space=vmem, size = 0x12000, scoped, tag = 'internal scratch']
  %s0 = inlined_call_operand.vmem [shape: bf16[32,256], index: 0, kind: input, shape index: {}]
  %s1 = inlined_call_operand.vmem [shape: bf16[256,256], index: 1, kind: input, shape index: {}]
  %s2 = inlined_call_operand.vmem [shape: f32[32,1], index: 2, kind: input, shape index: {}]
  %s3 = inlined_call_operand.vmem [shape: bf16[32,256], index: 3, kind: output, shape index: {}]
  %s4 = sld [smem:[#allocation0]]
  $region22: #{actor_forward.5} parent=0
    _
  %s6 = ssub.s32 1, %s4
  %s7 = scalar_select 0, %s6, %s4
  // Predicated region
  $region2: #{actor_forward.5} parent=0 // pred_check
    _
  $region3: #{actor_forward.5} parent=0 // pred_check_branch
    %9 = sbr.rel (0) target = $region5
  $region4: #{actor_forward.5} parent=0 // pred_region
    _
  $region5: #{actor_forward.5} parent=0 // pred_fallthru
    _
  // Predicated region
  $region6: #{actor_forward.5} parent=0 // pred_check
    _
  $region7: #{actor_forward.5} parent=0 // pred_check_branch
    %11 = sbr.rel (0) target = $region9
  $region8: #{actor_forward.5} parent=0 // pred_region
    _
  $region9: #{actor_forward.5} parent=0 // pred_fallthru
    _
  // Predicated region
  $region10: #{actor_forward.5} parent=0 // pred_check
    _
  $region11: #{actor_forward.5} parent=0 // pred_check_branch
    %13 = sbr.rel (0) target = $region13
  $region12: #{actor_forward.5} parent=0 // pred_region
    _
  $region13: #{actor_forward.5} parent=0 // pred_fallthru
    _
  %v14 = vld [vmem:[%s0] sm:$0xff]
  %v15 = vld [vmem:[%s0 + $0x8] sm:$0xff]
  %v16 = vld [vmem:[%s0 + $0x10] sm:$0xff]
  %v17 = vld [vmem:[%s0 + $0x18] sm:$0xff]
  %v18 = vld [vmem:[%s1] sm:$0xff]
  %v19 = vld [vmem:[%s1 + $0x8] sm:$0xff]
  %v20 = vld [vmem:[%s1 + $0x10] sm:$0xff]
  %v21 = vld [vmem:[%s1 + $0x18] sm:$0xff]
  %v22 = vld [vmem:[%s1 + $0x20] sm:$0xff]
  %v23 = vld [vmem:[%s1 + $0x28] sm:$0xff]
  %v24 = vld [vmem:[%s1 + $0x30] sm:$0xff]
  %v25 = vld [vmem:[%s1 + $0x38] sm:$0xff]
  %v26 = vld [vmem:[%s1 + $0x40] sm:$0xff]
  %v27 = vld [vmem:[%s1 + $0x48] sm:$0xff]
  %v28 = vld [vmem:[%s1 + $0x50] sm:$0xff]
  %v29 = vld [vmem:[%s1 + $0x58] sm:$0xff]
  %v30 = vld [vmem:[%s1 + $0x60] sm:$0xff]
  %v31 = vld [vmem:[%s1 + $0x68] sm:$0xff]
  %v32 = vld [vmem:[%s1 + $0x70] sm:$0xff]
  %v33 = vld [vmem:[%s1 + $0x78] sm:$0xff]
  %v34 = vld [vmem:[%s1 + $0x80] sm:$0xff]
  %v35 = vld [vmem:[%s1 + $0x88] sm:$0xff]
  %v36 = vld [vmem:[%s1 + $0x90] sm:$0xff]
  %v37 = vld [vmem:[%s1 + $0x98] sm:$0xff]
  %v38 = vld [vmem:[%s1 + $0xa0] sm:$0xff]
  %v39 = vld [vmem:[%s1 + $0xa8] sm:$0xff]
  %v40 = vld [vmem:[%s1 + $0xb0] sm:$0xff]
  %v41 = vld [vmem:[%s1 + $0xb8] sm:$0xff]
  %v42 = vld [vmem:[%s1 + $0xc0] sm:$0xff]
  %v43 = vld [vmem:[%s1 + $0xc8] sm:$0xff]
  %v44 = vld [vmem:[%s1 + $0xd0] sm:$0xff]
  %v45 = vld [vmem:[%s1 + $0xd8] sm:$0xff]
  %v46 = vld [vmem:[%s1 + $0xe0] sm:$0xff]
  %v47 = vld [vmem:[%s1 + $0xe8] sm:$0xff]
  %v48 = vld [vmem:[%s1 + $0xf0] sm:$0xff]
  %v49 = vld [vmem:[%s1 + $0xf8] sm:$0xff]
  %v50 = vld [vmem:[%s2] sm:$0xff]
  %v51 = vld [vmem:[%s2 + $0x8] sm:$0xff]
  %v52 = vld [vmem:[%s2 + $0x10] sm:$0xff]
  %v53 = vld [vmem:[%s2 + $0x18] sm:$0xff]
  %55 = vset.pattern.permute.xlu0 0
  %56 = vperm.xlu0 %55, %v50
  %v57 = vpop.permute.xlu0 %56
  %60 = vset.pattern.permute.xlu0 0
  %61 = vperm.xlu0 %60, %v51
  %v62 = vpop.permute.xlu0 %61
  %65 = vset.pattern.permute.xlu0 0
  %66 = vperm.xlu0 %65, %v52
  %v67 = vpop.permute.xlu0 %66
  %70 = vset.pattern.permute.xlu0 0
  %71 = vperm.xlu0 %70, %v53
  %v72 = vpop.permute.xlu0 %71
  %v78 = vunpack.c.l.b16 %v14
  %v79 = vunpack.c.h.b16 %v14
  %v80 = vunpack.c.l.b16 %v15
  %v81 = vunpack.c.h.b16 %v15
  %v82 = vunpack.c.l.b16 %v16
  %v83 = vunpack.c.h.b16 %v16
  %v84 = vunpack.c.l.b16 %v17
  %v85 = vunpack.c.h.b16 %v17
  %v86 = vpack.c.b16 %v80, %v78
  %v87 = vpack.c.b16 %v81, %v79
  %v88 = vpack.c.b16 %v84, %v82
  %v89 = vpack.c.b16 %v85, %v83
  %v126 = vunpack.c.l.b16 %v18
  %v127 = vunpack.c.h.b16 %v18
  %v128 = vunpack.c.l.b16 %v19
  %v129 = vunpack.c.h.b16 %v19
  %v130 = vunpack.c.l.b16 %v20
  %v131 = vunpack.c.h.b16 %v20
  %v132 = vunpack.c.l.b16 %v21
  %v133 = vunpack.c.h.b16 %v21
  %v134 = vunpack.c.l.b16 %v22
  %v135 = vunpack.c.h.b16 %v22
  %v136 = vunpack.c.l.b16 %v23
  %v137 = vunpack.c.h.b16 %v23
  %v138 = vunpack.c.l.b16 %v24
  %v139 = vunpack.c.h.b16 %v24
  %v140 = vunpack.c.l.b16 %v25
  %v141 = vunpack.c.h.b16 %v25
  %v142 = vunpack.c.l.b16 %v26
  %v143 = vunpack.c.h.b16 %v26
  %v144 = vunpack.c.l.b16 %v27
  %v145 = vunpack.c.h.b16 %v27
  %v146 = vunpack.c.l.b16 %v28
  %v147 = vunpack.c.h.b16 %v28
  %v148 = vunpack.c.l.b16 %v29
  %v149 = vunpack.c.h.b16 %v29
  %v150 = vunpack.c.l.b16 %v30
  %v151 = vunpack.c.h.b16 %v30
  %v152 = vunpack.c.l.b16 %v31
  %v153 = vunpack.c.h.b16 %v31
  %v154 = vunpack.c.l.b16 %v32
  %v155 = vunpack.c.h.b16 %v32
  %v156 = vunpack.c.l.b16 %v33
  %v157 = vunpack.c.h.b16 %v33
  %v158 = vunpack.c.l.b16 %v34
  %v159 = vunpack.c.h.b16 %v34
  %v160 = vunpack.c.l.b16 %v35
  %v161 = vunpack.c.h.b16 %v35
  %v162 = vunpack.c.l.b16 %v36
  %v163 = vunpack.c.h.b16 %v36
  %v164 = vunpack.c.l.b16 %v37
  %v165 = vunpack.c.h.b16 %v37
  %v166 = vunpack.c.l.b16 %v38
  %v167 = vunpack.c.h.b16 %v38
  %v168 = vunpack.c.l.b16 %v39
  %v169 = vunpack.c.h.b16 %v39
  %v170 = vunpack.c.l.b16 %v40
  %v171 = vunpack.c.h.b16 %v40
  %v172 = vunpack.c.l.b16 %v41
  %v173 = vunpack.c.h.b16 %v41
  %v174 = vunpack.c.l.b16 %v42
  %v175 = vunpack.c.h.b16 %v42
  %v176 = vunpack.c.l.b16 %v43
  %v177 = vunpack.c.h.b16 %v43
  %v178 = vunpack.c.l.b16 %v44
  %v179 = vunpack.c.h.b16 %v44
  %v180 = vunpack.c.l.b16 %v45
  %v181 = vunpack.c.h.b16 %v45
  %v182 = vunpack.c.l.b16 %v46
  %v183 = vunpack.c.h.b16 %v46
  %v184 = vunpack.c.l.b16 %v47
  %v185 = vunpack.c.h.b16 %v47
  %v186 = vunpack.c.l.b16 %v48
  %v187 = vunpack.c.h.b16 %v48
  %v188 = vunpack.c.l.b16 %v49
  %v189 = vunpack.c.h.b16 %v49
  %v190 = vpack.c.b16 %v128, %v126
  %v191 = vpack.c.b16 %v129, %v127
  %v192 = vpack.c.b16 %v132, %v130
  %v193 = vpack.c.b16 %v133, %v131
  %v194 = vpack.c.b16 %v136, %v134
  %v195 = vpack.c.b16 %v137, %v135
  %v196 = vpack.c.b16 %v140, %v138
  %v197 = vpack.c.b16 %v141, %v139
  %v198 = vpack.c.b16 %v144, %v142
  %v199 = vpack.c.b16 %v145, %v143
  %v200 = vpack.c.b16 %v148, %v146
  %v201 = vpack.c.b16 %v149, %v147
  %v202 = vpack.c.b16 %v152, %v150
  %v203 = vpack.c.b16 %v153, %v151
  %v204 = vpack.c.b16 %v156, %v154
  %v205 = vpack.c.b16 %v157, %v155
  %v206 = vpack.c.b16 %v160, %v158
  %v207 = vpack.c.b16 %v161, %v159
  %v208 = vpack.c.b16 %v164, %v162
  %v209 = vpack.c.b16 %v165, %v163
  %v210 = vpack.c.b16 %v168, %v166
  %v211 = vpack.c.b16 %v169, %v167
  %v212 = vpack.c.b16 %v172, %v170
  %v213 = vpack.c.b16 %v173, %v171
  %v214 = vpack.c.b16 %v176, %v174
  %v215 = vpack.c.b16 %v177, %v175
  %v216 = vpack.c.b16 %v180, %v178
  %v217 = vpack.c.b16 %v181, %v179
  %v218 = vpack.c.b16 %v184, %v182
  %v219 = vpack.c.b16 %v185, %v183
  %v220 = vpack.c.b16 %v188, %v186
  %v221 = vpack.c.b16 %v189, %v187
  %254 = vmatprep.subr.bf16.mxu0 %v191
  %255 = vmatpush1.bf16.msra.mxu0 %v190
  %256 = vmatprep.subr.bf16.mxu0 %v193
  %257 = vmatpush1.bf16.msra.mxu0 %v192
  %258 = vmatprep.subr.bf16.mxu0 %v195
  %259 = vmatpush1.bf16.msra.mxu0 %v194
  %260 = vmatprep.subr.bf16.mxu0 %v197
  %261 = vmatpush1.bf16.msra.mxu0 %v196
  %262 = vmatprep.subr.bf16.mxu0 %v199
  %263 = vmatpush1.bf16.msra.mxu0 %v198
  %264 = vmatprep.subr.bf16.mxu0 %v201
  %265 = vmatpush1.bf16.msra.mxu0 %v200
  %266 = vmatprep.subr.bf16.mxu0 %v203
  %267 = vmatpush1.bf16.msra.mxu0 %v202
  %268 = vmatprep.subr.bf16.mxu0 %v205
  %269 = vmatpush1.bf16.msra.mxu0 %v204
  %270 = vmatprep.subr.bf16.mxu0 %v207
  %271 = vmatpush1.bf16.msra.mxu0 %v206
  %272 = vmatprep.subr.bf16.mxu0 %v209
  %273 = vmatpush1.bf16.msra.mxu0 %v208
  %274 = vmatprep.subr.bf16.mxu0 %v211
  %275 = vmatpush1.bf16.msra.mxu0 %v210
  %276 = vmatprep.subr.bf16.mxu0 %v213
  %277 = vmatpush1.bf16.msra.mxu0 %v212
  %278 = vmatprep.subr.bf16.mxu0 %v215
  %279 = vmatpush1.bf16.msra.mxu0 %v214
  %280 = vmatprep.subr.bf16.mxu0 %v217
  %281 = vmatpush1.bf16.msra.mxu0 %v216
  %282 = vmatprep.subr.bf16.mxu0 %v219
  %283 = vmatpush1.bf16.msra.mxu0 %v218
  %284 = vmatprep.subr.bf16.mxu0 %v221
  %285 = vmatpush1.bf16.msra.mxu0 %v220
  %286 = vmatprep.mubr.bf16.mxu0 %v87
  %287 = vmatmul.mubr.bf16.gmra.mrb[0].mxu0 %v86
  %v288 = vpop.f32.mrb[0].mxu0
  %v289 = vadd.f32 %v57, %v288
  %v290 = vpop.f32.mrb[0].mxu0
  %v291 = vadd.f32 %v57, %v290
  %v292 = vpop.f32.mrb[0].mxu0
  %v293 = vadd.f32 %v62, %v292
  %v294 = vpop.f32.mrb[0].mxu0
  %v295 = vadd.f32 %v62, %v294
  %296 = vmatprep.mubr.bf16.mxu0 %v89
  %297 = vmatmul.mubr.bf16.gmra.mrb[0].mxu0 %v88
  %v298 = vpop.f32.mrb[0].mxu0
  %v299 = vadd.f32 %v67, %v298
  %v300 = vpop.f32.mrb[0].mxu0
  %v301 = vadd.f32 %v67, %v300
  %v302 = vpop.f32.mrb[0].mxu0
  %v303 = vadd.f32 %v72, %v302
  %v304 = vpop.f32.mrb[0].mxu0
  %v305 = vadd.f32 %v72, %v304
  %306 = vdwg.mxu0
  %vm307 = vcmp.ge.f32.partialorder %v289, 0.0
  %vm308 = vcmp.ge.f32.partialorder %v291, 0.0
  %vm309 = vcmp.ge.f32.partialorder %v293, 0.0
  %vm310 = vcmp.ge.f32.partialorder %v295, 0.0
  %vm311 = vcmp.ge.f32.partialorder %v299, 0.0
  %vm312 = vcmp.ge.f32.partialorder %v301, 0.0
  %vm313 = vcmp.ge.f32.partialorder %v303, 0.0
  %vm314 = vcmp.ge.f32.partialorder %v305, 0.0
  %v315 = vmul.f32 %v289, 0.01
  %v316 = vmul.f32 %v291, 0.01
  %v317 = vmul.f32 %v293, 0.01
  %v318 = vmul.f32 %v295, 0.01
  %v319 = vmul.f32 %v299, 0.01
  %v320 = vmul.f32 %v301, 0.01
  %v321 = vmul.f32 %v303, 0.01
  %v322 = vmul.f32 %v305, 0.01
  %v323 = vsel %vm307, %v289, %v315
  %v324 = vsel %vm308, %v291, %v316
  %v325 = vsel %vm309, %v293, %v317
  %v326 = vsel %vm310, %v295, %v318
  %v327 = vsel %vm311, %v299, %v319
  %v328 = vsel %vm312, %v301, %v320
  %v329 = vsel %vm313, %v303, %v321
  %v330 = vsel %vm314, %v305, %v322
  %v331 = vpack.c.bf16 %v325, %v323
  %v332 = vpack.c.bf16 %v326, %v324
  %v333 = vpack.c.bf16 %v329, %v327
  %v334 = vpack.c.bf16 %v330, %v328
  %v339 = vunpack.c.l.b16 %v331
  %v340 = vunpack.c.l.b16 %v332
  %v341 = vunpack.c.h.b16 %v331
  %v342 = vunpack.c.h.b16 %v332
  %v343 = vunpack.c.l.b16 %v333
  %v344 = vunpack.c.l.b16 %v334
  %v345 = vunpack.c.h.b16 %v333
  %v346 = vunpack.c.h.b16 %v334
  %v347 = vpack.c.b16 %v340, %v339
  %v348 = vpack.c.b16 %v342, %v341
  %v349 = vpack.c.b16 %v344, %v343
  %v350 = vpack.c.b16 %v346, %v345
  %355 = vst [vmem:[%s3] sm:$0xff] %v347
  %356 = vst [vmem:[%s3 + $0x8] sm:$0xff] %v348
  %357 = vst [vmem:[%s3 + $0x10] sm:$0xff] %v349
  %358 = vst [vmem:[%s3 + $0x18] sm:$0xff] %v350
  // Predicated region
  $region14: #{actor_forward.5} parent=0 // pred_check
    _
  $region15: #{actor_forward.5} parent=0 // pred_check_branch
    %360 = sbr.rel (0) target = $region17
  $region16: #{actor_forward.5} parent=0 // pred_region
    _
  $region17: #{actor_forward.5} parent=0 // pred_fallthru
    _
  // Predicated region
  $region18: #{actor_forward.5} parent=0 // pred_check
    _
  $region19: #{actor_forward.5} parent=0 // pred_check_branch
    %362 = sbr.rel (0) target = $region21
  $region20: #{actor_forward.5} parent=0 // pred_region
    _
  $region21: #{actor_forward.5} parent=0 // pred_fallthru
    _

// kernel: actor_forward.6
$region0: #{actor_forward.6}
  #allocation0 [shape = 'u32[]', space=smem, size = 0x4, offset = 0x4, fixed_abs, tag = 'smem constant byte address 0x4 - core index']
  #allocation1 [shape = 'u32[144,128]{1,0:T(1,128)}', space=vmem, size = 0x12000, scoped, tag = 'internal scratch']
  %s0 = inlined_call_operand.vmem [shape: bf16[64,288], index: 0, kind: input, shape index: {}]
  %s1 = inlined_call_operand.vmem [shape: bf16[288,128], index: 1, kind: input, shape index: {}]
  %s2 = inlined_call_operand.vmem [shape: f32[64,1], index: 2, kind: input, shape index: {}]
  %s3 = inlined_call_operand.vmem [shape: bf16[64,128], index: 3, kind: output, shape index: {}]
  %s4 = sld [smem:[#allocation0]]
  $region22: #{actor_forward.6} parent=0
    _
  %s6 = ssub.s32 1, %s4
  %s7 = scalar_select 0, %s6, %s4
  // Predicated region
  $region2: #{actor_forward.6} parent=0 // pred_check
    _
  $region3: #{actor_forward.6} parent=0 // pred_check_branch
    %9 = sbr.rel (0) target = $region5
  $region4: #{actor_forward.6} parent=0 // pred_region
    _
  $region5: #{actor_forward.6} parent=0 // pred_fallthru
    _
  // Predicated region
  $region6: #{actor_forward.6} parent=0 // pred_check
    _
  $region7: #{actor_forward.6} parent=0 // pred_check_branch
    %11 = sbr.rel (0) target = $region9
  $region8: #{actor_forward.6} parent=0 // pred_region
    _
  $region9: #{actor_forward.6} parent=0 // pred_fallthru
    _
  // Predicated region
  $region10: #{actor_forward.6} parent=0 // pred_check
    _
  $region11: #{actor_forward.6} parent=0 // pred_check_branch
    %13 = sbr.rel (0) target = $region13
  $region12: #{actor_forward.6} parent=0 // pred_region
    _
  $region13: #{actor_forward.6} parent=0 // pred_fallthru
    _
  %v15 = vld [vmem:[%s0] sm:$0xff]
  %v16 = vld [vmem:[%s0 + $0x8] sm:$0xf]
  %v17 = vld [vmem:[%s0 + $0xc] sm:$0xff]
  %v18 = vld [vmem:[%s0 + $0x14] sm:$0xf]
  %v19 = vld [vmem:[%s0 + $0x18] sm:$0xff]
  %v20 = vld [vmem:[%s0 + $0x20] sm:$0xf]
  %v21 = vld [vmem:[%s0 + $0x24] sm:$0xff]
  %v22 = vld [vmem:[%s0 + $0x2c] sm:$0xf]
  %v23 = vld [vmem:[%s0 + $0x30] sm:$0xff]
  %v24 = vld [vmem:[%s0 + $0x38] sm:$0xf]
  %v25 = vld [vmem:[%s0 + $0x3c] sm:$0xff]
  %v26 = vld [vmem:[%s0 + $0x44] sm:$0xf]
  %v27 = vld [vmem:[%s0 + $0x48] sm:$0xff]
  %v28 = vld [vmem:[%s0 + $0x50] sm:$0xf]
  %v29 = vld [vmem:[%s0 + $0x54] sm:$0xff]
  %v30 = vld [vmem:[%s0 + $0x5c] sm:$0xf]
  %v31 = vld [vmem:[%s1] sm:$0xf]
  %v32 = vld [vmem:[%s1 + $0x4] sm:$0xf]
  %v33 = vld [vmem:[%s1 + $0x8] sm:$0xf]
  %v34 = vld [vmem:[%s1 + $0xc] sm:$0xf]
  %v35 = vld [vmem:[%s1 + $0x10] sm:$0xf]
  %v36 = vld [vmem:[%s1 + $0x14] sm:$0xf]
  %v37 = vld [vmem:[%s1 + $0x18] sm:$0xf]
  %v38 = vld [vmem:[%s1 + $0x1c] sm:$0xf]
  %v39 = vld [vmem:[%s1 + $0x20] sm:$0xf]
  %v40 = vld [vmem:[%s1 + $0x24] sm:$0xf]
  %v41 = vld [vmem:[%s1 + $0x28] sm:$0xf]
  %v42 = vld [vmem:[%s1 + $0x2c] sm:$0xf]
  %v43 = vld [vmem:[%s1 + $0x30] sm:$0xf]
  %v44 = vld [vmem:[%s1 + $0x34] sm:$0xf]
  %v45 = vld [vmem:[%s1 + $0x38] sm:$0xf]
  %v46 = vld [vmem:[%s1 + $0x3c] sm:$0xf]
  %v47 = vld [vmem:[%s1 + $0x40] sm:$0xf]
  %v48 = vld [vmem:[%s1 + $0x44] sm:$0xf]
  %v49 = vld [vmem:[%s1 + $0x48] sm:$0xf]
  %v50 = vld [vmem:[%s1 + $0x4c] sm:$0xf]
  %v51 = vld [vmem:[%s1 + $0x50] sm:$0xf]
  %v52 = vld [vmem:[%s1 + $0x54] sm:$0xf]
  %v53 = vld [vmem:[%s1 + $0x58] sm:$0xf]
  %v54 = vld [vmem:[%s1 + $0x5c] sm:$0xf]
  %v55 = vld [vmem:[%s1 + $0x60] sm:$0xf]
  %v56 = vld [vmem:[%s1 + $0x64] sm:$0xf]
  %v57 = vld [vmem:[%s1 + $0x68] sm:$0xf]
  %v58 = vld [vmem:[%s1 + $0x6c] sm:$0xf]
  %v59 = vld [vmem:[%s1 + $0x70] sm:$0xf]
  %v60 = vld [vmem:[%s1 + $0x74] sm:$0xf]
  %v61 = vld [vmem:[%s1 + $0x78] sm:$0xf]
  %v62 = vld [vmem:[%s1 + $0x7c] sm:$0xf]
  %v63 = vld [vmem:[%s1 + $0x80] sm:$0xf]
  %v64 = vld [vmem:[%s1 + $0x84] sm:$0xf]
  %v65 = vld [vmem:[%s1 + $0x88] sm:$0xf]
  %v66 = vld [vmem:[%s1 + $0x8c] sm:$0xf]
  %v67 = vld [vmem:[%s2] sm:$0xff]
  %v68 = vld [vmem:[%s2 + $0x8] sm:$0xff]
  %v69 = vld [vmem:[%s2 + $0x10] sm:$0xff]
  %v70 = vld [vmem:[%s2 + $0x18] sm:$0xff]
  %v71 = vld [vmem:[%s2 + $0x20] sm:$0xff]
  %v72 = vld [vmem:[%s2 + $0x28] sm:$0xff]
  %v73 = vld [vmem:[%s2 + $0x30] sm:$0xff]
  %v74 = vld [vmem:[%s2 + $0x38] sm:$0xff]
  %76 = vset.pattern.permute.xlu0 0
  %77 = vperm.xlu0 %76, %v67
  %v78 = vpop.permute.xlu0 %77
  %81 = vset.pattern.permute.xlu0 0
  %82 = vperm.xlu0 %81, %v68
  %v83 = vpop.permute.xlu0 %82
  %86 = vset.pattern.permute.xlu0 0
  %87 = vperm.xlu0 %86, %v69
  %v88 = vpop.permute.xlu0 %87
  %91 = vset.pattern.permute.xlu0 0
  %92 = vperm.xlu0 %91, %v70
  %v93 = vpop.permute.xlu0 %92
  %96 = vset.pattern.permute.xlu0 0
  %97 = vperm.xlu0 %96, %v71
  %v98 = vpop.permute.xlu0 %97
  %101 = vset.pattern.permute.xlu0 0
  %102 = vperm.xlu0 %101, %v72
  %v103 = vpop.permute.xlu0 %102
  %106 = vset.pattern.permute.xlu0 0
  %107 = vperm.xlu0 %106, %v73
  %v108 = vpop.permute.xlu0 %107
  %111 = vset.pattern.permute.xlu0 0
  %112 = vperm.xlu0 %111, %v74
  %v113 = vpop.permute.xlu0 %112
  %v131 = vunpack.c.l.b16 %v15
  %v132 = vunpack.c.h.b16 %v15
  %v133 = vunpack.c.l.b16 %v16
  %v134 = vunpack.c.l.b16 %v17
  %v135 = vunpack.c.h.b16 %v17
  %v136 = vunpack.c.l.b16 %v18
  %v137 = vunpack.c.l.b16 %v19
  %v138 = vunpack.c.h.b16 %v19
  %v139 = vunpack.c.l.b16 %v20
  %v140 = vunpack.c.l.b16 %v21
  %v141 = vunpack.c.h.b16 %v21
  %v142 = vunpack.c.l.b16 %v22
  %v143 = vunpack.c.l.b16 %v23
  %v144 = vunpack.c.h.b16 %v23
  %v145 = vunpack.c.l.b16 %v24
  %v146 = vunpack.c.l.b16 %v25
  %v147 = vunpack.c.h.b16 %v25
  %v148 = vunpack.c.l.b16 %v26
  %v149 = vunpack.c.l.b16 %v27
  %v150 = vunpack.c.h.b16 %v27
  %v151 = vunpack.c.l.b16 %v28
  %v152 = vunpack.c.l.b16 %v29
  %v153 = vunpack.c.h.b16 %v29
  %v154 = vunpack.c.l.b16 %v30
  %v155 = vpack.c.b16 %v134, %v131
  %v156 = vpack.c.b16 %v135, %v132
  %v157 = vpack.c.b16 %v136, %v133
  %v158 = vpack.c.b16 %v140, %v137
  %v159 = vpack.c.b16 %v141, %v138
  %v160 = vpack.c.b16 %v142, %v139
  %v161 = vpack.c.b16 %v146, %v143
  %v162 = vpack.c.b16 %v147, %v144
  %v163 = vpack.c.b16 %v148, %v145
  %v164 = vpack.c.b16 %v152, %v149
  %v165 = vpack.c.b16 %v153, %v150
  %v166 = vpack.c.b16 %v154, %v151
  %v211 = vunpack.c.l.b16 %v31
  %v212 = vunpack.c.l.b16 %v32
  %v213 = vunpack.c.l.b16 %v33
  %v214 = vunpack.c.l.b16 %v34
  %v215 = vunpack.c.l.b16 %v35
  %v216 = vunpack.c.l.b16 %v36
  %v217 = vunpack.c.l.b16 %v37
  %v218 = vunpack.c.l.b16 %v38
  %v219 = vunpack.c.l.b16 %v39
  %v220 = vunpack.c.l.b16 %v40
  %v221 = vunpack.c.l.b16 %v41
  %v222 = vunpack.c.l.b16 %v42
  %v223 = vunpack.c.l.b16 %v43
  %v224 = vunpack.c.l.b16 %v44
  %v225 = vunpack.c.l.b16 %v45
  %v226 = vunpack.c.l.b16 %v46
  %v227 = vunpack.c.l.b16 %v47
  %v228 = vunpack.c.l.b16 %v48
  %v229 = vunpack.c.l.b16 %v49
  %v230 = vunpack.c.l.b16 %v50
  %v231 = vunpack.c.l.b16 %v51
  %v232 = vunpack.c.l.b16 %v52
  %v233 = vunpack.c.l.b16 %v53
  %v234 = vunpack.c.l.b16 %v54
  %v235 = vunpack.c.l.b16 %v55
  %v236 = vunpack.c.l.b16 %v56
  %v237 = vunpack.c.l.b16 %v57
  %v238 = vunpack.c.l.b16 %v58
  %v239 = vunpack.c.l.b16 %v59
  %v240 = vunpack.c.l.b16 %v60
  %v241 = vunpack.c.l.b16 %v61
  %v242 = vunpack.c.l.b16 %v62
  %v243 = vunpack.c.l.b16 %v63
  %v244 = vunpack.c.l.b16 %v64
  %v245 = vunpack.c.l.b16 %v65
  %v246 = vunpack.c.l.b16 %v66
  %v247 = vpack.c.b16 %v212, %v211
  %v248 = vpack.c.b16 %v214, %v213
  %v249 = vpack.c.b16 %v216, %v215
  %v250 = vpack.c.b16 %v218, %v217
  %v251 = vpack.c.b16 %v220, %v219
  %v252 = vpack.c.b16 %v222, %v221
  %v253 = vpack.c.b16 %v224, %v223
  %v254 = vpack.c.b16 %v226, %v225
  %v255 = vpack.c.b16 %v228, %v227
  %v256 = vpack.c.b16 %v230, %v229
  %v257 = vpack.c.b16 %v232, %v231
  %v258 = vpack.c.b16 %v234, %v233
  %v259 = vpack.c.b16 %v236, %v235
  %v260 = vpack.c.b16 %v238, %v237
  %v261 = vpack.c.b16 %v240, %v239
  %v262 = vpack.c.b16 %v242, %v241
  %v263 = vpack.c.b16 %v244, %v243
  %v264 = vpack.c.b16 %v246, %v245
  %vm283 = vcmask 261120
  %v285 = vsel %vm283, %v157, 0
  %v288 = vsel %vm283, %v160, 0
  %v291 = vsel %vm283, %v163, 0
  %v294 = vsel %vm283, %v166, 0
  %296 = vmatprep.subr.bf16.mxu0 0
  %297 = vmatpush1.bf16.msra.mxu0 %v247
  %298 = vmatprep.subr.bf16.mxu0 0
  %299 = vmatpush1.bf16.msra.mxu0 %v248
  %300 = vmatprep.subr.bf16.mxu0 0
  %301 = vmatpush1.bf16.msra.mxu0 %v249
  %302 = vmatprep.subr.bf16.mxu0 0
  %303 = vmatpush1.bf16.msra.mxu0 %v250
  %304 = vmatprep.subr.bf16.mxu0 0
  %305 = vmatpush1.bf16.msra.mxu0 %v251
  %306 = vmatprep.subr.bf16.mxu0 0
  %307 = vmatpush1.bf16.msra.mxu0 %v252
  %308 = vmatprep.subr.bf16.mxu0 0
  %309 = vmatpush1.bf16.msra.mxu0 %v253
  %310 = vmatprep.subr.bf16.mxu0 0
  %311 = vmatpush1.bf16.msra.mxu0 %v254
  %312 = vmatprep.subr.bf16.mxu0 0
  %313 = vmatpush1.bf16.msra.mxu0 %v255
  %314 = vmatprep.subr.bf16.mxu0 0
  %315 = vmatpush1.bf16.msra.mxu0 %v256
  %316 = vmatprep.subr.bf16.mxu0 0
  %317 = vmatpush1.bf16.msra.mxu0 %v257
  %318 = vmatprep.subr.bf16.mxu0 0
  %319 = vmatpush1.bf16.msra.mxu0 %v258
  %320 = vmatprep.subr.bf16.mxu0 0
  %321 = vmatpush1.bf16.msra.mxu0 %v259
  %322 = vmatprep.subr.bf16.mxu0 0
  %323 = vmatpush1.bf16.msra.mxu0 %v260
  %324 = vmatprep.subr.bf16.mxu0 0
  %325 = vmatpush1.bf16.msra.mxu0 %v261
  %326 = vmatprep.subr.bf16.mxu0 0
  %327 = vmatpush1.bf16.msra.mxu0 %v262
  %328 = vmatprep.mubr.bf16.mxu0 %v156
  %329 = vmatmul.mubr.bf16.gmra.mrb[0].mxu0 %v155
  %v330 = vpop.f32.mrb[0].mxu0
  %v331 = vadd.f32 %v78, %v330
  %v332 = vpop.f32.mrb[0].mxu0
  %v333 = vpop.f32.mrb[0].mxu0
  %v334 = vadd.f32 %v83, %v333
  %v335 = vpop.f32.mrb[0].mxu0
  %336 = vmatprep.mubr.bf16.mxu0 %v159
  %337 = vmatmul.mubr.bf16.gmra.mrb[0].mxu0 %v158
  %v338 = vpop.f32.mrb[0].mxu0
  %v339 = vadd.f32 %v88, %v338
  %v340 = vpop.f32.mrb[0].mxu0
  %v341 = vpop.f32.mrb[0].mxu0
  %v342 = vadd.f32 %v93, %v341
  %v343 = vpop.f32.mrb[0].mxu0
  %344 = vmatprep.mubr.bf16.mxu0 %v162
  %345 = vmatmul.mubr.bf16.gmra.mrb[0].mxu0 %v161
  %v346 = vpop.f32.mrb[0].mxu0
  %v347 = vadd.f32 %v98, %v346
  %v348 = vpop.f32.mrb[0].mxu0
  %v349 = vpop.f32.mrb[0].mxu0
  %v350 = vadd.f32 %v103, %v349
  %v351 = vpop.f32.mrb[0].mxu0
  %352 = vmatprep.mubr.bf16.mxu0 %v165
  %353 = vmatmul.mubr.bf16.gmra.mrb[0].mxu0 %v164
  %v354 = vpop.f32.mrb[0].mxu0
  %v355 = vadd.f32 %v108, %v354
  %v356 = vpop.f32.mrb[0].mxu0
  %v357 = vpop.f32.mrb[0].mxu0
  %v358 = vadd.f32 %v113, %v357
  %v359 = vpop.f32.mrb[0].mxu0
  %360 = vdwg.mxu0
  %361 = vmatprep.subr.bf16.mxu0 0
  %362 = vmatpush1.bf16.msra.mxu0 %v263
  %363 = vmatprep.subr.bf16.mxu0 0
  %364 = vmatpush1.bf16.msra.mxu0 %v264
  %365 = vmatprep.subr.bf16.mxu0 0
  %366 = vmatpush1.bf16.msra.mxu0 0
  %367 = vmatprep.subr.bf16.mxu0 0
  %368 = vmatpush1.bf16.msra.mxu0 0
  %369 = vmatprep.subr.bf16.mxu0 0
  %370 = vmatpush1.bf16.msra.mxu0 0
  %371 = vmatprep.subr.bf16.mxu0 0
  %372 = vmatpush1.bf16.msra.mxu0 0
  %373 = vmatprep.subr.bf16.mxu0 0
  %374 = vmatpush1.bf16.msra.mxu0 0
  %375 = vmatprep.subr.bf16.mxu0 0
  %376 = vmatpush1.bf16.msra.mxu0 0
  %377 = vmatprep.subr.bf16.mxu0 0
  %378 = vmatpush1.bf16.msra.mxu0 0
  %379 = vmatprep.subr.bf16.mxu0 0
  %380 = vmatpush1.bf16.msra.mxu0 0
  %381 = vmatprep.subr.bf16.mxu0 0
  %382 = vmatpush1.bf16.msra.mxu0 0
  %383 = vmatprep.subr.bf16.mxu0 0
  %384 = vmatpush1.bf16.msra.mxu0 0
  %385 = vmatprep.subr.bf16.mxu0 0
  %386 = vmatpush1.bf16.msra.mxu0 0
  %387 = vmatprep.subr.bf16.mxu0 0
  %388 = vmatpush1.bf16.msra.mxu0 0
  %389 = vmatprep.subr.bf16.mxu0 0
  %390 = vmatpush1.bf16.msra.mxu0 0
  %391 = vmatprep.subr.bf16.mxu0 0
  %392 = vmatpush1.bf16.msra.mxu0 0
  %393 = vmatprep.mubr.bf16.mxu0 0
  %394 = vmatmul.mubr.bf16.gmra.mrb[0].mxu0 %v285
  %v395 = vpop.f32.mrb[0].mxu0
  %v396 = vadd.f32 %v331, %v395
  %v397 = vpop.f32.mrb[0].mxu0
  %v398 = vpop.f32.mrb[0].mxu0
  %v399 = vadd.f32 %v334, %v398
  %v400 = vpop.f32.mrb[0].mxu0
  %401 = vmatprep.mubr.bf16.mxu0 0
  %402 = vmatmul.mubr.bf16.gmra.mrb[0].mxu0 %v288
  %v403 = vpop.f32.mrb[0].mxu0
  %v404 = vadd.f32 %v339, %v403
  %v405 = vpop.f32.mrb[0].mxu0
  %v406 = vpop.f32.mrb[0].mxu0
  %v407 = vadd.f32 %v342, %v406
  %v408 = vpop.f32.mrb[0].mxu0
  %409 = vmatprep.mubr.bf16.mxu0 0
  %410 = vmatmul.mubr.bf16.gmra.mrb[0].mxu0 %v291
  %v411 = vpop.f32.mrb[0].mxu0
  %v412 = vadd.f32 %v347, %v411
  %v413 = vpop.f32.mrb[0].mxu0
  %v414 = vpop.f32.mrb[0].mxu0
  %v415 = vadd.f32 %v350, %v414
  %v416 = vpop.f32.mrb[0].mxu0
  %417 = vmatprep.mubr.bf16.mxu0 0
  %418 = vmatmul.mubr.bf16.gmra.mrb[0].mxu0 %v294
  %v419 = vpop.f32.mrb[0].mxu0
  %v420 = vadd.f32 %v355, %v419
  %v421 = vpop.f32.mrb[0].mxu0
  %v422 = vpop.f32.mrb[0].mxu0
  %v423 = vadd.f32 %v358, %v422
  %v424 = vpop.f32.mrb[0].mxu0
  %425 = vdwg.mxu0
  %vm426 = vcmp.ge.f32.partialorder %v396, 0.0
  %vm427 = vcmp.ge.f32.partialorder %v399, 0.0
  %vm428 = vcmp.ge.f32.partialorder %v404, 0.0
  %vm429 = vcmp.ge.f32.partialorder %v407, 0.0
  %vm430 = vcmp.ge.f32.partialorder %v412, 0.0
  %vm431 = vcmp.ge.f32.partialorder %v415, 0.0
  %vm432 = vcmp.ge.f32.partialorder %v420, 0.0
  %vm433 = vcmp.ge.f32.partialorder %v423, 0.0
  %v434 = vmul.f32 %v396, 0.01
  %v435 = vmul.f32 %v399, 0.01
  %v436 = vmul.f32 %v404, 0.01
  %v437 = vmul.f32 %v407, 0.01
  %v438 = vmul.f32 %v412, 0.01
  %v439 = vmul.f32 %v415, 0.01
  %v440 = vmul.f32 %v420, 0.01
  %v441 = vmul.f32 %v423, 0.01
  %v442 = vsel %vm426, %v396, %v434
  %v443 = vsel %vm427, %v399, %v435
  %v444 = vsel %vm428, %v404, %v436
  %v445 = vsel %vm429, %v407, %v437
  %v446 = vsel %vm430, %v412, %v438
  %v447 = vsel %vm431, %v415, %v439
  %v448 = vsel %vm432, %v420, %v440
  %v449 = vsel %vm433, %v423, %v441
  %v450 = vpack.c.bf16 %v443, %v442
  %v451 = vpack.c.bf16 %v445, %v444
  %v452 = vpack.c.bf16 %v447, %v446
  %v453 = vpack.c.bf16 %v449, %v448
  %v458 = vunpack.c.l.b16 %v450
  %v459 = vunpack.c.h.b16 %v450
  %v460 = vunpack.c.l.b16 %v451
  %v461 = vunpack.c.h.b16 %v451
  %v462 = vunpack.c.l.b16 %v452
  %v463 = vunpack.c.h.b16 %v452
  %v464 = vunpack.c.l.b16 %v453
  %v465 = vunpack.c.h.b16 %v453
  %v466 = vpack.c.b16 %v458, %v458
  %v467 = vpack.c.b16 %v459, %v459
  %v468 = vpack.c.b16 %v460, %v460
  %v469 = vpack.c.b16 %v461, %v461
  %v470 = vpack.c.b16 %v462, %v462
  %v471 = vpack.c.b16 %v463, %v463
  %v472 = vpack.c.b16 %v464, %v464
  %v473 = vpack.c.b16 %v465, %v465
  %482 = vst [vmem:[%s3] sm:$0xf] %v466
  %483 = vst [vmem:[%s3 + $0x4] sm:$0xf] %v467
  %484 = vst [vmem:[%s3 + $0x8] sm:$0xf] %v468
  %485 = vst [vmem:[%s3 + $0xc] sm:$0xf] %v469
  %486 = vst [vmem:[%s3 + $0x10] sm:$0xf] %v470
  %487 = vst [vmem:[%s3 + $0x14] sm:$0xf] %v471
  %488 = vst [vmem:[%s3 + $0x18] sm:$0xf] %v472
  %489 = vst [vmem:[%s3 + $0x1c] sm:$0xf] %v473
  // Predicated region
  $region14: #{actor_forward.6} parent=0 // pred_check
    _
  $region15: #{actor_forward.6} parent=0 // pred_check_branch
    %491 = sbr.rel (0) target = $region17
  $region16: #{actor_forward.6} parent=0 // pred_region
    _
  $region17: #{actor_forward.6} parent=0 // pred_fallthru
    _
  // Predicated region
  $region18: #{actor_forward.6} parent=0 // pred_check
    _
  $region19: #{actor_forward.6} parent=0 // pred_check_branch
    %493 = sbr.rel (0) target = $region21
  $region20: #{actor_forward.6} parent=0 // pred_region
    _
  $region21: #{actor_forward.6} parent=0 // pred_fallthru
    _

// kernel: actor_forward.7
$region0: #{actor_forward.7}
  #allocation0 [shape = 'u32[]', space=smem, size = 0x4, offset = 0x4, fixed_abs, tag = 'smem constant byte address 0x4 - core index']
  #allocation1 [shape = 'u32[144,128]{1,0:T(1,128)}', space=vmem, size = 0x12000, scoped, tag = 'internal scratch']
  %s0 = inlined_call_operand.vmem [shape: bf16[8,3136], index: 0, kind: input, shape index: {}]
  %s1 = inlined_call_operand.vmem [shape: bf16[3136,256], index: 1, kind: input, shape index: {}]
  %s2 = inlined_call_operand.vmem [shape: f32[1,256], index: 2, kind: input, shape index: {}]
  %s3 = inlined_call_operand.vmem [shape: f32[8,256], index: 3, kind: output, shape index: {}]
  %s4 = sld [smem:[#allocation0]]
  $region22: #{actor_forward.7} parent=0
    _
  %s6 = ssub.s32 1, %s4
  %s7 = scalar_select 0, %s6, %s4
  // Predicated region
  $region2: #{actor_forward.7} parent=0 // pred_check
    _
  $region3: #{actor_forward.7} parent=0 // pred_check_branch
    %9 = sbr.rel (0) target = $region5
  $region4: #{actor_forward.7} parent=0 // pred_region
    _
  $region5: #{actor_forward.7} parent=0 // pred_fallthru
    _
  // Predicated region
  $region6: #{actor_forward.7} parent=0 // pred_check
    _
  $region7: #{actor_forward.7} parent=0 // pred_check_branch
    %11 = sbr.rel (0) target = $region9
  $region8: #{actor_forward.7} parent=0 // pred_region
    _
  $region9: #{actor_forward.7} parent=0 // pred_fallthru
    _
  // Predicated region
  $region10: #{actor_forward.7} parent=0 // pred_check
    _
  $region11: #{actor_forward.7} parent=0 // pred_check_branch
    %13 = sbr.rel (0) target = $region13
  $region12: #{actor_forward.7} parent=0 // pred_region
    _
  $region13: #{actor_forward.7} parent=0 // pred_fallthru
    _
  %v15 = vld [vmem:[%s0] sm:$0xff]
  %v16 = vld [vmem:[%s0 + $0x8] sm:$0xff]
  %v17 = vld [vmem:[%s0 + $0x10] sm:$0xff]
  %v18 = vld [vmem:[%s0 + $0x18] sm:$0xff]
  %v19 = vld [vmem:[%s0 + $0x20] sm:$0xff]
  %v20 = vld [vmem:[%s0 + $0x28] sm:$0xff]
  %v21 = vld [vmem:[%s0 + $0x30] sm:$0xff]
  %v22 = vld [vmem:[%s0 + $0x38] sm:$0xff]
  %v23 = vld [vmem:[%s0 + $0x40] sm:$0xff]
  %v24 = vld [vmem:[%s0 + $0x48] sm:$0xff]
  %v25 = vld [vmem:[%s0 + $0x50] sm:$0xff]
  %v26 = vld [vmem:[%s0 + $0x58] sm:$0xff]
  %v27 = vld [vmem:[%s0 + $0x60] sm:$0xf]
  %v28 = vld [vmem:[%s1] sm:$0xff]
  %v29 = vld [vmem:[%s1 + $0x8] sm:$0xff]
  %v30 = vld [vmem:[%s1 + $0x10] sm:$0xff]
  %v31 = vld [vmem:[%s1 + $0x18] sm:$0xff]
  %v32 = vld [vmem:[%s1 + $0x20] sm:$0xff]
  %v33 = vld [vmem:[%s1 + $0x28] sm:$0xff]
  %v34 = vld [vmem:[%s1 + $0x30] sm:$0xff]
  %v35 = vld [vmem:[%s1 + $0x38] sm:$0xff]
  %v36 = vld [vmem:[%s1 + $0x40] sm:$0xff]
  %v37 = vld [vmem:[%s1 + $0x48] sm:$0xff]
  %v38 = vld [vmem:[%s1 + $0x50] sm:$0xff]
  %v39 = vld [vmem:[%s1 + $0x58] sm:$0xff]
  %v40 = vld [vmem:[%s1 + $0x60] sm:$0xff]
  %v41 = vld [vmem:[%s1 + $0x68] sm:$0xff]
  %v42 = vld [vmem:[%s1 + $0x70] sm:$0xff]
  %v43 = vld [vmem:[%s1 + $0x78] sm:$0xff]
  %v44 = vld [vmem:[%s1 + $0x80] sm:$0xff]
  %v45 = vld [vmem:[%s1 + $0x88] sm:$0xff]
  %v46 = vld [vmem:[%s1 + $0x90] sm:$0xff]
  %v47 = vld [vmem:[%s1 + $0x98] sm:$0xff]
  %v48 = vld [vmem:[%s1 + $0xa0] sm:$0xff]
  %v49 = vld [vmem:[%s1 + $0xa8] sm:$0xff]
  %v50 = vld [vmem:[%s1 + $0xb0] sm:$0xff]
  %v51 = vld [vmem:[%s1 + $0xb8] sm:$0xff]
  %v52 = vld [vmem:[%s1 + $0xc0] sm:$0xff]
  %v53 = vld [vmem:[%s1 + $0xc8] sm:$0xff]
  %v54 = vld [vmem:[%s1 + $0xd0] sm:$0xff]
  %v55 = vld [vmem:[%s1 + $0xd8] sm:$0xff]
  %v56 = vld [vmem:[%s1 + $0xe0] sm:$0xff]
  %v57 = vld [vmem:[%s1 + $0xe8] sm:$0xff]
  %v58 = vld [vmem:[%s1 + $0xf0] sm:$0xff]
  %v59 = vld [vmem:[%s1 + $0xf8] sm:$0xff]
  %v60 = vld [vmem:[%s1 + $0x100] sm:$0xff]
  %v61 = vld [vmem:[%s1 + $0x108] sm:$0xff]
  %v62 = vld [vmem:[%s1 + $0x110] sm:$0xff]
  %v63 = vld [vmem:[%s1 + $0x118] sm:$0xff]
  %v64 = vld [vmem:[%s1 + $0x120] sm:$0xff]
  %v65 = vld [vmem:[%s1 + $0x128] sm:$0xff]
  %v66 = vld [vmem:[%s1 + $0x130] sm:$0xff]
  %v67 = vld [vmem:[%s1 + $0x138] sm:$0xff]
  %v68 = vld [vmem:[%s1 + $0x140] sm:$0xff]
  %v69 = vld [vmem:[%s1 + $0x148] sm:$0xff]
  %v70 = vld [vmem:[%s1 + $0x150] sm:$0xff]
  %v71 = vld [vmem:[%s1 + $0x158] sm:$0xff]
  %v72 = vld [vmem:[%s1 + $0x160] sm:$0xff]
  %v73 = vld [vmem:[%s1 + $0x168] sm:$0xff]
  %v74 = vld [vmem:[%s1 + $0x170] sm:$0xff]
  %v75 = vld [vmem:[%s1 + $0x178] sm:$0xff]
  %v76 = vld [vmem:[%s1 + $0x180] sm:$0xff]
  %v77 = vld [vmem:[%s1 + $0x188] sm:$0xff]
  %v78 = vld [vmem:[%s1 + $0x190] sm:$0xff]
  %v79 = vld [vmem:[%s1 + $0x198] sm:$0xff]
  %v80 = vld [vmem:[%s1 + $0x1a0] sm:$0xff]
  %v81 = vld [vmem:[%s1 + $0x1a8] sm:$0xff]
  %v82 = vld [vmem:[%s1 + $0x1b0] sm:$0xff]
  %v83 = vld [vmem:[%s1 + $0x1b8] sm:$0xff]
  %v84 = vld [vmem:[%s1 + $0x1c0] sm:$0xff]
  %v85 = vld [vmem:[%s1 + $0x1c8] sm:$0xff]
  %v86 = vld [vmem:[%s1 + $0x1d0] sm:$0xff]
  %v87 = vld [vmem:[%s1 + $0x1d8] sm:$0xff]
  %v88 = vld [vmem:[%s1 + $0x1e0] sm:$0xff]
  %v89 = vld [vmem:[%s1 + $0x1e8] sm:$0xff]
  %v90 = vld [vmem:[%s1 + $0x1f0] sm:$0xff]
  %v91 = vld [vmem:[%s1 + $0x1f8] sm:$0xff]
  %v92 = vld [vmem:[%s1 + $0x200] sm:$0xff]
  %v93 = vld [vmem:[%s1 + $0x208] sm:$0xff]
  %v94 = vld [vmem:[%s1 + $0x210] sm:$0xff]
  %v95 = vld [vmem:[%s1 + $0x218] sm:$0xff]
  %v96 = vld [vmem:[%s1 + $0x220] sm:$0xff]
  %v97 = vld [vmem:[%s1 + $0x228] sm:$0xff]
  %v98 = vld [vmem:[%s1 + $0x230] sm:$0xff]
  %v99 = vld [vmem:[%s1 + $0x238] sm:$0xff]
  %v100 = vld [vmem:[%s1 + $0x240] sm:$0xff]
  %v101 = vld [vmem:[%s1 + $0x248] sm:$0xff]
  %v102 = vld [vmem:[%s1 + $0x250] sm:$0xff]
  %v103 = vld [vmem:[%s1 + $0x258] sm:$0xff]
  %v104 = vld [vmem:[%s1 + $0x260] sm:$0xff]
  %v105 = vld [vmem:[%s1 + $0x268] sm:$0xff]
  %v106 = vld [vmem:[%s1 + $0x270] sm:$0xff]
  %v107 = vld [vmem:[%s1 + $0x278] sm:$0xff]
  %v108 = vld [vmem:[%s1 + $0x280] sm:$0xff]
  %v109 = vld [vmem:[%s1 + $0x288] sm:$0xff]
  %v110 = vld [vmem:[%s1 + $0x290] sm:$0xff]
  %v111 = vld [vmem:[%s1 + $0x298] sm:$0xff]
  %v112 = vld [vmem:[%s1 + $0x2a0] sm:$0xff]
  %v113 = vld [vmem:[%s1 + $0x2a8] sm:$0xff]
  %v114 = vld [vmem:[%s1 + $0x2b0] sm:$0xff]
  %v115 = vld [vmem:[%s1 + $0x2b8] sm:$0xff]
  %v116 = vld [vmem:[%s1 + $0x2c0] sm:$0xff]
  %v117 = vld [vmem:[%s1 + $0x2c8] sm:$0xff]
  %v118 = vld [vmem:[%s1 + $0x2d0] sm:$0xff]
  %v119 = vld [vmem:[%s1 + $0x2d8] sm:$0xff]
  %v120 = vld [vmem:[%s1 + $0x2e0] sm:$0xff]
  %v121 = vld [vmem:[%s1 + $0x2e8] sm:$0xff]
  %v122 = vld [vmem:[%s1 + $0x2f0] sm:$0xff]
  %v123 = vld [vmem:[%s1 + $0x2f8] sm:$0xff]
  %v124 = vld [vmem:[%s1 + $0x300] sm:$0xff]
  %v125 = vld [vmem:[%s1 + $0x308] sm:$0xff]
  %v126 = vld [vmem:[%s1 + $0x310] sm:$0xff]
  %v127 = vld [vmem:[%s1 + $0x318] sm:$0xff]
  %v128 = vld [vmem:[%s1 + $0x320] sm:$0xff]
  %v129 = vld [vmem:[%s1 + $0x328] sm:$0xff]
  %v130 = vld [vmem:[%s1 + $0x330] sm:$0xff]
  %v131 = vld [vmem:[%s1 + $0x338] sm:$0xff]
  %v132 = vld [vmem:[%s1 + $0x340] sm:$0xff]
  %v133 = vld [vmem:[%s1 + $0x348] sm:$0xff]
  %v134 = vld [vmem:[%s1 + $0x350] sm:$0xff]
  %v135 = vld [vmem:[%s1 + $0x358] sm:$0xff]
  %v136 = vld [vmem:[%s1 + $0x360] sm:$0xff]
  %v137 = vld [vmem:[%s1 + $0x368] sm:$0xff]
  %v138 = vld [vmem:[%s1 + $0x370] sm:$0xff]
  %v139 = vld [vmem:[%s1 + $0x378] sm:$0xff]
  %v140 = vld [vmem:[%s1 + $0x380] sm:$0xff]
  %v141 = vld [vmem:[%s1 + $0x388] sm:$0xff]
  %v142 = vld [vmem:[%s1 + $0x390] sm:$0xff]
  %v143 = vld [vmem:[%s1 + $0x398] sm:$0xff]
  %v144 = vld [vmem:[%s1 + $0x3a0] sm:$0xff]
  %v145 = vld [vmem:[%s1 + $0x3a8] sm:$0xff]
  %v146 = vld [vmem:[%s1 + $0x3b0] sm:$0xff]
  %v147 = vld [vmem:[%s1 + $0x3b8] sm:$0xff]
  %v148 = vld [vmem:[%s1 + $0x3c0] sm:$0xff]
  %v149 = vld [vmem:[%s1 + $0x3c8] sm:$0xff]
  %v150 = vld [vmem:[%s1 + $0x3d0] sm:$0xff]
  %v151 = vld [vmem:[%s1 + $0x3d8] sm:$0xff]
  %v152 = vld [vmem:[%s1 + $0x3e0] sm:$0xff]
  %v153 = vld [vmem:[%s1 + $0x3e8] sm:$0xff]
  %v154 = vld [vmem:[%s1 + $0x3f0] sm:$0xff]
  %v155 = vld [vmem:[%s1 + $0x3f8] sm:$0xff]
  %v156 = vld [vmem:[%s1 + $0x400] sm:$0xff]
  %v157 = vld [vmem:[%s1 + $0x408] sm:$0xff]
  %v158 = vld [vmem:[%s1 + $0x410] sm:$0xff]
  %v159 = vld [vmem:[%s1 + $0x418] sm:$0xff]
  %v160 = vld [vmem:[%s1 + $0x420] sm:$0xff]
  %v161 = vld [vmem:[%s1 + $0x428] sm:$0xff]
  %v162 = vld [vmem:[%s1 + $0x430] sm:$0xff]
  %v163 = vld [vmem:[%s1 + $0x438] sm:$0xff]
  %v164 = vld [vmem:[%s1 + $0x440] sm:$0xff]
  %v165 = vld [vmem:[%s1 + $0x448] sm:$0xff]
  %v166 = vld [vmem:[%s1 + $0x450] sm:$0xff]
  %v167 = vld [vmem:[%s1 + $0x458] sm:$0xff]
  %v168 = vld [vmem:[%s1 + $0x460] sm:$0xff]
  %v169 = vld [vmem:[%s1 + $0x468] sm:$0xff]
  %v170 = vld [vmem:[%s1 + $0x470] sm:$0xff]
  %v171 = vld [vmem:[%s1 + $0x478] sm:$0xff]
  %v172 = vld [vmem:[%s1 + $0x480] sm:$0xff]
  %v173 = vld [vmem:[%s1 + $0x488] sm:$0xff]
  %v174 = vld [vmem:[%s1 + $0x490] sm:$0xff]
  %v175 = vld [vmem:[%s1 + $0x498] sm:$0xff]
  %v176 = vld [vmem:[%s1 + $0x4a0] sm:$0xff]
  %v177 = vld [vmem:[%s1 + $0x4a8] sm:$0xff]
  %v178 = vld [vmem:[%s1 + $0x4b0] sm:$0xff]
  %v179 = vld [vmem:[%s1 + $0x4b8] sm:$0xff]
  %v180 = vld [vmem:[%s1 + $0x4c0] sm:$0xff]
  %v181 = vld [vmem:[%s1 + $0x4c8] sm:$0xff]
  %v182 = vld [vmem:[%s1 + $0x4d0] sm:$0xff]
  %v183 = vld [vmem:[%s1 + $0x4d8] sm:$0xff]
  %v184 = vld [vmem:[%s1 + $0x4e0] sm:$0xff]
  %v185 = vld [vmem:[%s1 + $0x4e8] sm:$0xff]
  %v186 = vld [vmem:[%s1 + $0x4f0] sm:$0xff]
  %v187 = vld [vmem:[%s1 + $0x4f8] sm:$0xff]
  %v188 = vld [vmem:[%s1 + $0x500] sm:$0xff]
  %v189 = vld [vmem:[%s1 + $0x508] sm:$0xff]
  %v190 = vld [vmem:[%s1 + $0x510] sm:$0xff]
  %v191 = vld [vmem:[%s1 + $0x518] sm:$0xff]
  %v192 = vld [vmem:[%s1 + $0x520] sm:$0xff]
  %v193 = vld [vmem:[%s1 + $0x528] sm:$0xff]
  %v194 = vld [vmem:[%s1 + $0x530] sm:$0xff]
  %v195 = vld [vmem:[%s1 + $0x538] sm:$0xff]
  %v196 = vld [vmem:[%s1 + $0x540] sm:$0xff]
  %v197 = vld [vmem:[%s1 + $0x548] sm:$0xff]
  %v198 = vld [vmem:[%s1 + $0x550] sm:$0xff]
  %v199 = vld [vmem:[%s1 + $0x558] sm:$0xff]
  %v200 = vld [vmem:[%s1 + $0x560] sm:$0xff]
  %v201 = vld [vmem:[%s1 + $0x568] sm:$0xff]
  %v202 = vld [vmem:[%s1 + $0x570] sm:$0xff]
  %v203 = vld [vmem:[%s1 + $0x578] sm:$0xff]
  %v204 = vld [vmem:[%s1 + $0x580] sm:$0xff]
  %v205 = vld [vmem:[%s1 + $0x588] sm:$0xff]
  %v206 = vld [vmem:[%s1 + $0x590] sm:$0xff]
  %v207 = vld [vmem:[%s1 + $0x598] sm:$0xff]
  %v208 = vld [vmem:[%s1 + $0x5a0] sm:$0xff]
  %v209 = vld [vmem:[%s1 + $0x5a8] sm:$0xff]
  %v210 = vld [vmem:[%s1 + $0x5b0] sm:$0xff]
  %v211 = vld [vmem:[%s1 + $0x5b8] sm:$0xff]
  %v212 = vld [vmem:[%s1 + $0x5c0] sm:$0xff]
  %v213 = vld [vmem:[%s1 + $0x5c8] sm:$0xff]
  %v214 = vld [vmem:[%s1 + $0x5d0] sm:$0xff]
  %v215 = vld [vmem:[%s1 + $0x5d8] sm:$0xff]
  %v216 = vld [vmem:[%s1 + $0x5e0] sm:$0xff]
  %v217 = vld [vmem:[%s1 + $0x5e8] sm:$0xff]
  %v218 = vld [vmem:[%s1 + $0x5f0] sm:$0xff]
  %v219 = vld [vmem:[%s1 + $0x5f8] sm:$0xff]
  %v220 = vld [vmem:[%s1 + $0x600] sm:$0xff]
  %v221 = vld [vmem:[%s1 + $0x608] sm:$0xff]
  %v222 = vld [vmem:[%s1 + $0x610] sm:$0xff]
  %v223 = vld [vmem:[%s1 + $0x618] sm:$0xff]
  %v224 = vld [vmem:[%s1 + $0x620] sm:$0xff]
  %v225 = vld [vmem:[%s1 + $0x628] sm:$0xff]
  %v226 = vld [vmem:[%s1 + $0x630] sm:$0xff]
  %v227 = vld [vmem:[%s1 + $0x638] sm:$0xff]
  %v228 = vld [vmem:[%s1 + $0x640] sm:$0xff]
  %v229 = vld [vmem:[%s1 + $0x648] sm:$0xff]
  %v230 = vld [vmem:[%s1 + $0x650] sm:$0xff]
  %v231 = vld [vmem:[%s1 + $0x658] sm:$0xff]
  %v232 = vld [vmem:[%s1 + $0x660] sm:$0xff]
  %v233 = vld [vmem:[%s1 + $0x668] sm:$0xff]
  %v234 = vld [vmem:[%s1 + $0x670] sm:$0xff]
  %v235 = vld [vmem:[%s1 + $0x678] sm:$0xff]
  %v236 = vld [vmem:[%s1 + $0x680] sm:$0xff]
  %v237 = vld [vmem:[%s1 + $0x688] sm:$0xff]
  %v238 = vld [vmem:[%s1 + $0x690] sm:$0xff]
  %v239 = vld [vmem:[%s1 + $0x698] sm:$0xff]
  %v240 = vld [vmem:[%s1 + $0x6a0] sm:$0xff]
  %v241 = vld [vmem:[%s1 + $0x6a8] sm:$0xff]
  %v242 = vld [vmem:[%s1 + $0x6b0] sm:$0xff]
  %v243 = vld [vmem:[%s1 + $0x6b8] sm:$0xff]
  %v244 = vld [vmem:[%s1 + $0x6c0] sm:$0xff]
  %v245 = vld [vmem:[%s1 + $0x6c8] sm:$0xff]
  %v246 = vld [vmem:[%s1 + $0x6d0] sm:$0xff]
  %v247 = vld [vmem:[%s1 + $0x6d8] sm:$0xff]
  %v248 = vld [vmem:[%s1 + $0x6e0] sm:$0xff]
  %v249 = vld [vmem:[%s1 + $0x6e8] sm:$0xff]
  %v250 = vld [vmem:[%s1 + $0x6f0] sm:$0xff]
  %v251 = vld [vmem:[%s1 + $0x6f8] sm:$0xff]
  %v252 = vld [vmem:[%s1 + $0x700] sm:$0xff]
  %v253 = vld [vmem:[%s1 + $0x708] sm:$0xff]
  %v254 = vld [vmem:[%s1 + $0x710] sm:$0xff]
  %v255 = vld [vmem:[%s1 + $0x718] sm:$0xff]
  %v256 = vld [vmem:[%s1 + $0x720] sm:$0xff]
  %v257 = vld [vmem:[%s1 + $0x728] sm:$0xff]
  %v258 = vld [vmem:[%s1 + $0x730] sm:$0xff]
  %v259 = vld [vmem:[%s1 + $0x738] sm:$0xff]
  %v260 = vld [vmem:[%s1 + $0x740] sm:$0xff]
  %v261 = vld [vmem:[%s1 + $0x748] sm:$0xff]
  %v262 = vld [vmem:[%s1 + $0x750] sm:$0xff]
  %v263 = vld [vmem:[%s1 + $0x758] sm:$0xff]
  %v264 = vld [vmem:[%s1 + $0x760] sm:$0xff]
  %v265 = vld [vmem:[%s1 + $0x768] sm:$0xff]
  %v266 = vld [vmem:[%s1 + $0x770] sm:$0xff]
  %v267 = vld [vmem:[%s1 + $0x778] sm:$0xff]
  %v268 = vld [vmem:[%s1 + $0x780] sm:$0xff]
  %v269 = vld [vmem:[%s1 + $0x788] sm:$0xff]
  %v270 = vld [vmem:[%s1 + $0x790] sm:$0xff]
  %v271 = vld [vmem:[%s1 + $0x798] sm:$0xff]
  %v272 = vld [vmem:[%s1 + $0x7a0] sm:$0xff]
  %v273 = vld [vmem:[%s1 + $0x7a8] sm:$0xff]
  %v274 = vld [vmem:[%s1 + $0x7b0] sm:$0xff]
  %v275 = vld [vmem:[%s1 + $0x7b8] sm:$0xff]
  %v276 = vld [vmem:[%s1 + $0x7c0] sm:$0xff]
  %v277 = vld [vmem:[%s1 + $0x7c8] sm:$0xff]
  %v278 = vld [vmem:[%s1 + $0x7d0] sm:$0xff]
  %v279 = vld [vmem:[%s1 + $0x7d8] sm:$0xff]
  %v280 = vld [vmem:[%s1 + $0x7e0] sm:$0xff]
  %v281 = vld [vmem:[%s1 + $0x7e8] sm:$0xff]
  %v282 = vld [vmem:[%s1 + $0x7f0] sm:$0xff]
  %v283 = vld [vmem:[%s1 + $0x7f8] sm:$0xff]
  %v284 = vld [vmem:[%s1 + $0x800] sm:$0xff]
  %v285 = vld [vmem:[%s1 + $0x808] sm:$0xff]
  %v286 = vld [vmem:[%s1 + $0x810] sm:$0xff]
  %v287 = vld [vmem:[%s1 + $0x818] sm:$0xff]
  %v288 = vld [vmem:[%s1 + $0x820] sm:$0xff]
  %v289 = vld [vmem:[%s1 + $0x828] sm:$0xff]
  %v290 = vld [vmem:[%s1 + $0x830] sm:$0xff]
  %v291 = vld [vmem:[%s1 + $0x838] sm:$0xff]
  %v292 = vld [vmem:[%s1 + $0x840] sm:$0xff]
  %v293 = vld [vmem:[%s1 + $0x848] sm:$0xff]
  %v294 = vld [vmem:[%s1 + $0x850] sm:$0xff]
  %v295 = vld [vmem:[%s1 + $0x858] sm:$0xff]
  %v296 = vld [vmem:[%s1 + $0x860] sm:$0xff]
  %v297 = vld [vmem:[%s1 + $0x868] sm:$0xff]
  %v298 = vld [vmem:[%s1 + $0x870] sm:$0xff]
  %v299 = vld [vmem:[%s1 + $0x878] sm:$0xff]
  %v300 = vld [vmem:[%s1 + $0x880] sm:$0xff]
  %v301 = vld [vmem:[%s1 + $0x888] sm:$0xff]
  %v302 = vld [vmem:[%s1 + $0x890] sm:$0xff]
  %v303 = vld [vmem:[%s1 + $0x898] sm:$0xff]
  %v304 = vld [vmem:[%s1 + $0x8a0] sm:$0xff]
  %v305 = vld [vmem:[%s1 + $0x8a8] sm:$0xff]
  %v306 = vld [vmem:[%s1 + $0x8b0] sm:$0xff]
  %v307 = vld [vmem:[%s1 + $0x8b8] sm:$0xff]
  %v308 = vld [vmem:[%s1 + $0x8c0] sm:$0xff]
  %v309 = vld [vmem:[%s1 + $0x8c8] sm:$0xff]
  %v310 = vld [vmem:[%s1 + $0x8d0] sm:$0xff]
  %v311 = vld [vmem:[%s1 + $0x8d8] sm:$0xff]
  %v312 = vld [vmem:[%s1 + $0x8e0] sm:$0xff]
  %v313 = vld [vmem:[%s1 + $0x8e8] sm:$0xff]
  %v314 = vld [vmem:[%s1 + $0x8f0] sm:$0xff]
  %v315 = vld [vmem:[%s1 + $0x8f8] sm:$0xff]
  %v316 = vld [vmem:[%s1 + $0x900] sm:$0xff]
  %v317 = vld [vmem:[%s1 + $0x908] sm:$0xff]
  %v318 = vld [vmem:[%s1 + $0x910] sm:$0xff]
  %v319 = vld [vmem:[%s1 + $0x918] sm:$0xff]
  %v320 = vld [vmem:[%s1 + $0x920] sm:$0xff]
  %v321 = vld [vmem:[%s1 + $0x928] sm:$0xff]
  %v322 = vld [vmem:[%s1 + $0x930] sm:$0xff]
  %v323 = vld [vmem:[%s1 + $0x938] sm:$0xff]
  %v324 = vld [vmem:[%s1 + $0x940] sm:$0xff]
  %v325 = vld [vmem:[%s1 + $0x948] sm:$0xff]
  %v326 = vld [vmem:[%s1 + $0x950] sm:$0xff]
  %v327 = vld [vmem:[%s1 + $0x958] sm:$0xff]
  %v328 = vld [vmem:[%s1 + $0x960] sm:$0xff]
  %v329 = vld [vmem:[%s1 + $0x968] sm:$0xff]
  %v330 = vld [vmem:[%s1 + $0x970] sm:$0xff]
  %v331 = vld [vmem:[%s1 + $0x978] sm:$0xff]
  %v332 = vld [vmem:[%s1 + $0x980] sm:$0xff]
  %v333 = vld [vmem:[%s1 + $0x988] sm:$0xff]
  %v334 = vld [vmem:[%s1 + $0x990] sm:$0xff]
  %v335 = vld [vmem:[%s1 + $0x998] sm:$0xff]
  %v336 = vld [vmem:[%s1 + $0x9a0] sm:$0xff]
  %v337 = vld [vmem:[%s1 + $0x9a8] sm:$0xff]
  %v338 = vld [vmem:[%s1 + $0x9b0] sm:$0xff]
  %v339 = vld [vmem:[%s1 + $0x9b8] sm:$0xff]
  %v340 = vld [vmem:[%s1 + $0x9c0] sm:$0xff]
  %v341 = vld [vmem:[%s1 + $0x9c8] sm:$0xff]
  %v342 = vld [vmem:[%s1 + $0x9d0] sm:$0xff]
  %v343 = vld [vmem:[%s1 + $0x9d8] sm:$0xff]
  %v344 = vld [vmem:[%s1 + $0x9e0] sm:$0xff]
  %v345 = vld [vmem:[%s1 + $0x9e8] sm:$0xff]
  %v346 = vld [vmem:[%s1 + $0x9f0] sm:$0xff]
  %v347 = vld [vmem:[%s1 + $0x9f8] sm:$0xff]
  %v348 = vld [vmem:[%s1 + $0xa00] sm:$0xff]
  %v349 = vld [vmem:[%s1 + $0xa08] sm:$0xff]
  %v350 = vld [vmem:[%s1 + $0xa10] sm:$0xff]
  %v351 = vld [vmem:[%s1 + $0xa18] sm:$0xff]
  %v352 = vld [vmem:[%s1 + $0xa20] sm:$0xff]
  %v353 = vld [vmem:[%s1 + $0xa28] sm:$0xff]
  %v354 = vld [vmem:[%s1 + $0xa30] sm:$0xff]
  %v355 = vld [vmem:[%s1 + $0xa38] sm:$0xff]
  %v356 = vld [vmem:[%s1 + $0xa40] sm:$0xff]
  %v357 = vld [vmem:[%s1 + $0xa48] sm:$0xff]
  %v358 = vld [vmem:[%s1 + $0xa50] sm:$0xff]
  %v359 = vld [vmem:[%s1 + $0xa58] sm:$0xff]
  %v360 = vld [vmem:[%s1 + $0xa60] sm:$0xff]
  %v361 = vld [vmem:[%s1 + $0xa68] sm:$0xff]
  %v362 = vld [vmem:[%s1 + $0xa70] sm:$0xff]
  %v363 = vld [vmem:[%s1 + $0xa78] sm:$0xff]
  %v364 = vld [vmem:[%s1 + $0xa80] sm:$0xff]
  %v365 = vld [vmem:[%s1 + $0xa88] sm:$0xff]
  %v366 = vld [vmem:[%s1 + $0xa90] sm:$0xff]
  %v367 = vld [vmem:[%s1 + $0xa98] sm:$0xff]
  %v368 = vld [vmem:[%s1 + $0xaa0] sm:$0xff]
  %v369 = vld [vmem:[%s1 + $0xaa8] sm:$0xff]
  %v370 = vld [vmem:[%s1 + $0xab0] sm:$0xff]
  %v371 = vld [vmem:[%s1 + $0xab8] sm:$0xff]
  %v372 = vld [vmem:[%s1 + $0xac0] sm:$0xff]
  %v373 = vld [vmem:[%s1 + $0xac8] sm:$0xff]
  %v374 = vld [vmem:[%s1 + $0xad0] sm:$0xff]
  %v375 = vld [vmem:[%s1 + $0xad8] sm:$0xff]
  %v376 = vld [vmem:[%s1 + $0xae0] sm:$0xff]
  %v377 = vld [vmem:[%s1 + $0xae8] sm:$0xff]
  %v378 = vld [vmem:[%s1 + $0xaf0] sm:$0xff]
  %v379 = vld [vmem:[%s1 + $0xaf8] sm:$0xff]
  %v380 = vld [vmem:[%s1 + $0xb00] sm:$0xff]
  %v381 = vld [vmem:[%s1 + $0xb08] sm:$0xff]
  %v382 = vld [vmem:[%s1 + $0xb10] sm:$0xff]
  %v383 = vld [vmem:[%s1 + $0xb18] sm:$0xff]
  %v384 = vld [vmem:[%s1 + $0xb20] sm:$0xff]
  %v385 = vld [vmem:[%s1 + $0xb28] sm:$0xff]
  %v386 = vld [vmem:[%s1 + $0xb30] sm:$0xff]
  %v387 = vld [vmem:[%s1 + $0xb38] sm:$0xff]
  %v388 = vld [vmem:[%s1 + $0xb40] sm:$0xff]
  %v389 = vld [vmem:[%s1 + $0xb48] sm:$0xff]
  %v390 = vld [vmem:[%s1 + $0xb50] sm:$0xff]
  %v391 = vld [vmem:[%s1 + $0xb58] sm:$0xff]
  %v392 = vld [vmem:[%s1 + $0xb60] sm:$0xff]
  %v393 = vld [vmem:[%s1 + $0xb68] sm:$0xff]
  %v394 = vld [vmem:[%s1 + $0xb70] sm:$0xff]
  %v395 = vld [vmem:[%s1 + $0xb78] sm:$0xff]
  %v396 = vld [vmem:[%s1 + $0xb80] sm:$0xff]
  %v397 = vld [vmem:[%s1 + $0xb88] sm:$0xff]
  %v398 = vld [vmem:[%s1 + $0xb90] sm:$0xff]
  %v399 = vld [vmem:[%s1 + $0xb98] sm:$0xff]
  %v400 = vld [vmem:[%s1 + $0xba0] sm:$0xff]
  %v401 = vld [vmem:[%s1 + $0xba8] sm:$0xff]
  %v402 = vld [vmem:[%s1 + $0xbb0] sm:$0xff]
  %v403 = vld [vmem:[%s1 + $0xbb8] sm:$0xff]
  %v404 = vld [vmem:[%s1 + $0xbc0] sm:$0xff]
  %v405 = vld [vmem:[%s1 + $0xbc8] sm:$0xff]
  %v406 = vld [vmem:[%s1 + $0xbd0] sm:$0xff]
  %v407 = vld [vmem:[%s1 + $0xbd8] sm:$0xff]
  %v408 = vld [vmem:[%s1 + $0xbe0] sm:$0xff]
  %v409 = vld [vmem:[%s1 + $0xbe8] sm:$0xff]
  %v410 = vld [vmem:[%s1 + $0xbf0] sm:$0xff]
  %v411 = vld [vmem:[%s1 + $0xbf8] sm:$0xff]
  %v412 = vld [vmem:[%s1 + $0xc00] sm:$0xff]
  %v413 = vld [vmem:[%s1 + $0xc08] sm:$0xff]
  %v414 = vld [vmem:[%s1 + $0xc10] sm:$0xff]
  %v415 = vld [vmem:[%s1 + $0xc18] sm:$0xff]
  %v416 = vld [vmem:[%s1 + $0xc20] sm:$0xff]
  %v417 = vld [vmem:[%s1 + $0xc28] sm:$0xff]
  %v418 = vld [vmem:[%s1 + $0xc30] sm:$0xff]
  %v419 = vld [vmem:[%s1 + $0xc38] sm:$0xff]
  %v420 = vld [vmem:[%s2] sm:$0x3]
  %v422 = vlaneseq
  %v423 = vshrl.u32 %v422, 7
  %v424 = vsub.s32 0, %v423
  %v425 = vrot.slane %v420, %v424
  %v426 = vlaneseq
  %v427 = vshrl.u32 %v426, 7
  %v428 = vsub.s32 1, %v427
  %v429 = vrot.slane %v420, %v428
  %v445 = vunpack.c.l.b16 %v15
  %v446 = vunpack.c.h.b16 %v15
  %v447 = vunpack.c.l.b16 %v16
  %v448 = vunpack.c.h.b16 %v16
  %v449 = vunpack.c.l.b16 %v17
  %v450 = vunpack.c.h.b16 %v17
  %v451 = vunpack.c.l.b16 %v18
  %v452 = vunpack.c.h.b16 %v18
  %v453 = vunpack.c.l.b16 %v19
  %v454 = vunpack.c.h.b16 %v19
  %v455 = vunpack.c.l.b16 %v20
  %v456 = vunpack.c.h.b16 %v20
  %v457 = vunpack.c.l.b16 %v21
  %v458 = vunpack.c.h.b16 %v21
  %v459 = vunpack.c.l.b16 %v22
  %v460 = vunpack.c.h.b16 %v22
  %v461 = vunpack.c.l.b16 %v23
  %v462 = vunpack.c.h.b16 %v23
  %v463 = vunpack.c.l.b16 %v24
  %v464 = vunpack.c.h.b16 %v24
  %v465 = vunpack.c.l.b16 %v25
  %v466 = vunpack.c.h.b16 %v25
  %v467 = vunpack.c.l.b16 %v26
  %v468 = vunpack.c.h.b16 %v26
  %v469 = vunpack.c.l.b16 %v27
  %v470 = vpack.c.b16 %v445, %v445
  %v471 = vpack.c.b16 %v446, %v446
  %v472 = vpack.c.b16 %v447, %v447
  %v473 = vpack.c.b16 %v448, %v448
  %v474 = vpack.c.b16 %v449, %v449
  %v475 = vpack.c.b16 %v450, %v450
  %v476 = vpack.c.b16 %v451, %v451
  %v477 = vpack.c.b16 %v452, %v452
  %v478 = vpack.c.b16 %v453, %v453
  %v479 = vpack.c.b16 %v454, %v454
  %v480 = vpack.c.b16 %v455, %v455
  %v481 = vpack.c.b16 %v456, %v456
  %v482 = vpack.c.b16 %v457, %v457
  %v483 = vpack.c.b16 %v458, %v458
  %v484 = vpack.c.b16 %v459, %v459
  %v485 = vpack.c.b16 %v460, %v460
  %v486 = vpack.c.b16 %v461, %v461
  %v487 = vpack.c.b16 %v462, %v462
  %v488 = vpack.c.b16 %v463, %v463
  %v489 = vpack.c.b16 %v464, %v464
  %v490 = vpack.c.b16 %v465, %v465
  %v491 = vpack.c.b16 %v466, %v466
  %v492 = vpack.c.b16 %v467, %v467
  %v493 = vpack.c.b16 %v468, %v468
  %v494 = vpack.c.b16 %v469, %v469
  %v911 = vunpack.c.l.b16 %v28
  %v912 = vunpack.c.h.b16 %v28
  %v913 = vunpack.c.l.b16 %v29
  %v914 = vunpack.c.h.b16 %v29
  %v915 = vunpack.c.l.b16 %v30
  %v916 = vunpack.c.h.b16 %v30
  %v917 = vunpack.c.l.b16 %v31
  %v918 = vunpack.c.h.b16 %v31
  %v919 = vunpack.c.l.b16 %v32
  %v920 = vunpack.c.h.b16 %v32
  %v921 = vunpack.c.l.b16 %v33
  %v922 = vunpack.c.h.b16 %v33
  %v923 = vunpack.c.l.b16 %v34
  %v924 = vunpack.c.h.b16 %v34
  %v925 = vunpack.c.l.b16 %v35
  %v926 = vunpack.c.h.b16 %v35
  %v927 = vunpack.c.l.b16 %v36
  %v928 = vunpack.c.h.b16 %v36
  %v929 = vunpack.c.l.b16 %v37
  %v930 = vunpack.c.h.b16 %v37
  %v931 = vunpack.c.l.b16 %v38
  %v932 = vunpack.c.h.b16 %v38
  %v933 = vunpack.c.l.b16 %v39
  %v934 = vunpack.c.h.b16 %v39
  %v935 = vunpack.c.l.b16 %v40
  %v936 = vunpack.c.h.b16 %v40
  %v937 = vunpack.c.l.b16 %v41
  %v938 = vunpack.c.h.b16 %v41
  %v939 = vunpack.c.l.b16 %v42
  %v940 = vunpack.c.h.b16 %v42
  %v941 = vunpack.c.l.b16 %v43
  %v942 = vunpack.c.h.b16 %v43
  %v943 = vunpack.c.l.b16 %v44
  %v944 = vunpack.c.h.b16 %v44
  %v945 = vunpack.c.l.b16 %v45
  %v946 = vunpack.c.h.b16 %v45
  %v947 = vunpack.c.l.b16 %v46
  %v948 = vunpack.c.h.b16 %v46
  %v949 = vunpack.c.l.b16 %v47
  %v950 = vunpack.c.h.b16 %v47
  %v951 = vunpack.c.l.b16 %v48
  %v952 = vunpack.c.h.b16 %v48
  %v953 = vunpack.c.l.b16 %v49
  %v954 = vunpack.c.h.b16 %v49
  %v955 = vunpack.c.l.b16 %v50
  %v956 = vunpack.c.h.b16 %v50
  %v957 = vunpack.c.l.b16 %v51
  %v958 = vunpack.c.h.b16 %v51
  %v959 = vunpack.c.l.b16 %v52
  %v960 = vunpack.c.h.b16 %v52
  %v961 = vunpack.c.l.b16 %v53
  %v962 = vunpack.c.h.b16 %v53
  %v963 = vunpack.c.l.b16 %v54
  %v964 = vunpack.c.h.b16 %v54
  %v965 = vunpack.c.l.b16 %v55
  %v966 = vunpack.c.h.b16 %v55
  %v967 = vunpack.c.l.b16 %v56
  %v968 = vunpack.c.h.b16 %v56
  %v969 = vunpack.c.l.b16 %v57
  %v970 = vunpack.c.h.b16 %v57
  %v971 = vunpack.c.l.b16 %v58
  %v972 = vunpack.c.h.b16 %v58
  %v973 = vunpack.c.l.b16 %v59
  %v974 = vunpack.c.h.b16 %v59
  %v975 = vunpack.c.l.b16 %v60
  %v976 = vunpack.c.h.b16 %v60
  %v977 = vunpack.c.l.b16 %v61
  %v978 = vunpack.c.h.b16 %v61
  %v979 = vunpack.c.l.b16 %v62
  %v980 = vunpack.c.h.b16 %v62
  %v981 = vunpack.c.l.b16 %v63
  %v982 = vunpack.c.h.b16 %v63
  %v983 = vunpack.c.l.b16 %v64
  %v984 = vunpack.c.h.b16 %v64
  %v985 = vunpack.c.l.b16 %v65
  %v986 = vunpack.c.h.b16 %v65
  %v987 = vunpack.c.l.b16 %v66
  %v988 = vunpack.c.h.b16 %v66
  %v989 = vunpack.c.l.b16 %v67
  %v990 = vunpack.c.h.b16 %v67
  %v991 = vunpack.c.l.b16 %v68
  %v992 = vunpack.c.h.b16 %v68
  %v993 = vunpack.c.l.b16 %v69
  %v994 = vunpack.c.h.b16 %v69
  %v995 = vunpack.c.l.b16 %v70
  %v996 = vunpack.c.h.b16 %v70
  %v997 = vunpack.c.l.b16 %v71
  %v998 = vunpack.c.h.b16 %v71
  %v999 = vunpack.c.l.b16 %v72
  %v1000 = vunpack.c.h.b16 %v72
  %v1001 = vunpack.c.l.b16 %v73
  %v1002 = vunpack.c.h.b16 %v73
  %v1003 = vunpack.c.l.b16 %v74
  %v1004 = vunpack.c.h.b16 %v74
  %v1005 = vunpack.c.l.b16 %v75
  %v1006 = vunpack.c.h.b16 %v75
  %v1007 = vunpack.c.l.b16 %v76
  %v1008 = vunpack.c.h.b16 %v76
  %v1009 = vunpack.c.l.b16 %v77
  %v1010 = vunpack.c.h.b16 %v77
  %v1011 = vunpack.c.l.b16 %v78
  %v1012 = vunpack.c.h.b16 %v78
  %v1013 = vunpack.c.l.b16 %v79
  %v1014 = vunpack.c.h.b16 %v79
  %v1015 = vunpack.c.l.b16 %v80
  %v1016 = vunpack.c.h.b16 %v80
  %v1017 = vunpack.c.l.b16 %v81
  %v1018 = vunpack.c.h.b16 %v81
  %v1019 = vunpack.c.l.b16 %v82
  %v1020 = vunpack.c.h.b16 %v82
  %v1021 = vunpack.c.l.b16 %v83
  %v1022 = vunpack.c.h.b16 %v83
  %v1023 = vunpack.c.l.b16 %v84
  %v1024 = vunpack.c.h.b16 %v84
  %v1025 = vunpack.c.l.b16 %v85
  %v1026 = vunpack.c.h.b16 %v85
  %v1027 = vunpack.c.l.b16 %v86
  %v1028 = vunpack.c.h.b16 %v86
  %v1029 = vunpack.c.l.b16 %v87
  %v1030 = vunpack.c.h.b16 %v87
  %v1031 = vunpack.c.l.b16 %v88
  %v1032 = vunpack.c.h.b16 %v88
  %v1033 = vunpack.c.l.b16 %v89
  %v1034 = vunpack.c.h.b16 %v89
  %v1035 = vunpack.c.l.b16 %v90
  %v1036 = vunpack.c.h.b16 %v90
  %v1037 = vunpack.c.l.b16 %v91
  %v1038 = vunpack.c.h.b16 %v91
  %v1039 = vunpack.c.l.b16 %v92
  %v1040 = vunpack.c.h.b16 %v92
  %v1041 = vunpack.c.l.b16 %v93
  %v1042 = vunpack.c.h.b16 %v93
  %v1043 = vunpack.c.l.b16 %v94
  %v1044 = vunpack.c.h.b16 %v94
  %v1045 = vunpack.c.l.b16 %v95
  %v1046 = vunpack.c.h.b16 %v95
  %v1047 = vunpack.c.l.b16 %v96
  %v1048 = vunpack.c.h.b16 %v96
  %v1049 = vunpack.c.l.b16 %v97
  %v1050 = vunpack.c.h.b16 %v97
  %v1051 = vunpack.c.l.b16 %v98
  %v1052 = vunpack.c.h.b16 %v98
  %v1053 = vunpack.c.l.b16 %v99
  %v1054 = vunpack.c.h.b16 %v99
  %v1055 = vunpack.c.l.b16 %v100
  %v1056 = vunpack.c.h.b16 %v100
  %v1057 = vunpack.c.l.b16 %v101
  %v1058 = vunpack.c.h.b16 %v101
  %v1059 = vunpack.c.l.b16 %v102
  %v1060 = vunpack.c.h.b16 %v102
  %v1061 = vunpack.c.l.b16 %v103
  %v1062 = vunpack.c.h.b16 %v103
  %v1063 = vunpack.c.l.b16 %v104
  %v1064 = vunpack.c.h.b16 %v104
  %v1065 = vunpack.c.l.b16 %v105
  %v1066 = vunpack.c.h.b16 %v105
  %v1067 = vunpack.c.l.b16 %v106
  %v1068 = vunpack.c.h.b16 %v106
  %v1069 = vunpack.c.l.b16 %v107
  %v1070 = vunpack.c.h.b16 %v107
  %v1071 = vunpack.c.l.b16 %v108
  %v1072 = vunpack.c.h.b16 %v108
  %v1073 = vunpack.c.l.b16 %v109
  %v1074 = vunpack.c.h.b16 %v109
  %v1075 = vunpack.c.l.b16 %v110
  %v1076 = vunpack.c.h.b16 %v110
  %v1077 = vunpack.c.l.b16 %v111
  %v1078 = vunpack.c.h.b16 %v111
  %v1079 = vunpack.c.l.b16 %v112
  %v1080 = vunpack.c.h.b16 %v112
  %v1081 = vunpack.c.l.b16 %v113
  %v1082 = vunpack.c.h.b16 %v113
  %v1083 = vunpack.c.l.b16 %v114
  %v1084 = vunpack.c.h.b16 %v114
  %v1085 = vunpack.c.l.b16 %v115
  %v1086 = vunpack.c.h.b16 %v115
  %v1087 = vunpack.c.l.b16 %v116
  %v1088 = vunpack.c.h.b16 %v116
  %v1089 = vunpack.c.l.b16 %v117
  %v1090 = vunpack.c.h.b16 %v117
  %v1091 = vunpack.c.l.b16 %v118
  %v1092 = vunpack.c.h.b16 %v118
  %v1093 = vunpack.c.l.b16 %v119
  %v1094 = vunpack.c.h.b16 %v119
  %v1095 = vunpack.c.l.b16 %v120
  %v1096 = vunpack.c.h.b16 %v120
  %v1097 = vunpack.c.l.b16 %v121
  %v1098 = vunpack.c.h.b16 %v121
  %v1099 = vunpack.c.l.b16 %v122
  %v1100 = vunpack.c.h.b16 %v122
  %v1101 = vunpack.c.l.b16 %v123
  %v1102 = vunpack.c.h.b16 %v123
  %v1103 = vunpack.c.l.b16 %v124
  %v1104 = vunpack.c.h.b16 %v124
  %v1105 = vunpack.c.l.b16 %v125
  %v1106 = vunpack.c.h.b16 %v125
  %v1107 = vunpack.c.l.b16 %v126
  %v1108 = vunpack.c.h.b16 %v126
  %v1109 = vunpack.c.l.b16 %v127
  %v1110 = vunpack.c.h.b16 %v127
  %v1111 = vunpack.c.l.b16 %v128
  %v1112 = vunpack.c.h.b16 %v128
  %v1113 = vunpack.c.l.b16 %v129
  %v1114 = vunpack.c.h.b16 %v129
  %v1115 = vunpack.c.l.b16 %v130
  %v1116 = vunpack.c.h.b16 %v130
  %v1117 = vunpack.c.l.b16 %v131
  %v1118 = vunpack.c.h.b16 %v131
  %v1119 = vunpack.c.l.b16 %v132
  %v1120 = vunpack.c.h.b16 %v132
  %v1121 = vunpack.c.l.b16 %v133
  %v1122 = vunpack.c.h.b16 %v133
  %v1123 = vunpack.c.l.b16 %v134
  %v1124 = vunpack.c.h.b16 %v134
  %v1125 = vunpack.c.l.b16 %v135
  %v1126 = vunpack.c.h.b16 %v135
  %v1127 = vunpack.c.l.b16 %v136
  %v1128 = vunpack.c.h.b16 %v136
  %v1129 = vunpack.c.l.b16 %v137
  %v1130 = vunpack.c.h.b16 %v137
  %v1131 = vunpack.c.l.b16 %v138
  %v1132 = vunpack.c.h.b16 %v138
  %v1133 = vunpack.c.l.b16 %v139
  %v1134 = vunpack.c.h.b16 %v139
  %v1135 = vunpack.c.l.b16 %v140
  %v1136 = vunpack.c.h.b16 %v140
  %v1137 = vunpack.c.l.b16 %v141
  %v1138 = vunpack.c.h.b16 %v141
  %v1139 = vunpack.c.l.b16 %v142
  %v1140 = vunpack.c.h.b16 %v142
  %v1141 = vunpack.c.l.b16 %v143
  %v1142 = vunpack.c.h.b16 %v143
  %v1143 = vunpack.c.l.b16 %v144
  %v1144 = vunpack.c.h.b16 %v144
  %v1145 = vunpack.c.l.b16 %v145
  %v1146 = vunpack.c.h.b16 %v145
  %v1147 = vunpack.c.l.b16 %v146
  %v1148 = vunpack.c.h.b16 %v146
  %v1149 = vunpack.c.l.b16 %v147
  %v1150 = vunpack.c.h.b16 %v147
  %v1151 = vunpack.c.l.b16 %v148
  %v1152 = vunpack.c.h.b16 %v148
  %v1153 = vunpack.c.l.b16 %v149
  %v1154 = vunpack.c.h.b16 %v149
  %v1155 = vunpack.c.l.b16 %v150
  %v1156 = vunpack.c.h.b16 %v150
  %v1157 = vunpack.c.l.b16 %v151
  %v1158 = vunpack.c.h.b16 %v151
  %v1159 = vunpack.c.l.b16 %v152
  %v1160 = vunpack.c.h.b16 %v152
  %v1161 = vunpack.c.l.b16 %v153
  %v1162 = vunpack.c.h.b16 %v153
  %v1163 = vunpack.c.l.b16 %v154
  %v1164 = vunpack.c.h.b16 %v154
  %v1165 = vunpack.c.l.b16 %v155
  %v1166 = vunpack.c.h.b16 %v155
  %v1167 = vunpack.c.l.b16 %v156
  %v1168 = vunpack.c.h.b16 %v156
  %v1169 = vunpack.c.l.b16 %v157
  %v1170 = vunpack.c.h.b16 %v157
  %v1171 = vunpack.c.l.b16 %v158
  %v1172 = vunpack.c.h.b16 %v158
  %v1173 = vunpack.c.l.b16 %v159
  %v1174 = vunpack.c.h.b16 %v159
  %v1175 = vunpack.c.l.b16 %v160
  %v1176 = vunpack.c.h.b16 %v160
  %v1177 = vunpack.c.l.b16 %v161
  %v1178 = vunpack.c.h.b16 %v161
  %v1179 = vunpack.c.l.b16 %v162
  %v1180 = vunpack.c.h.b16 %v162
  %v1181 = vunpack.c.l.b16 %v163
  %v1182 = vunpack.c.h.b16 %v163
  %v1183 = vunpack.c.l.b16 %v164
  %v1184 = vunpack.c.h.b16 %v164
  %v1185 = vunpack.c.l.b16 %v165
  %v1186 = vunpack.c.h.b16 %v165
  %v1187 = vunpack.c.l.b16 %v166
  %v1188 = vunpack.c.h.b16 %v166
  %v1189 = vunpack.c.l.b16 %v167
  %v1190 = vunpack.c.h.b16 %v167
  %v1191 = vunpack.c.l.b16 %v168
  %v1192 = vunpack.c.h.b16 %v168
  %v1193 = vunpack.c.l.b16 %v169
  %v1194 = vunpack.c.h.b16 %v169
  %v1195 = vunpack.c.l.b16 %v170
  %v1196 = vunpack.c.h.b16 %v170
  %v1197 = vunpack.c.l.b16 %v171
  %v1198 = vunpack.c.h.b16 %v171
  %v1199 = vunpack.c.l.b16 %v172
  %v1200 = vunpack.c.h.b16 %v172
  %v1201 = vunpack.c.l.b16 %v173
  %v1202 = vunpack.c.h.b16 %v173
  %v1203 = vunpack.c.l.b16 %v174
  %v1204 = vunpack.c.h.b16 %v174
  %v1205 = vunpack.c.l.b16 %v175
  %v1206 = vunpack.c.h.b16 %v175
  %v1207 = vunpack.c.l.b16 %v176
  %v1208 = vunpack.c.h.b16 %v176
  %v1209 = vunpack.c.l.b16 %v177
  %v1210 = vunpack.c.h.b16 %v177
  %v1211 = vunpack.c.l.b16 %v178
  %v1212 = vunpack.c.h.b16 %v178
  %v1213 = vunpack.c.l.b16 %v179
  %v1214 = vunpack.c.h.b16 %v179
  %v1215 = vunpack.c.l.b16 %v180
  %v1216 = vunpack.c.h.b16 %v180
  %v1217 = vunpack.c.l.b16 %v181
  %v1218 = vunpack.c.h.b16 %v181
  %v1219 = vunpack.c.l.b16 %v182
  %v1220 = vunpack.c.h.b16 %v182
  %v1221 = vunpack.c.l.b16 %v183
  %v1222 = vunpack.c.h.b16 %v183
  %v1223 = vunpack.c.l.b16 %v184
  %v1224 = vunpack.c.h.b16 %v184
  %v1225 = vunpack.c.l.b16 %v185
  %v1226 = vunpack.c.h.b16 %v185
  %v1227 = vunpack.c.l.b16 %v186
  %v1228 = vunpack.c.h.b16 %v186
  %v1229 = vunpack.c.l.b16 %v187
  %v1230 = vunpack.c.h.b16 %v187
  %v1231 = vunpack.c.l.b16 %v188
  %v1232 = vunpack.c.h.b16 %v188
  %v1233 = vunpack.c.l.b16 %v189
  %v1234 = vunpack.c.h.b16 %v189
  %v1235 = vunpack.c.l.b16 %v190
  %v1236 = vunpack.c.h.b16 %v190
  %v1237 = vunpack.c.l.b16 %v191
  %v1238 = vunpack.c.h.b16 %v191
  %v1239 = vunpack.c.l.b16 %v192
  %v1240 = vunpack.c.h.b16 %v192
  %v1241 = vunpack.c.l.b16 %v193
  %v1242 = vunpack.c.h.b16 %v193
  %v1243 = vunpack.c.l.b16 %v194
  %v1244 = vunpack.c.h.b16 %v194
  %v1245 = vunpack.c.l.b16 %v195
  %v1246 = vunpack.c.h.b16 %v195
  %v1247 = vunpack.c.l.b16 %v196
  %v1248 = vunpack.c.h.b16 %v196
  %v1249 = vunpack.c.l.b16 %v197
  %v1250 = vunpack.c.h.b16 %v197
  %v1251 = vunpack.c.l.b16 %v198
  %v1252 = vunpack.c.h.b16 %v198
  %v1253 = vunpack.c.l.b16 %v199
  %v1254 = vunpack.c.h.b16 %v199
  %v1255 = vunpack.c.l.b16 %v200
  %v1256 = vunpack.c.h.b16 %v200
  %v1257 = vunpack.c.l.b16 %v201
  %v1258 = vunpack.c.h.b16 %v201
  %v1259 = vunpack.c.l.b16 %v202
  %v1260 = vunpack.c.h.b16 %v202
  %v1261 = vunpack.c.l.b16 %v203
  %v1262 = vunpack.c.h.b16 %v203
  %v1263 = vunpack.c.l.b16 %v204
  %v1264 = vunpack.c.h.b16 %v204
  %v1265 = vunpack.c.l.b16 %v205
  %v1266 = vunpack.c.h.b16 %v205
  %v1267 = vunpack.c.l.b16 %v206
  %v1268 = vunpack.c.h.b16 %v206
  %v1269 = vunpack.c.l.b16 %v207
  %v1270 = vunpack.c.h.b16 %v207
  %v1271 = vunpack.c.l.b16 %v208
  %v1272 = vunpack.c.h.b16 %v208
  %v1273 = vunpack.c.l.b16 %v209
  %v1274 = vunpack.c.h.b16 %v209
  %v1275 = vunpack.c.l.b16 %v210
  %v1276 = vunpack.c.h.b16 %v210
  %v1277 = vunpack.c.l.b16 %v211
  %v1278 = vunpack.c.h.b16 %v211
  %v1279 = vunpack.c.l.b16 %v212
  %v1280 = vunpack.c.h.b16 %v212
  %v1281 = vunpack.c.l.b16 %v213
  %v1282 = vunpack.c.h.b16 %v213
  %v1283 = vunpack.c.l.b16 %v214
  %v1284 = vunpack.c.h.b16 %v214
  %v1285 = vunpack.c.l.b16 %v215
  %v1286 = vunpack.c.h.b16 %v215
  %v1287 = vunpack.c.l.b16 %v216
  %v1288 = vunpack.c.h.b16 %v216
  %v1289 = vunpack.c.l.b16 %v217
  %v1290 = vunpack.c.h.b16 %v217
  %v1291 = vunpack.c.l.b16 %v218
  %v1292 = vunpack.c.h.b16 %v218
  %v1293 = vunpack.c.l.b16 %v219
  %v1294 = vunpack.c.h.b16 %v219
  %v1295 = vunpack.c.l.b16 %v220
  %v1296 = vunpack.c.h.b16 %v220
  %v1297 = vunpack.c.l.b16 %v221
  %v1298 = vunpack.c.h.b16 %v221
  %v1299 = vunpack.c.l.b16 %v222
  %v1300 = vunpack.c.h.b16 %v222
  %v1301 = vunpack.c.l.b16 %v223
  %v1302 = vunpack.c.h.b16 %v223
  %v1303 = vunpack.c.l.b16 %v224
  %v1304 = vunpack.c.h.b16 %v224
  %v1305 = vunpack.c.l.b16 %v225
  %v1306 = vunpack.c.h.b16 %v225
  %v1307 = vunpack.c.l.b16 %v226
  %v1308 = vunpack.c.h.b16 %v226
  %v1309 = vunpack.c.l.b16 %v227
  %v1310 = vunpack.c.h.b16 %v227
  %v1311 = vunpack.c.l.b16 %v228
  %v1312 = vunpack.c.h.b16 %v228
  %v1313 = vunpack.c.l.b16 %v229
  %v1314 = vunpack.c.h.b16 %v229
  %v1315 = vunpack.c.l.b16 %v230
  %v1316 = vunpack.c.h.b16 %v230
  %v1317 = vunpack.c.l.b16 %v231
  %v1318 = vunpack.c.h.b16 %v231
  %v1319 = vunpack.c.l.b16 %v232
  %v1320 = vunpack.c.h.b16 %v232
  %v1321 = vunpack.c.l.b16 %v233
  %v1322 = vunpack.c.h.b16 %v233
  %v1323 = vunpack.c.l.b16 %v234
  %v1324 = vunpack.c.h.b16 %v234
  %v1325 = vunpack.c.l.b16 %v235
  %v1326 = vunpack.c.h.b16 %v235
  %v1327 = vunpack.c.l.b16 %v236
  %v1328 = vunpack.c.h.b16 %v236
  %v1329 = vunpack.c.l.b16 %v237
  %v1330 = vunpack.c.h.b16 %v237
  %v1331 = vunpack.c.l.b16 %v238
  %v1332 = vunpack.c.h.b16 %v238
  %v1333 = vunpack.c.l.b16 %v239
  %v1334 = vunpack.c.h.b16 %v239
  %v1335 = vunpack.c.l.b16 %v240
  %v1336 = vunpack.c.h.b16 %v240
  %v1337 = vunpack.c.l.b16 %v241
  %v1338 = vunpack.c.h.b16 %v241
  %v1339 = vunpack.c.l.b16 %v242
  %v1340 = vunpack.c.h.b16 %v242
  %v1341 = vunpack.c.l.b16 %v243
  %v1342 = vunpack.c.h.b16 %v243
  %v1343 = vunpack.c.l.b16 %v244
  %v1344 = vunpack.c.h.b16 %v244
  %v1345 = vunpack.c.l.b16 %v245
  %v1346 = vunpack.c.h.b16 %v245
  %v1347 = vunpack.c.l.b16 %v246
  %v1348 = vunpack.c.h.b16 %v246
  %v1349 = vunpack.c.l.b16 %v247
  %v1350 = vunpack.c.h.b16 %v247
  %v1351 = vunpack.c.l.b16 %v248
  %v1352 = vunpack.c.h.b16 %v248
  %v1353 = vunpack.c.l.b16 %v249
  %v1354 = vunpack.c.h.b16 %v249
  %v1355 = vunpack.c.l.b16 %v250
  %v1356 = vunpack.c.h.b16 %v250
  %v1357 = vunpack.c.l.b16 %v251
  %v1358 = vunpack.c.h.b16 %v251
  %v1359 = vunpack.c.l.b16 %v252
  %v1360 = vunpack.c.h.b16 %v252
  %v1361 = vunpack.c.l.b16 %v253
  %v1362 = vunpack.c.h.b16 %v253
  %v1363 = vunpack.c.l.b16 %v254
  %v1364 = vunpack.c.h.b16 %v254
  %v1365 = vunpack.c.l.b16 %v255
  %v1366 = vunpack.c.h.b16 %v255
  %v1367 = vunpack.c.l.b16 %v256
  %v1368 = vunpack.c.h.b16 %v256
  %v1369 = vunpack.c.l.b16 %v257
  %v1370 = vunpack.c.h.b16 %v257
  %v1371 = vunpack.c.l.b16 %v258
  %v1372 = vunpack.c.h.b16 %v258
  %v1373 = vunpack.c.l.b16 %v259
  %v1374 = vunpack.c.h.b16 %v259
  %v1375 = vunpack.c.l.b16 %v260
  %v1376 = vunpack.c.h.b16 %v260
  %v1377 = vunpack.c.l.b16 %v261
  %v1378 = vunpack.c.h.b16 %v261
  %v1379 = vunpack.c.l.b16 %v262
  %v1380 = vunpack.c.h.b16 %v262
  %v1381 = vunpack.c.l.b16 %v263
  %v1382 = vunpack.c.h.b16 %v263
  %v1383 = vunpack.c.l.b16 %v264
  %v1384 = vunpack.c.h.b16 %v264
  %v1385 = vunpack.c.l.b16 %v265
  %v1386 = vunpack.c.h.b16 %v265
  %v1387 = vunpack.c.l.b16 %v266
  %v1388 = vunpack.c.h.b16 %v266
  %v1389 = vunpack.c.l.b16 %v267
  %v1390 = vunpack.c.h.b16 %v267
  %v1391 = vunpack.c.l.b16 %v268
  %v1392 = vunpack.c.h.b16 %v268
  %v1393 = vunpack.c.l.b16 %v269
  %v1394 = vunpack.c.h.b16 %v269
  %v1395 = vunpack.c.l.b16 %v270
  %v1396 = vunpack.c.h.b16 %v270
  %v1397 = vunpack.c.l.b16 %v271
  %v1398 = vunpack.c.h.b16 %v271
  %v1399 = vunpack.c.l.b16 %v272
  %v1400 = vunpack.c.h.b16 %v272
  %v1401 = vunpack.c.l.b16 %v273
  %v1402 = vunpack.c.h.b16 %v273
  %v1403 = vunpack.c.l.b16 %v274
  %v1404 = vunpack.c.h.b16 %v274
  %v1405 = vunpack.c.l.b16 %v275
  %v1406 = vunpack.c.h.b16 %v275
  %v1407 = vunpack.c.l.b16 %v276
  %v1408 = vunpack.c.h.b16 %v276
  %v1409 = vunpack.c.l.b16 %v277
  %v1410 = vunpack.c.h.b16 %v277
  %v1411 = vunpack.c.l.b16 %v278
  %v1412 = vunpack.c.h.b16 %v278
  %v1413 = vunpack.c.l.b16 %v279
  %v1414 = vunpack.c.h.b16 %v279
  %v1415 = vunpack.c.l.b16 %v280
  %v1416 = vunpack.c.h.b16 %v280
  %v1417 = vunpack.c.l.b16 %v281
  %v1418 = vunpack.c.h.b16 %v281
  %v1419 = vunpack.c.l.b16 %v282
  %v1420 = vunpack.c.h.b16 %v282
  %v1421 = vunpack.c.l.b16 %v283
  %v1422 = vunpack.c.h.b16 %v283
  %v1423 = vunpack.c.l.b16 %v284
  %v1424 = vunpack.c.h.b16 %v284
  %v1425 = vunpack.c.l.b16 %v285
  %v1426 = vunpack.c.h.b16 %v285
  %v1427 = vunpack.c.l.b16 %v286
  %v1428 = vunpack.c.h.b16 %v286
  %v1429 = vunpack.c.l.b16 %v287
  %v1430 = vunpack.c.h.b16 %v287
  %v1431 = vunpack.c.l.b16 %v288
  %v1432 = vunpack.c.h.b16 %v288
  %v1433 = vunpack.c.l.b16 %v289
  %v1434 = vunpack.c.h.b16 %v289
  %v1435 = vunpack.c.l.b16 %v290
  %v1436 = vunpack.c.h.b16 %v290
  %v1437 = vunpack.c.l.b16 %v291
  %v1438 = vunpack.c.h.b16 %v291
  %v1439 = vunpack.c.l.b16 %v292
  %v1440 = vunpack.c.h.b16 %v292
  %v1441 = vunpack.c.l.b16 %v293
  %v1442 = vunpack.c.h.b16 %v293
  %v1443 = vunpack.c.l.b16 %v294
  %v1444 = vunpack.c.h.b16 %v294
  %v1445 = vunpack.c.l.b16 %v295
  %v1446 = vunpack.c.h.b16 %v295
  %v1447 = vunpack.c.l.b16 %v296
  %v1448 = vunpack.c.h.b16 %v296
  %v1449 = vunpack.c.l.b16 %v297
  %v1450 = vunpack.c.h.b16 %v297
  %v1451 = vunpack.c.l.b16 %v298
  %v1452 = vunpack.c.h.b16 %v298
  %v1453 = vunpack.c.l.b16 %v299
  %v1454 = vunpack.c.h.b16 %v299
  %v1455 = vunpack.c.l.b16 %v300
  %v1456 = vunpack.c.h.b16 %v300
  %v1457 = vunpack.c.l.b16 %v301
  %v1458 = vunpack.c.h.b16 %v301
  %v1459 = vunpack.c.l.b16 %v302
  %v1460 = vunpack.c.h.b16 %v302
  %v1461 = vunpack.c.l.b16 %v303
  %v1462 = vunpack.c.h.b16 %v303
  %v1463 = vunpack.c.l.b16 %v304
  %v1464 = vunpack.c.h.b16 %v304
  %v1465 = vunpack.c.l.b16 %v305
  %v1466 = vunpack.c.h.b16 %v305
  %v1467 = vunpack.c.l.b16 %v306
  %v1468 = vunpack.c.h.b16 %v306
  %v1469 = vunpack.c.l.b16 %v307
  %v1470 = vunpack.c.h.b16 %v307
  %v1471 = vunpack.c.l.b16 %v308
  %v1472 = vunpack.c.h.b16 %v308
  %v1473 = vunpack.c.l.b16 %v309
  %v1474 = vunpack.c.h.b16 %v309
  %v1475 = vunpack.c.l.b16 %v310
  %v1476 = vunpack.c.h.b16 %v310
  %v1477 = vunpack.c.l.b16 %v311
  %v1478 = vunpack.c.h.b16 %v311
  %v1479 = vunpack.c.l.b16 %v312
  %v1480 = vunpack.c.h.b16 %v312
  %v1481 = vunpack.c.l.b16 %v313
  %v1482 = vunpack.c.h.b16 %v313
  %v1483 = vunpack.c.l.b16 %v314
  %v1484 = vunpack.c.h.b16 %v314
  %v1485 = vunpack.c.l.b16 %v315
  %v1486 = vunpack.c.h.b16 %v315
  %v1487 = vunpack.c.l.b16 %v316
  %v1488 = vunpack.c.h.b16 %v316
  %v1489 = vunpack.c.l.b16 %v317
  %v1490 = vunpack.c.h.b16 %v317
  %v1491 = vunpack.c.l.b16 %v318
  %v1492 = vunpack.c.h.b16 %v318
  %v1493 = vunpack.c.l.b16 %v319
  %v1494 = vunpack.c.h.b16 %v319
  %v1495 = vunpack.c.l.b16 %v320
  %v1496 = vunpack.c.h.b16 %v320
  %v1497 = vunpack.c.l.b16 %v321
  %v1498 = vunpack.c.h.b16 %v321
  %v1499 = vunpack.c.l.b16 %v322
  %v1500 = vunpack.c.h.b16 %v322
  %v1501 = vunpack.c.l.b16 %v323
  %v1502 = vunpack.c.h.b16 %v323
  %v1503 = vunpack.c.l.b16 %v324
  %v1504 = vunpack.c.h.b16 %v324
  %v1505 = vunpack.c.l.b16 %v325
  %v1506 = vunpack.c.h.b16 %v325
  %v1507 = vunpack.c.l.b16 %v326
  %v1508 = vunpack.c.h.b16 %v326
  %v1509 = vunpack.c.l.b16 %v327
  %v1510 = vunpack.c.h.b16 %v327
  %v1511 = vunpack.c.l.b16 %v328
  %v1512 = vunpack.c.h.b16 %v328
  %v1513 = vunpack.c.l.b16 %v329
  %v1514 = vunpack.c.h.b16 %v329
  %v1515 = vunpack.c.l.b16 %v330
  %v1516 = vunpack.c.h.b16 %v330
  %v1517 = vunpack.c.l.b16 %v331
  %v1518 = vunpack.c.h.b16 %v331
  %v1519 = vunpack.c.l.b16 %v332
  %v1520 = vunpack.c.h.b16 %v332
  %v1521 = vunpack.c.l.b16 %v333
  %v1522 = vunpack.c.h.b16 %v333
  %v1523 = vunpack.c.l.b16 %v334
  %v1524 = vunpack.c.h.b16 %v334
  %v1525 = vunpack.c.l.b16 %v335
  %v1526 = vunpack.c.h.b16 %v335
  %v1527 = vunpack.c.l.b16 %v336
  %v1528 = vunpack.c.h.b16 %v336
  %v1529 = vunpack.c.l.b16 %v337
  %v1530 = vunpack.c.h.b16 %v337
  %v1531 = vunpack.c.l.b16 %v338
  %v1532 = vunpack.c.h.b16 %v338
  %v1533 = vunpack.c.l.b16 %v339
  %v1534 = vunpack.c.h.b16 %v339
  %v1535 = vunpack.c.l.b16 %v340
  %v1536 = vunpack.c.h.b16 %v340
  %v1537 = vunpack.c.l.b16 %v341
  %v1538 = vunpack.c.h.b16 %v341
  %v1539 = vunpack.c.l.b16 %v342
  %v1540 = vunpack.c.h.b16 %v342
  %v1541 = vunpack.c.l.b16 %v343
  %v1542 = vunpack.c.h.b16 %v343
  %v1543 = vunpack.c.l.b16 %v344
  %v1544 = vunpack.c.h.b16 %v344
  %v1545 = vunpack.c.l.b16 %v345
  %v1546 = vunpack.c.h.b16 %v345
  %v1547 = vunpack.c.l.b16 %v346
  %v1548 = vunpack.c.h.b16 %v346
  %v1549 = vunpack.c.l.b16 %v347
  %v1550 = vunpack.c.h.b16 %v347
  %v1551 = vunpack.c.l.b16 %v348
  %v1552 = vunpack.c.h.b16 %v348
  %v1553 = vunpack.c.l.b16 %v349
  %v1554 = vunpack.c.h.b16 %v349
  %v1555 = vunpack.c.l.b16 %v350
  %v1556 = vunpack.c.h.b16 %v350
  %v1557 = vunpack.c.l.b16 %v351
  %v1558 = vunpack.c.h.b16 %v351
  %v1559 = vunpack.c.l.b16 %v352
  %v1560 = vunpack.c.h.b16 %v352
  %v1561 = vunpack.c.l.b16 %v353
  %v1562 = vunpack.c.h.b16 %v353
  %v1563 = vunpack.c.l.b16 %v354
  %v1564 = vunpack.c.h.b16 %v354
  %v1565 = vunpack.c.l.b16 %v355
  %v1566 = vunpack.c.h.b16 %v355
  %v1567 = vunpack.c.l.b16 %v356
  %v1568 = vunpack.c.h.b16 %v356
  %v1569 = vunpack.c.l.b16 %v357
  %v1570 = vunpack.c.h.b16 %v357
  %v1571 = vunpack.c.l.b16 %v358
  %v1572 = vunpack.c.h.b16 %v358
  %v1573 = vunpack.c.l.b16 %v359
  %v1574 = vunpack.c.h.b16 %v359
  %v1575 = vunpack.c.l.b16 %v360
  %v1576 = vunpack.c.h.b16 %v360
  %v1577 = vunpack.c.l.b16 %v361
  %v1578 = vunpack.c.h.b16 %v361
  %v1579 = vunpack.c.l.b16 %v362
  %v1580 = vunpack.c.h.b16 %v362
  %v1581 = vunpack.c.l.b16 %v363
  %v1582 = vunpack.c.h.b16 %v363
  %v1583 = vunpack.c.l.b16 %v364
  %v1584 = vunpack.c.h.b16 %v364
  %v1585 = vunpack.c.l.b16 %v365
  %v1586 = vunpack.c.h.b16 %v365
  %v1587 = vunpack.c.l.b16 %v366
  %v1588 = vunpack.c.h.b16 %v366
  %v1589 = vunpack.c.l.b16 %v367
  %v1590 = vunpack.c.h.b16 %v367
  %v1591 = vunpack.c.l.b16 %v368
  %v1592 = vunpack.c.h.b16 %v368
  %v1593 = vunpack.c.l.b16 %v369
  %v1594 = vunpack.c.h.b16 %v369
  %v1595 = vunpack.c.l.b16 %v370
  %v1596 = vunpack.c.h.b16 %v370
  %v1597 = vunpack.c.l.b16 %v371
  %v1598 = vunpack.c.h.b16 %v371
  %v1599 = vunpack.c.l.b16 %v372
  %v1600 = vunpack.c.h.b16 %v372
  %v1601 = vunpack.c.l.b16 %v373
  %v1602 = vunpack.c.h.b16 %v373
  %v1603 = vunpack.c.l.b16 %v374
  %v1604 = vunpack.c.h.b16 %v374
  %v1605 = vunpack.c.l.b16 %v375
  %v1606 = vunpack.c.h.b16 %v375
  %v1607 = vunpack.c.l.b16 %v376
  %v1608 = vunpack.c.h.b16 %v376
  %v1609 = vunpack.c.l.b16 %v377
  %v1610 = vunpack.c.h.b16 %v377
  %v1611 = vunpack.c.l.b16 %v378
  %v1612 = vunpack.c.h.b16 %v378
  %v1613 = vunpack.c.l.b16 %v379
  %v1614 = vunpack.c.h.b16 %v379
  %v1615 = vunpack.c.l.b16 %v380
  %v1616 = vunpack.c.h.b16 %v380
  %v1617 = vunpack.c.l.b16 %v381
  %v1618 = vunpack.c.h.b16 %v381
  %v1619 = vunpack.c.l.b16 %v382
  %v1620 = vunpack.c.h.b16 %v382
  %v1621 = vunpack.c.l.b16 %v383
  %v1622 = vunpack.c.h.b16 %v383
  %v1623 = vunpack.c.l.b16 %v384
  %v1624 = vunpack.c.h.b16 %v384
  %v1625 = vunpack.c.l.b16 %v385
  %v1626 = vunpack.c.h.b16 %v385
  %v1627 = vunpack.c.l.b16 %v386
  %v1628 = vunpack.c.h.b16 %v386
  %v1629 = vunpack.c.l.b16 %v387
  %v1630 = vunpack.c.h.b16 %v387
  %v1631 = vunpack.c.l.b16 %v388
  %v1632 = vunpack.c.h.b16 %v388
  %v1633 = vunpack.c.l.b16 %v389
  %v1634 = vunpack.c.h.b16 %v389
  %v1635 = vunpack.c.l.b16 %v390
  %v1636 = vunpack.c.h.b16 %v390
  %v1637 = vunpack.c.l.b16 %v391
  %v1638 = vunpack.c.h.b16 %v391
  %v1639 = vunpack.c.l.b16 %v392
  %v1640 = vunpack.c.h.b16 %v392
  %v1641 = vunpack.c.l.b16 %v393
  %v1642 = vunpack.c.h.b16 %v393
  %v1643 = vunpack.c.l.b16 %v394
  %v1644 = vunpack.c.h.b16 %v394
  %v1645 = vunpack.c.l.b16 %v395
  %v1646 = vunpack.c.h.b16 %v395
  %v1647 = vunpack.c.l.b16 %v396
  %v1648 = vunpack.c.h.b16 %v396
  %v1649 = vunpack.c.l.b16 %v397
  %v1650 = vunpack.c.h.b16 %v397
  %v1651 = vunpack.c.l.b16 %v398
  %v1652 = vunpack.c.h.b16 %v398
  %v1653 = vunpack.c.l.b16 %v399
  %v1654 = vunpack.c.h.b16 %v399
  %v1655 = vunpack.c.l.b16 %v400
  %v1656 = vunpack.c.h.b16 %v400
  %v1657 = vunpack.c.l.b16 %v401
  %v1658 = vunpack.c.h.b16 %v401
  %v1659 = vunpack.c.l.b16 %v402
  %v1660 = vunpack.c.h.b16 %v402
  %v1661 = vunpack.c.l.b16 %v403
  %v1662 = vunpack.c.h.b16 %v403
  %v1663 = vunpack.c.l.b16 %v404
  %v1664 = vunpack.c.h.b16 %v404
  %v1665 = vunpack.c.l.b16 %v405
  %v1666 = vunpack.c.h.b16 %v405
  %v1667 = vunpack.c.l.b16 %v406
  %v1668 = vunpack.c.h.b16 %v406
  %v1669 = vunpack.c.l.b16 %v407
  %v1670 = vunpack.c.h.b16 %v407
  %v1671 = vunpack.c.l.b16 %v408
  %v1672 = vunpack.c.h.b16 %v408
  %v1673 = vunpack.c.l.b16 %v409
  %v1674 = vunpack.c.h.b16 %v409
  %v1675 = vunpack.c.l.b16 %v410
  %v1676 = vunpack.c.h.b16 %v410
  %v1677 = vunpack.c.l.b16 %v411
  %v1678 = vunpack.c.h.b16 %v411
  %v1679 = vunpack.c.l.b16 %v412
  %v1680 = vunpack.c.h.b16 %v412
  %v1681 = vunpack.c.l.b16 %v413
  %v1682 = vunpack.c.h.b16 %v413
  %v1683 = vunpack.c.l.b16 %v414
  %v1684 = vunpack.c.h.b16 %v414
  %v1685 = vunpack.c.l.b16 %v415
  %v1686 = vunpack.c.h.b16 %v415
  %v1687 = vunpack.c.l.b16 %v416
  %v1688 = vunpack.c.h.b16 %v416
  %v1689 = vunpack.c.l.b16 %v417
  %v1690 = vunpack.c.h.b16 %v417
  %v1691 = vunpack.c.l.b16 %v418
  %v1692 = vunpack.c.h.b16 %v418
  %v1693 = vunpack.c.l.b16 %v419
  %v1694 = vunpack.c.h.b16 %v419
  %v1695 = vpack.c.b16 %v913, %v911
  %v1696 = vpack.c.b16 %v914, %v912
  %v1697 = vpack.c.b16 %v917, %v915
  %v1698 = vpack.c.b16 %v918, %v916
  %v1699 = vpack.c.b16 %v921, %v919
  %v1700 = vpack.c.b16 %v922, %v920
  %v1701 = vpack.c.b16 %v925, %v923
  %v1702 = vpack.c.b16 %v926, %v924
  %v1703 = vpack.c.b16 %v929, %v927
  %v1704 = vpack.c.b16 %v930, %v928
  %v1705 = vpack.c.b16 %v933, %v931
  %v1706 = vpack.c.b16 %v934, %v932
  %v1707 = vpack.c.b16 %v937, %v935
  %v1708 = vpack.c.b16 %v938, %v936
  %v1709 = vpack.c.b16 %v941, %v939
  %v1710 = vpack.c.b16 %v942, %v940
  %v1711 = vpack.c.b16 %v945, %v943
  %v1712 = vpack.c.b16 %v946, %v944
  %v1713 = vpack.c.b16 %v949, %v947
  %v1714 = vpack.c.b16 %v950, %v948
  %v1715 = vpack.c.b16 %v953, %v951
  %v1716 = vpack.c.b16 %v954, %v952
  %v1717 = vpack.c.b16 %v957, %v955
  %v1718 = vpack.c.b16 %v958, %v956
  %v1719 = vpack.c.b16 %v961, %v959
  %v1720 = vpack.c.b16 %v962, %v960
  %v1721 = vpack.c.b16 %v965, %v963
  %v1722 = vpack.c.b16 %v966, %v964
  %v1723 = vpack.c.b16 %v969, %v967
  %v1724 = vpack.c.b16 %v970, %v968
  %v1725 = vpack.c.b16 %v973, %v971
  %v1726 = vpack.c.b16 %v974, %v972
  %v1727 = vpack.c.b16 %v977, %v975
  %v1728 = vpack.c.b16 %v978, %v976
  %v1729 = vpack.c.b16 %v981, %v979
  %v1730 = vpack.c.b16 %v982, %v980
  %v1731 = vpack.c.b16 %v985, %v983
  %v1732 = vpack.c.b16 %v986, %v984
  %v1733 = vpack.c.b16 %v989, %v987
  %v1734 = vpack.c.b16 %v990, %v988
  %v1735 = vpack.c.b16 %v993, %v991
  %v1736 = vpack.c.b16 %v994, %v992
  %v1737 = vpack.c.b16 %v997, %v995
  %v1738 = vpack.c.b16 %v998, %v996
  %v1739 = vpack.c.b16 %v1001, %v999
  %v1740 = vpack.c.b16 %v1002, %v1000
  %v1741 = vpack.c.b16 %v1005, %v1003
  %v1742 = vpack.c.b16 %v1006, %v1004
  %v1743 = vpack.c.b16 %v1009, %v1007
  %v1744 = vpack.c.b16 %v1010, %v1008
  %v1745 = vpack.c.b16 %v1013, %v1011
  %v1746 = vpack.c.b16 %v1014, %v1012
  %v1747 = vpack.c.b16 %v1017, %v1015
  %v1748 = vpack.c.b16 %v1018, %v1016
  %v1749 = vpack.c.b16 %v1021, %v1019
  %v1750 = vpack.c.b16 %v1022, %v1020
  %v1751 = vpack.c.b16 %v1025, %v1023
  %v1752 = vpack.c.b16 %v1026, %v1024
  %v1753 = vpack.c.b16 %v1029, %v1027
  %v1754 = vpack.c.b16 %v1030, %v1028
  %v1755 = vpack.c.b16 %v1033, %v1031
  %v1756 = vpack.c.b16 %v1034, %v1032
  %v1757 = vpack.c.b16 %v1037, %v1035
  %v1758 = vpack.c.b16 %v1038, %v1036
  %v1759 = vpack.c.b16 %v1041, %v1039
  %v1760 = vpack.c.b16 %v1042, %v1040
  %v1761 = vpack.c.b16 %v1045, %v1043
  %v1762 = vpack.c.b16 %v1046, %v1044
  %v1763 = vpack.c.b16 %v1049, %v1047
  %v1764 = vpack.c.b16 %v1050, %v1048
  %v1765 = vpack.c.b16 %v1053, %v1051
  %v1766 = vpack.c.b16 %v1054, %v1052
  %v1767 = vpack.c.b16 %v1057, %v1055
  %v1768 = vpack.c.b16 %v1058, %v1056
  %v1769 = vpack.c.b16 %v1061, %v1059
  %v1770 = vpack.c.b16 %v1062, %v1060
  %v1771 = vpack.c.b16 %v1065, %v1063
  %v1772 = vpack.c.b16 %v1066, %v1064
  %v1773 = vpack.c.b16 %v1069, %v1067
  %v1774 = vpack.c.b16 %v1070, %v1068
  %v1775 = vpack.c.b16 %v1073, %v1071
  %v1776 = vpack.c.b16 %v1074, %v1072
  %v1777 = vpack.c.b16 %v1077, %v1075
  %v1778 = vpack.c.b16 %v1078, %v1076
  %v1779 = vpack.c.b16 %v1081, %v1079
  %v1780 = vpack.c.b16 %v1082, %v1080
  %v1781 = vpack.c.b16 %v1085, %v1083
  %v1782 = vpack.c.b16 %v1086, %v1084
  %v1783 = vpack.c.b16 %v1089, %v1087
  %v1784 = vpack.c.b16 %v1090, %v1088
  %v1785 = vpack.c.b16 %v1093, %v1091
  %v1786 = vpack.c.b16 %v1094, %v1092
  %v1787 = vpack.c.b16 %v1097, %v1095
  %v1788 = vpack.c.b16 %v1098, %v1096
  %v1789 = vpack.c.b16 %v1101, %v1099
  %v1790 = vpack.c.b16 %v1102, %v1100
  %v1791 = vpack.c.b16 %v1105, %v1103
  %v1792 = vpack.c.b16 %v1106, %v1104
  %v1793 = vpack.c.b16 %v1109, %v1107
  %v1794 = vpack.c.b16 %v1110, %v1108
  %v1795 = vpack.c.b16 %v1113, %v1111
  %v1796 = vpack.c.b16 %v1114, %v1112
  %v1797 = vpack.c.b16 %v1117, %v1115
  %v1798 = vpack.c.b16 %v1118, %v1116
  %v1799 = vpack.c.b16 %v1121, %v1119
  %v1800 = vpack.c.b16 %v1122, %v1120
  %v1801 = vpack.c.b16 %v1125, %v1123
  %v1802 = vpack.c.b16 %v1126, %v1124
  %v1803 = vpack.c.b16 %v1129, %v1127
  %v1804 = vpack.c.b16 %v1130, %v1128
  %v1805 = vpack.c.b16 %v1133, %v1131
  %v1806 = vpack.c.b16 %v1134, %v1132
  %v1807 = vpack.c.b16 %v1137, %v1135
  %v1808 = vpack.c.b16 %v1138, %v1136
  %v1809 = vpack.c.b16 %v1141, %v1139
  %v1810 = vpack.c.b16 %v1142, %v1140
  %v1811 = vpack.c.b16 %v1145, %v1143
  %v1812 = vpack.c.b16 %v1146, %v1144
  %v1813 = vpack.c.b16 %v1149, %v1147
  %v1814 = vpack.c.b16 %v1150, %v1148
  %v1815 = vpack.c.b16 %v1153, %v1151
  %v1816 = vpack.c.b16 %v1154, %v1152
  %v1817 = vpack.c.b16 %v1157, %v1155
  %v1818 = vpack.c.b16 %v1158, %v1156
  %v1819 = vpack.c.b16 %v1161, %v1159
  %v1820 = vpack.c.b16 %v1162, %v1160
  %v1821 = vpack.c.b16 %v1165, %v1163
  %v1822 = vpack.c.b16 %v1166, %v1164
  %v1823 = vpack.c.b16 %v1169, %v1167
  %v1824 = vpack.c.b16 %v1170, %v1168
  %v1825 = vpack.c.b16 %v1173, %v1171
  %v1826 = vpack.c.b16 %v1174, %v1172
  %v1827 = vpack.c.b16 %v1177, %v1175
  %v1828 = vpack.c.b16 %v1178, %v1176
  %v1829 = vpack.c.b16 %v1181, %v1179
  %v1830 = vpack.c.b16 %v1182, %v1180
  %v1831 = vpack.c.b16 %v1185, %v1183
  %v1832 = vpack.c.b16 %v1186, %v1184
  %v1833 = vpack.c.b16 %v1189, %v1187
  %v1834 = vpack.c.b16 %v1190, %v1188
  %v1835 = vpack.c.b16 %v1193, %v1191
  %v1836 = vpack.c.b16 %v1194, %v1192
  %v1837 = vpack.c.b16 %v1197, %v1195
  %v1838 = vpack.c.b16 %v1198, %v1196
  %v1839 = vpack.c.b16 %v1201, %v1199
  %v1840 = vpack.c.b16 %v1202, %v1200
  %v1841 = vpack.c.b16 %v1205, %v1203
  %v1842 = vpack.c.b16 %v1206, %v1204
  %v1843 = vpack.c.b16 %v1209, %v1207
  %v1844 = vpack.c.b16 %v1210, %v1208
  %v1845 = vpack.c.b16 %v1213, %v1211
  %v1846 = vpack.c.b16 %v1214, %v1212
  %v1847 = vpack.c.b16 %v1217, %v1215
  %v1848 = vpack.c.b16 %v1218, %v1216
  %v1849 = vpack.c.b16 %v1221, %v1219
  %v1850 = vpack.c.b16 %v1222, %v1220
  %v1851 = vpack.c.b16 %v1225, %v1223
  %v1852 = vpack.c.b16 %v1226, %v1224
  %v1853 = vpack.c.b16 %v1229, %v1227
  %v1854 = vpack.c.b16 %v1230, %v1228
  %v1855 = vpack.c.b16 %v1233, %v1231
  %v1856 = vpack.c.b16 %v1234, %v1232
  %v1857 = vpack.c.b16 %v1237, %v1235
  %v1858 = vpack.c.b16 %v1238, %v1236
  %v1859 = vpack.c.b16 %v1241, %v1239
  %v1860 = vpack.c.b16 %v1242, %v1240
  %v1861 = vpack.c.b16 %v1245, %v1243
  %v1862 = vpack.c.b16 %v1246, %v1244
  %v1863 = vpack.c.b16 %v1249, %v1247
  %v1864 = vpack.c.b16 %v1250, %v1248
  %v1865 = vpack.c.b16 %v1253, %v1251
  %v1866 = vpack.c.b16 %v1254, %v1252
  %v1867 = vpack.c.b16 %v1257, %v1255
  %v1868 = vpack.c.b16 %v1258, %v1256
  %v1869 = vpack.c.b16 %v1261, %v1259
  %v1870 = vpack.c.b16 %v1262, %v1260
  %v1871 = vpack.c.b16 %v1265, %v1263
  %v1872 = vpack.c.b16 %v1266, %v1264
  %v1873 = vpack.c.b16 %v1269, %v1267
  %v1874 = vpack.c.b16 %v1270, %v1268
  %v1875 = vpack.c.b16 %v1273, %v1271
  %v1876 = vpack.c.b16 %v1274, %v1272
  %v1877 = vpack.c.b16 %v1277, %v1275
  %v1878 = vpack.c.b16 %v1278, %v1276
  %v1879 = vpack.c.b16 %v1281, %v1279
  %v1880 = vpack.c.b16 %v1282, %v1280
  %v1881 = vpack.c.b16 %v1285, %v1283
  %v1882 = vpack.c.b16 %v1286, %v1284
  %v1883 = vpack.c.b16 %v1289, %v1287
  %v1884 = vpack.c.b16 %v1290, %v1288
  %v1885 = vpack.c.b16 %v1293, %v1291
  %v1886 = vpack.c.b16 %v1294, %v1292
  %v1887 = vpack.c.b16 %v1297, %v1295
  %v1888 = vpack.c.b16 %v1298, %v1296
  %v1889 = vpack.c.b16 %v1301, %v1299
  %v1890 = vpack.c.b16 %v1302, %v1300
  %v1891 = vpack.c.b16 %v1305, %v1303
  %v1892 = vpack.c.b16 %v1306, %v1304
  %v1893 = vpack.c.b16 %v1309, %v1307
  %v1894 = vpack.c.b16 %v1310, %v1308
  %v1895 = vpack.c.b16 %v1313, %v1311
  %v1896 = vpack.c.b16 %v1314, %v1312
  %v1897 = vpack.c.b16 %v1317, %v1315
  %v1898 = vpack.c.b16 %v1318, %v1316
  %v1899 = vpack.c.b16 %v1321, %v1319
  %v1900 = vpack.c.b16 %v1322, %v1320
  %v1901 = vpack.c.b16 %v1325, %v1323
  %v1902 = vpack.c.b16 %v1326, %v1324
  %v1903 = vpack.c.b16 %v1329, %v1327
  %v1904 = vpack.c.b16 %v1330, %v1328
  %v1905 = vpack.c.b16 %v1333, %v1331
  %v1906 = vpack.c.b16 %v1334, %v1332
  %v1907 = vpack.c.b16 %v1337, %v1335
  %v1908 = vpack.c.b16 %v1338, %v1336
  %v1909 = vpack.c.b16 %v1341, %v1339
  %v1910 = vpack.c.b16 %v1342, %v1340
  %v1911 = vpack.c.b16 %v1345, %v1343
  %v1912 = vpack.c.b16 %v1346, %v1344
  %v1913 = vpack.c.b16 %v1349, %v1347
  %v1914 = vpack.c.b16 %v1350, %v1348
  %v1915 = vpack.c.b16 %v1353, %v1351
  %v1916 = vpack.c.b16 %v1354, %v1352
  %v1917 = vpack.c.b16 %v1357, %v1355
  %v1918 = vpack.c.b16 %v1358, %v1356
  %v1919 = vpack.c.b16 %v1361, %v1359
  %v1920 = vpack.c.b16 %v1362, %v1360
  %v1921 = vpack.c.b16 %v1365, %v1363
  %v1922 = vpack.c.b16 %v1366, %v1364
  %v1923 = vpack.c.b16 %v1369, %v1367
  %v1924 = vpack.c.b16 %v1370, %v1368
  %v1925 = vpack.c.b16 %v1373, %v1371
  %v1926 = vpack.c.b16 %v1374, %v1372
  %v1927 = vpack.c.b16 %v1377, %v1375
  %v1928 = vpack.c.b16 %v1378, %v1376
  %v1929 = vpack.c.b16 %v1381, %v1379
  %v1930 = vpack.c.b16 %v1382, %v1380
  %v1931 = vpack.c.b16 %v1385, %v1383
  %v1932 = vpack.c.b16 %v1386, %v1384
  %v1933 = vpack.c.b16 %v1389, %v1387
  %v1934 = vpack.c.b16 %v1390, %v1388
  %v1935 = vpack.c.b16 %v1393, %v1391
  %v1936 = vpack.c.b16 %v1394, %v1392
  %v1937 = vpack.c.b16 %v1397, %v1395
  %v1938 = vpack.c.b16 %v1398, %v1396
  %v1939 = vpack.c.b16 %v1401, %v1399
  %v1940 = vpack.c.b16 %v1402, %v1400
  %v1941 = vpack.c.b16 %v1405, %v1403
  %v1942 = vpack.c.b16 %v1406, %v1404
  %v1943 = vpack.c.b16 %v1409, %v1407
  %v1944 = vpack.c.b16 %v1410, %v1408
  %v1945 = vpack.c.b16 %v1413, %v1411
  %v1946 = vpack.c.b16 %v1414, %v1412
  %v1947 = vpack.c.b16 %v1417, %v1415
  %v1948 = vpack.c.b16 %v1418, %v1416
  %v1949 = vpack.c.b16 %v1421, %v1419
  %v1950 = vpack.c.b16 %v1422, %v1420
  %v1951 = vpack.c.b16 %v1425, %v1423
  %v1952 = vpack.c.b16 %v1426, %v1424
  %v1953 = vpack.c.b16 %v1429, %v1427
  %v1954 = vpack.c.b16 %v1430, %v1428
  %v1955 = vpack.c.b16 %v1433, %v1431
  %v1956 = vpack.c.b16 %v1434, %v1432
  %v1957 = vpack.c.b16 %v1437, %v1435
  %v1958 = vpack.c.b16 %v1438, %v1436
  %v1959 = vpack.c.b16 %v1441, %v1439
  %v1960 = vpack.c.b16 %v1442, %v1440
  %v1961 = vpack.c.b16 %v1445, %v1443
  %v1962 = vpack.c.b16 %v1446, %v1444
  %v1963 = vpack.c.b16 %v1449, %v1447
  %v1964 = vpack.c.b16 %v1450, %v1448
  %v1965 = vpack.c.b16 %v1453, %v1451
  %v1966 = vpack.c.b16 %v1454, %v1452
  %v1967 = vpack.c.b16 %v1457, %v1455
  %v1968 = vpack.c.b16 %v1458, %v1456
  %v1969 = vpack.c.b16 %v1461, %v1459
  %v1970 = vpack.c.b16 %v1462, %v1460
  %v1971 = vpack.c.b16 %v1465, %v1463
  %v1972 = vpack.c.b16 %v1466, %v1464
  %v1973 = vpack.c.b16 %v1469, %v1467
  %v1974 = vpack.c.b16 %v1470, %v1468
  %v1975 = vpack.c.b16 %v1473, %v1471
  %v1976 = vpack.c.b16 %v1474, %v1472
  %v1977 = vpack.c.b16 %v1477, %v1475
  %v1978 = vpack.c.b16 %v1478, %v1476
  %v1979 = vpack.c.b16 %v1481, %v1479
  %v1980 = vpack.c.b16 %v1482, %v1480
  %v1981 = vpack.c.b16 %v1485, %v1483
  %v1982 = vpack.c.b16 %v1486, %v1484
  %v1983 = vpack.c.b16 %v1489, %v1487
  %v1984 = vpack.c.b16 %v1490, %v1488
  %v1985 = vpack.c.b16 %v1493, %v1491
  %v1986 = vpack.c.b16 %v1494, %v1492
  %v1987 = vpack.c.b16 %v1497, %v1495
  %v1988 = vpack.c.b16 %v1498, %v1496
  %v1989 = vpack.c.b16 %v1501, %v1499
  %v1990 = vpack.c.b16 %v1502, %v1500
  %v1991 = vpack.c.b16 %v1505, %v1503
  %v1992 = vpack.c.b16 %v1506, %v1504
  %v1993 = vpack.c.b16 %v1509, %v1507
  %v1994 = vpack.c.b16 %v1510, %v1508
  %v1995 = vpack.c.b16 %v1513, %v1511
  %v1996 = vpack.c.b16 %v1514, %v1512
  %v1997 = vpack.c.b16 %v1517, %v1515
  %v1998 = vpack.c.b16 %v1518, %v1516
  %v1999 = vpack.c.b16 %v1521, %v1519
  %v2000 = vpack.c.b16 %v1522, %v1520
  %v2001 = vpack.c.b16 %v1525, %v1523
  %v2002 = vpack.c.b16 %v1526, %v1524
  %v2003 = vpack.c.b16 %v1529, %v1527
  %v2004 = vpack.c.b16 %v1530, %v1528
  %v2005 = vpack.c.b16 %v1533, %v1531
  %v2006 = vpack.c.b16 %v1534, %v1532
  %v2007 = vpack.c.b16 %v1537, %v1535
  %v2008 = vpack.c.b16 %v1538, %v1536
  %v2009 = vpack.c.b16 %v1541, %v1539
  %v2010 = vpack.c.b16 %v1542, %v1540
  %v2011 = vpack.c.b16 %v1545, %v1543
  %v2012 = vpack.c.b16 %v1546, %v1544
  %v2013 = vpack.c.b16 %v1549, %v1547
  %v2014 = vpack.c.b16 %v1550, %v1548
  %v2015 = vpack.c.b16 %v1553, %v1551
  %v2016 = vpack.c.b16 %v1554, %v1552
  %v2017 = vpack.c.b16 %v1557, %v1555
  %v2018 = vpack.c.b16 %v1558, %v1556
  %v2019 = vpack.c.b16 %v1561, %v1559
  %v2020 = vpack.c.b16 %v1562, %v1560
  %v2021 = vpack.c.b16 %v1565, %v1563
  %v2022 = vpack.c.b16 %v1566, %v1564
  %v2023 = vpack.c.b16 %v1569, %v1567
  %v2024 = vpack.c.b16 %v1570, %v1568
  %v2025 = vpack.c.b16 %v1573, %v1571
  %v2026 = vpack.c.b16 %v1574, %v1572
  %v2027 = vpack.c.b16 %v1577, %v1575
  %v2028 = vpack.c.b16 %v1578, %v1576
  %v2029 = vpack.c.b16 %v1581, %v1579
  %v2030 = vpack.c.b16 %v1582, %v1580
  %v2031 = vpack.c.b16 %v1585, %v1583
  %v2032 = vpack.c.b16 %v1586, %v1584
  %v2033 = vpack.c.b16 %v1589, %v1587
  %v2034 = vpack.c.b16 %v1590, %v1588
  %v2035 = vpack.c.b16 %v1593, %v1591
  %v2036 = vpack.c.b16 %v1594, %v1592
  %v2037 = vpack.c.b16 %v1597, %v1595
  %v2038 = vpack.c.b16 %v1598, %v1596
  %v2039 = vpack.c.b16 %v1601, %v1599
  %v2040 = vpack.c.b16 %v1602, %v1600
  %v2041 = vpack.c.b16 %v1605, %v1603
  %v2042 = vpack.c.b16 %v1606, %v1604
  %v2043 = vpack.c.b16 %v1609, %v1607
  %v2044 = vpack.c.b16 %v1610, %v1608
  %v2045 = vpack.c.b16 %v1613, %v1611
  %v2046 = vpack.c.b16 %v1614, %v1612
  %v2047 = vpack.c.b16 %v1617, %v1615
  %v2048 = vpack.c.b16 %v1618, %v1616
  %v2049 = vpack.c.b16 %v1621, %v1619
  %v2050 = vpack.c.b16 %v1622, %v1620
  %v2051 = vpack.c.b16 %v1625, %v1623
  %v2052 = vpack.c.b16 %v1626, %v1624
  %v2053 = vpack.c.b16 %v1629, %v1627
  %v2054 = vpack.c.b16 %v1630, %v1628
  %v2055 = vpack.c.b16 %v1633, %v1631
  %v2056 = vpack.c.b16 %v1634, %v1632
  %v2057 = vpack.c.b16 %v1637, %v1635
  %v2058 = vpack.c.b16 %v1638, %v1636
  %v2059 = vpack.c.b16 %v1641, %v1639
  %v2060 = vpack.c.b16 %v1642, %v1640
  %v2061 = vpack.c.b16 %v1645, %v1643
  %v2062 = vpack.c.b16 %v1646, %v1644
  %v2063 = vpack.c.b16 %v1649, %v1647
  %v2064 = vpack.c.b16 %v1650, %v1648
  %v2065 = vpack.c.b16 %v1653, %v1651
  %v2066 = vpack.c.b16 %v1654, %v1652
  %v2067 = vpack.c.b16 %v1657, %v1655
  %v2068 = vpack.c.b16 %v1658, %v1656
  %v2069 = vpack.c.b16 %v1661, %v1659
  %v2070 = vpack.c.b16 %v1662, %v1660
  %v2071 = vpack.c.b16 %v1665, %v1663
  %v2072 = vpack.c.b16 %v1666, %v1664
  %v2073 = vpack.c.b16 %v1669, %v1667
  %v2074 = vpack.c.b16 %v1670, %v1668
  %v2075 = vpack.c.b16 %v1673, %v1671
  %v2076 = vpack.c.b16 %v1674, %v1672
  %v2077 = vpack.c.b16 %v1677, %v1675
  %v2078 = vpack.c.b16 %v1678, %v1676
  %v2079 = vpack.c.b16 %v1681, %v1679
  %v2080 = vpack.c.b16 %v1682, %v1680
  %v2081 = vpack.c.b16 %v1685, %v1683
  %v2082 = vpack.c.b16 %v1686, %v1684
  %v2083 = vpack.c.b16 %v1689, %v1687
  %v2084 = vpack.c.b16 %v1690, %v1688
  %v2085 = vpack.c.b16 %v1693, %v1691
  %v2086 = vpack.c.b16 %v1694, %v1692
  %vm2479 = vcmask 523264
  %v2481 = vsel %vm2479, %v494, 0
  %2483 = vmatprep.subr.bf16.mxu0 %v1696
  %2484 = vmatpush1.bf16.msra.mxu0 %v1695
  %2485 = vmatprep.subr.bf16.mxu0 %v1698
  %2486 = vmatpush1.bf16.msra.mxu0 %v1697
  %2487 = vmatprep.subr.bf16.mxu0 %v1700
  %2488 = vmatpush1.bf16.msra.mxu0 %v1699
  %2489 = vmatprep.subr.bf16.mxu0 %v1702
  %2490 = vmatpush1.bf16.msra.mxu0 %v1701
  %2491 = vmatprep.subr.bf16.mxu0 %v1704
  %2492 = vmatpush1.bf16.msra.mxu0 %v1703
  %2493 = vmatprep.subr.bf16.mxu0 %v1706
  %2494 = vmatpush1.bf16.msra.mxu0 %v1705
  %2495 = vmatprep.subr.bf16.mxu0 %v1708
  %2496 = vmatpush1.bf16.msra.mxu0 %v1707
  %2497 = vmatprep.subr.bf16.mxu0 %v1710
  %2498 = vmatpush1.bf16.msra.mxu0 %v1709
  %2499 = vmatprep.subr.bf16.mxu0 %v1712
  %2500 = vmatpush1.bf16.msra.mxu0 %v1711
  %2501 = vmatprep.subr.bf16.mxu0 %v1714
  %2502 = vmatpush1.bf16.msra.mxu0 %v1713
  %2503 = vmatprep.subr.bf16.mxu0 %v1716
  %2504 = vmatpush1.bf16.msra.mxu0 %v1715
  %2505 = vmatprep.subr.bf16.mxu0 %v1718
  %2506 = vmatpush1.bf16.msra.mxu0 %v1717
  %2507 = vmatprep.subr.bf16.mxu0 %v1720
  %2508 = vmatpush1.bf16.msra.mxu0 %v1719
  %2509 = vmatprep.subr.bf16.mxu0 %v1722
  %2510 = vmatpush1.bf16.msra.mxu0 %v1721
  %2511 = vmatprep.subr.bf16.mxu0 %v1724
  %2512 = vmatpush1.bf16.msra.mxu0 %v1723
  %2513 = vmatprep.subr.bf16.mxu0 %v1726
  %2514 = vmatpush1.bf16.msra.mxu0 %v1725
  %2515 = vmatprep.mubr.bf16.mxu0 %v471
  %2516 = vmatmul.mubr.bf16.gmra.mrb[0].mxu0 %v470
  %v2517 = vpop.f32.mrb[0].mxu0
  %v2518 = vadd.f32 %v425, %v2517
  %v2519 = vpop.f32.mrb[0].mxu0
  %v2520 = vadd.f32 %v429, %v2519
  %v2521 = vpop.f32.mrb[0].mxu0
  %v2522 = vpop.f32.mrb[0].mxu0
  %2523 = vdwg.mxu0
  %2524 = vmatprep.subr.bf16.mxu0 %v1728
  %2525 = vmatpush1.bf16.msra.mxu0 %v1727
  %2526 = vmatprep.subr.bf16.mxu0 %v1730
  %2527 = vmatpush1.bf16.msra.mxu0 %v1729
  %2528 = vmatprep.subr.bf16.mxu0 %v1732
  %2529 = vmatpush1.bf16.msra.mxu0 %v1731
  %2530 = vmatprep.subr.bf16.mxu0 %v1734
  %2531 = vmatpush1.bf16.msra.mxu0 %v1733
  %2532 = vmatprep.subr.bf16.mxu0 %v1736
  %2533 = vmatpush1.bf16.msra.mxu0 %v1735
  %2534 = vmatprep.subr.bf16.mxu0 %v1738
  %2535 = vmatpush1.bf16.msra.mxu0 %v1737
  %2536 = vmatprep.subr.bf16.mxu0 %v1740
  %2537 = vmatpush1.bf16.msra.mxu0 %v1739
  %2538 = vmatprep.subr.bf16.mxu0 %v1742
  %2539 = vmatpush1.bf16.msra.mxu0 %v1741
  %2540 = vmatprep.subr.bf16.mxu0 %v1744
  %2541 = vmatpush1.bf16.msra.mxu0 %v1743
  %2542 = vmatprep.subr.bf16.mxu0 %v1746
  %2543 = vmatpush1.bf16.msra.mxu0 %v1745
  %2544 = vmatprep.subr.bf16.mxu0 %v1748
  %2545 = vmatpush1.bf16.msra.mxu0 %v1747
  %2546 = vmatprep.subr.bf16.mxu0 %v1750
  %2547 = vmatpush1.bf16.msra.mxu0 %v1749
  %2548 = vmatprep.subr.bf16.mxu0 %v1752
  %2549 = vmatpush1.bf16.msra.mxu0 %v1751
  %2550 = vmatprep.subr.bf16.mxu0 %v1754
  %2551 = vmatpush1.bf16.msra.mxu0 %v1753
  %2552 = vmatprep.subr.bf16.mxu0 %v1756
  %2553 = vmatpush1.bf16.msra.mxu0 %v1755
  %2554 = vmatprep.subr.bf16.mxu0 %v1758
  %2555 = vmatpush1.bf16.msra.mxu0 %v1757
  %2556 = vmatprep.mubr.bf16.mxu0 %v473
  %2557 = vmatmul.mubr.bf16.gmra.mrb[0].mxu0 %v472
  %v2558 = vpop.f32.mrb[0].mxu0
  %v2559 = vadd.f32 %v2518, %v2558
  %v2560 = vpop.f32.mrb[0].mxu0
  %v2561 = vadd.f32 %v2520, %v2560
  %v2562 = vpop.f32.mrb[0].mxu0
  %v2563 = vpop.f32.mrb[0].mxu0
  %2564 = vdwg.mxu0
  %2565 = vmatprep.subr.bf16.mxu0 %v1760
  %2566 = vmatpush1.bf16.msra.mxu0 %v1759
  %2567 = vmatprep.subr.bf16.mxu0 %v1762
  %2568 = vmatpush1.bf16.msra.mxu0 %v1761
  %2569 = vmatprep.subr.bf16.mxu0 %v1764
  %2570 = vmatpush1.bf16.msra.mxu0 %v1763
  %2571 = vmatprep.subr.bf16.mxu0 %v1766
  %2572 = vmatpush1.bf16.msra.mxu0 %v1765
  %2573 = vmatprep.subr.bf16.mxu0 %v1768
  %2574 = vmatpush1.bf16.msra.mxu0 %v1767
  %2575 = vmatprep.subr.bf16.mxu0 %v1770
  %2576 = vmatpush1.bf16.msra.mxu0 %v1769
  %2577 = vmatprep.subr.bf16.mxu0 %v1772
  %2578 = vmatpush1.bf16.msra.mxu0 %v1771
  %2579 = vmatprep.subr.bf16.mxu0 %v1774
  %2580 = vmatpush1.bf16.msra.mxu0 %v1773
  %2581 = vmatprep.subr.bf16.mxu0 %v1776
  %2582 = vmatpush1.bf16.msra.mxu0 %v1775
  %2583 = vmatprep.subr.bf16.mxu0 %v1778
  %2584 = vmatpush1.bf16.msra.mxu0 %v1777
  %2585 = vmatprep.subr.bf16.mxu0 %v1780
  %2586 = vmatpush1.bf16.msra.mxu0 %v1779
  %2587 = vmatprep.subr.bf16.mxu0 %v1782
  %2588 = vmatpush1.bf16.msra.mxu0 %v1781
  %2589 = vmatprep.subr.bf16.mxu0 %v1784
  %2590 = vmatpush1.bf16.msra.mxu0 %v1783
  %2591 = vmatprep.subr.bf16.mxu0 %v1786
  %2592 = vmatpush1.bf16.msra.mxu0 %v1785
  %2593 = vmatprep.subr.bf16.mxu0 %v1788
  %2594 = vmatpush1.bf16.msra.mxu0 %v1787
  %2595 = vmatprep.subr.bf16.mxu0 %v1790
  %2596 = vmatpush1.bf16.msra.mxu0 %v1789
  %2597 = vmatprep.mubr.bf16.mxu0 %v475
  %2598 = vmatmul.mubr.bf16.gmra.mrb[0].mxu0 %v474
  %v2599 = vpop.f32.mrb[0].mxu0
  %v2600 = vadd.f32 %v2559, %v2599
  %v2601 = vpop.f32.mrb[0].mxu0
  %v2602 = vadd.f32 %v2561, %v2601
  %v2603 = vpop.f32.mrb[0].mxu0
  %v2604 = vpop.f32.mrb[0].mxu0
  %2605 = vdwg.mxu0
  %2606 = vmatprep.subr.bf16.mxu0 %v1792
  %2607 = vmatpush1.bf16.msra.mxu0 %v1791
  %2608 = vmatprep.subr.bf16.mxu0 %v1794
  %2609 = vmatpush1.bf16.msra.mxu0 %v1793
  %2610 = vmatprep.subr.bf16.mxu0 %v1796
  %2611 = vmatpush1.bf16.msra.mxu0 %v1795
  %2612 = vmatprep.subr.bf16.mxu0 %v1798
  %2613 = vmatpush1.bf16.msra.mxu0 %v1797
  %2614 = vmatprep.subr.bf16.mxu0 %v1800
  %2615 = vmatpush1.bf16.msra.mxu0 %v1799
  %2616 = vmatprep.subr.bf16.mxu0 %v1802
  %2617 = vmatpush1.bf16.msra.mxu0 %v1801
  %2618 = vmatprep.subr.bf16.mxu0 %v1804
  %2619 = vmatpush1.bf16.msra.mxu0 %v1803
  %2620 = vmatprep.subr.bf16.mxu0 %v1806
  %2621 = vmatpush1.bf16.msra.mxu0 %v1805
  %2622 = vmatprep.subr.bf16.mxu0 %v1808
  %2623 = vmatpush1.bf16.msra.mxu0 %v1807
  %2624 = vmatprep.subr.bf16.mxu0 %v1810
  %2625 = vmatpush1.bf16.msra.mxu0 %v1809
  %2626 = vmatprep.subr.bf16.mxu0 %v1812
  %2627 = vmatpush1.bf16.msra.mxu0 %v1811
  %2628 = vmatprep.subr.bf16.mxu0 %v1814
  %2629 = vmatpush1.bf16.msra.mxu0 %v1813
  %2630 = vmatprep.subr.bf16.mxu0 %v1816
  %2631 = vmatpush1.bf16.msra.mxu0 %v1815
  %2632 = vmatprep.subr.bf16.mxu0 %v1818
  %2633 = vmatpush1.bf16.msra.mxu0 %v1817
  %2634 = vmatprep.subr.bf16.mxu0 %v1820
  %2635 = vmatpush1.bf16.msra.mxu0 %v1819
  %2636 = vmatprep.subr.bf16.mxu0 %v1822
  %2637 = vmatpush1.bf16.msra.mxu0 %v1821
  %2638 = vmatprep.mubr.bf16.mxu0 %v477
  %2639 = vmatmul.mubr.bf16.gmra.mrb[0].mxu0 %v476
  %v2640 = vpop.f32.mrb[0].mxu0
  %v2641 = vadd.f32 %v2600, %v2640
  %v2642 = vpop.f32.mrb[0].mxu0
  %v2643 = vadd.f32 %v2602, %v2642
  %v2644 = vpop.f32.mrb[0].mxu0
  %v2645 = vpop.f32.mrb[0].mxu0
  %2646 = vdwg.mxu0
  %2647 = vmatprep.subr.bf16.mxu0 %v1824
  %2648 = vmatpush1.bf16.msra.mxu0 %v1823
  %2649 = vmatprep.subr.bf16.mxu0 %v1826
  %2650 = vmatpush1.bf16.msra.mxu0 %v1825
  %2651 = vmatprep.subr.bf16.mxu0 %v1828
  %2652 = vmatpush1.bf16.msra.mxu0 %v1827
  %2653 = vmatprep.subr.bf16.mxu0 %v1830
  %2654 = vmatpush1.bf16.msra.mxu0 %v1829
  %2655 = vmatprep.subr.bf16.mxu0 %v1832
  %2656 = vmatpush1.bf16.msra.mxu0 %v1831
  %2657 = vmatprep.subr.bf16.mxu0 %v1834
  %2658 = vmatpush1.bf16.msra.mxu0 %v1833
  %2659 = vmatprep.subr.bf16.mxu0 %v1836
  %2660 = vmatpush1.bf16.msra.mxu0 %v1835
  %2661 = vmatprep.subr.bf16.mxu0 %v1838
  %2662 = vmatpush1.bf16.msra.mxu0 %v1837
  %2663 = vmatprep.subr.bf16.mxu0 %v1840
  %2664 = vmatpush1.bf16.msra.mxu0 %v1839
  %2665 = vmatprep.subr.bf16.mxu0 %v1842
  %2666 = vmatpush1.bf16.msra.mxu0 %v1841
  %2667 = vmatprep.subr.bf16.mxu0 %v1844
  %2668 = vmatpush1.bf16.msra.mxu0 %v1843
  %2669 = vmatprep.subr.bf16.mxu0 %v1846
  %2670 = vmatpush1.bf16.msra.mxu0 %v1845
  %2671 = vmatprep.subr.bf16.mxu0 %v1848
  %2672 = vmatpush1.bf16.msra.mxu0 %v1847
  %2673 = vmatprep.subr.bf16.mxu0 %v1850
  %2674 = vmatpush1.bf16.msra.mxu0 %v1849
  %2675 = vmatprep.subr.bf16.mxu0 %v1852
  %2676 = vmatpush1.bf16.msra.mxu0 %v1851
  %2677 = vmatprep.subr.bf16.mxu0 %v1854
  %2678 = vmatpush1.bf16.msra.mxu0 %v1853
  %2679 = vmatprep.mubr.bf16.mxu0 %v479
  %2680 = vmatmul.mubr.bf16.gmra.mrb[0].mxu0 %v478
  %v2681 = vpop.f32.mrb[0].mxu0
  %v2682 = vadd.f32 %v2641, %v2681
  %v2683 = vpop.f32.mrb[0].mxu0
  %v2684 = vadd.f32 %v2643, %v2683
  %v2685 = vpop.f32.mrb[0].mxu0
  %v2686 = vpop.f32.mrb[0].mxu0
  %2687 = vdwg.mxu0
  %2688 = vmatprep.subr.bf16.mxu0 %v1856
  %2689 = vmatpush1.bf16.msra.mxu0 %v1855
  %2690 = vmatprep.subr.bf16.mxu0 %v1858
  %2691 = vmatpush1.bf16.msra.mxu0 %v1857
  %2692 = vmatprep.subr.bf16.mxu0 %v1860
  %2693 = vmatpush1.bf16.msra.mxu0 %v1859
  %2694 = vmatprep.subr.bf16.mxu0 %v1862
  %2695 = vmatpush1.bf16.msra.mxu0 %v1861
  %2696 = vmatprep.subr.bf16.mxu0 %v1864
  %2697 = vmatpush1.bf16.msra.mxu0 %v1863
  %2698 = vmatprep.subr.bf16.mxu0 %v1866
  %2699 = vmatpush1.bf16.msra.mxu0 %v1865
  %2700 = vmatprep.subr.bf16.mxu0 %v1868
  %2701 = vmatpush1.bf16.msra.mxu0 %v1867
  %2702 = vmatprep.subr.bf16.mxu0 %v1870
  %2703 = vmatpush1.bf16.msra.mxu0 %v1869
  %2704 = vmatprep.subr.bf16.mxu0 %v1872
  %2705 = vmatpush1.bf16.msra.mxu0 %v1871
  %2706 = vmatprep.subr.bf16.mxu0 %v1874
  %2707 = vmatpush1.bf16.msra.mxu0 %v1873
  %2708 = vmatprep.subr.bf16.mxu0 %v1876
  %2709 = vmatpush1.bf16.msra.mxu0 %v1875
  %2710 = vmatprep.subr.bf16.mxu0 %v1878
  %2711 = vmatpush1.bf16.msra.mxu0 %v1877
  %2712 = vmatprep.subr.bf16.mxu0 %v1880
  %2713 = vmatpush1.bf16.msra.mxu0 %v1879
  %2714 = vmatprep.subr.bf16.mxu0 %v1882
  %2715 = vmatpush1.bf16.msra.mxu0 %v1881
  %2716 = vmatprep.subr.bf16.mxu0 %v1884
  %2717 = vmatpush1.bf16.msra.mxu0 %v1883
  %2718 = vmatprep.subr.bf16.mxu0 %v1886
  %2719 = vmatpush1.bf16.msra.mxu0 %v1885
  %2720 = vmatprep.mubr.bf16.mxu0 %v481
  %2721 = vmatmul.mubr.bf16.gmra.mrb[0].mxu0 %v480
  %v2722 = vpop.f32.mrb[0].mxu0
  %v2723 = vadd.f32 %v2682, %v2722
  %v2724 = vpop.f32.mrb[0].mxu0
  %v2725 = vadd.f32 %v2684, %v2724
  %v2726 = vpop.f32.mrb[0].mxu0
  %v2727 = vpop.f32.mrb[0].mxu0
  %2728 = vdwg.mxu0
  %2729 = vmatprep.subr.bf16.mxu0 %v1888
  %2730 = vmatpush1.bf16.msra.mxu0 %v1887
  %2731 = vmatprep.subr.bf16.mxu0 %v1890
  %2732 = vmatpush1.bf16.msra.mxu0 %v1889
  %2733 = vmatprep.subr.bf16.mxu0 %v1892
  %2734 = vmatpush1.bf16.msra.mxu0 %v1891
  %2735 = vmatprep.subr.bf16.mxu0 %v1894
  %2736 = vmatpush1.bf16.msra.mxu0 %v1893
  %2737 = vmatprep.subr.bf16.mxu0 %v1896
  %2738 = vmatpush1.bf16.msra.mxu0 %v1895
  %2739 = vmatprep.subr.bf16.mxu0 %v1898
  %2740 = vmatpush1.bf16.msra.mxu0 %v1897
  %2741 = vmatprep.subr.bf16.mxu0 %v1900
  %2742 = vmatpush1.bf16.msra.mxu0 %v1899
  %2743 = vmatprep.subr.bf16.mxu0 %v1902
  %2744 = vmatpush1.bf16.msra.mxu0 %v1901
  %2745 = vmatprep.subr.bf16.mxu0 %v1904
  %2746 = vmatpush1.bf16.msra.mxu0 %v1903
  %2747 = vmatprep.subr.bf16.mxu0 %v1906
  %2748 = vmatpush1.bf16.msra.mxu0 %v1905
  %2749 = vmatprep.subr.bf16.mxu0 %v1908
  %2750 = vmatpush1.bf16.msra.mxu0 %v1907
  %2751 = vmatprep.subr.bf16.mxu0 %v1910
  %2752 = vmatpush1.bf16.msra.mxu0 %v1909
  %2753 = vmatprep.subr.bf16.mxu0 %v1912
  %2754 = vmatpush1.bf16.msra.mxu0 %v1911
  %2755 = vmatprep.subr.bf16.mxu0 %v1914
  %2756 = vmatpush1.bf16.msra.mxu0 %v1913
  %2757 = vmatprep.subr.bf16.mxu0 %v1916
  %2758 = vmatpush1.bf16.msra.mxu0 %v1915
  %2759 = vmatprep.subr.bf16.mxu0 %v1918
  %2760 = vmatpush1.bf16.msra.mxu0 %v1917
  %2761 = vmatprep.mubr.bf16.mxu0 %v483
  %2762 = vmatmul.mubr.bf16.gmra.mrb[0].mxu0 %v482
  %v2763 = vpop.f32.mrb[0].mxu0
  %v2764 = vadd.f32 %v2723, %v2763
  %v2765 = vpop.f32.mrb[0].mxu0
  %v2766 = vadd.f32 %v2725, %v2765
  %v2767 = vpop.f32.mrb[0].mxu0
  %v2768 = vpop.f32.mrb[0].mxu0
  %2769 = vdwg.mxu0
  %2770 = vmatprep.subr.bf16.mxu0 %v1920
  %2771 = vmatpush1.bf16.msra.mxu0 %v1919
  %2772 = vmatprep.subr.bf16.mxu0 %v1922
  %2773 = vmatpush1.bf16.msra.mxu0 %v1921
  %2774 = vmatprep.subr.bf16.mxu0 %v1924
  %2775 = vmatpush1.bf16.msra.mxu0 %v1923
  %2776 = vmatprep.subr.bf16.mxu0 %v1926
  %2777 = vmatpush1.bf16.msra.mxu0 %v1925
  %2778 = vmatprep.subr.bf16.mxu0 %v1928
  %2779 = vmatpush1.bf16.msra.mxu0 %v1927
  %2780 = vmatprep.subr.bf16.mxu0 %v1930
  %2781 = vmatpush1.bf16.msra.mxu0 %v1929
  %2782 = vmatprep.subr.bf16.mxu0 %v1932
  %2783 = vmatpush1.bf16.msra.mxu0 %v1931
  %2784 = vmatprep.subr.bf16.mxu0 %v1934
  %2785 = vmatpush1.bf16.msra.mxu0 %v1933
  %2786 = vmatprep.subr.bf16.mxu0 %v1936
  %2787 = vmatpush1.bf16.msra.mxu0 %v1935
  %2788 = vmatprep.subr.bf16.mxu0 %v1938
  %2789 = vmatpush1.bf16.msra.mxu0 %v1937
  %2790 = vmatprep.subr.bf16.mxu0 %v1940
  %2791 = vmatpush1.bf16.msra.mxu0 %v1939
  %2792 = vmatprep.subr.bf16.mxu0 %v1942
  %2793 = vmatpush1.bf16.msra.mxu0 %v1941
  %2794 = vmatprep.subr.bf16.mxu0 %v1944
  %2795 = vmatpush1.bf16.msra.mxu0 %v1943
  %2796 = vmatprep.subr.bf16.mxu0 %v1946
  %2797 = vmatpush1.bf16.msra.mxu0 %v1945
  %2798 = vmatprep.subr.bf16.mxu0 %v1948
  %2799 = vmatpush1.bf16.msra.mxu0 %v1947
  %2800 = vmatprep.subr.bf16.mxu0 %v1950
  %2801 = vmatpush1.bf16.msra.mxu0 %v1949
  %2802 = vmatprep.mubr.bf16.mxu0 %v485
  %2803 = vmatmul.mubr.bf16.gmra.mrb[0].mxu0 %v484
  %v2804 = vpop.f32.mrb[0].mxu0
  %v2805 = vadd.f32 %v2764, %v2804
  %v2806 = vpop.f32.mrb[0].mxu0
  %v2807 = vadd.f32 %v2766, %v2806
  %v2808 = vpop.f32.mrb[0].mxu0
  %v2809 = vpop.f32.mrb[0].mxu0
  %2810 = vdwg.mxu0
  %2811 = vmatprep.subr.bf16.mxu0 %v1952
  %2812 = vmatpush1.bf16.msra.mxu0 %v1951
  %2813 = vmatprep.subr.bf16.mxu0 %v1954
  %2814 = vmatpush1.bf16.msra.mxu0 %v1953
  %2815 = vmatprep.subr.bf16.mxu0 %v1956
  %2816 = vmatpush1.bf16.msra.mxu0 %v1955
  %2817 = vmatprep.subr.bf16.mxu0 %v1958
  %2818 = vmatpush1.bf16.msra.mxu0 %v1957
  %2819 = vmatprep.subr.bf16.mxu0 %v1960
  %2820 = vmatpush1.bf16.msra.mxu0 %v1959
  %2821 = vmatprep.subr.bf16.mxu0 %v1962
  %2822 = vmatpush1.bf16.msra.mxu0 %v1961
  %2823 = vmatprep.subr.bf16.mxu0 %v1964
  %2824 = vmatpush1.bf16.msra.mxu0 %v1963
  %2825 = vmatprep.subr.bf16.mxu0 %v1966
  %2826 = vmatpush1.bf16.msra.mxu0 %v1965
  %2827 = vmatprep.subr.bf16.mxu0 %v1968
  %2828 = vmatpush1.bf16.msra.mxu0 %v1967
  %2829 = vmatprep.subr.bf16.mxu0 %v1970
  %2830 = vmatpush1.bf16.msra.mxu0 %v1969
  %2831 = vmatprep.subr.bf16.mxu0 %v1972
  %2832 = vmatpush1.bf16.msra.mxu0 %v1971
  %2833 = vmatprep.subr.bf16.mxu0 %v1974
  %2834 = vmatpush1.bf16.msra.mxu0 %v1973
  %2835 = vmatprep.subr.bf16.mxu0 %v1976
  %2836 = vmatpush1.bf16.msra.mxu0 %v1975
  %2837 = vmatprep.subr.bf16.mxu0 %v1978
  %2838 = vmatpush1.bf16.msra.mxu0 %v1977
  %2839 = vmatprep.subr.bf16.mxu0 %v1980
  %2840 = vmatpush1.bf16.msra.mxu0 %v1979
  %2841 = vmatprep.subr.bf16.mxu0 %v1982
  %2842 = vmatpush1.bf16.msra.mxu0 %v1981
  %2843 = vmatprep.mubr.bf16.mxu0 %v487
  %2844 = vmatmul.mubr.bf16.gmra.mrb[0].mxu0 %v486
  %v2845 = vpop.f32.mrb[0].mxu0
  %v2846 = vadd.f32 %v2805, %v2845
  %v2847 = vpop.f32.mrb[0].mxu0
  %v2848 = vadd.f32 %v2807, %v2847
  %v2849 = vpop.f32.mrb[0].mxu0
  %v2850 = vpop.f32.mrb[0].mxu0
  %2851 = vdwg.mxu0
  %2852 = vmatprep.subr.bf16.mxu0 %v1984
  %2853 = vmatpush1.bf16.msra.mxu0 %v1983
  %2854 = vmatprep.subr.bf16.mxu0 %v1986
  %2855 = vmatpush1.bf16.msra.mxu0 %v1985
  %2856 = vmatprep.subr.bf16.mxu0 %v1988
  %2857 = vmatpush1.bf16.msra.mxu0 %v1987
  %2858 = vmatprep.subr.bf16.mxu0 %v1990
  %2859 = vmatpush1.bf16.msra.mxu0 %v1989
  %2860 = vmatprep.subr.bf16.mxu0 %v1992
  %2861 = vmatpush1.bf16.msra.mxu0 %v1991
  %2862 = vmatprep.subr.bf16.mxu0 %v1994
  %2863 = vmatpush1.bf16.msra.mxu0 %v1993
  %2864 = vmatprep.subr.bf16.mxu0 %v1996
  %2865 = vmatpush1.bf16.msra.mxu0 %v1995
  %2866 = vmatprep.subr.bf16.mxu0 %v1998
  %2867 = vmatpush1.bf16.msra.mxu0 %v1997
  %2868 = vmatprep.subr.bf16.mxu0 %v2000
  %2869 = vmatpush1.bf16.msra.mxu0 %v1999
  %2870 = vmatprep.subr.bf16.mxu0 %v2002
  %2871 = vmatpush1.bf16.msra.mxu0 %v2001
  %2872 = vmatprep.subr.bf16.mxu0 %v2004
  %2873 = vmatpush1.bf16.msra.mxu0 %v2003
  %2874 = vmatprep.subr.bf16.mxu0 %v2006
  %2875 = vmatpush1.bf16.msra.mxu0 %v2005
  %2876 = vmatprep.subr.bf16.mxu0 %v2008
  %2877 = vmatpush1.bf16.msra.mxu0 %v2007
  %2878 = vmatprep.subr.bf16.mxu0 %v2010
  %2879 = vmatpush1.bf16.msra.mxu0 %v2009
  %2880 = vmatprep.subr.bf16.mxu0 %v2012
  %2881 = vmatpush1.bf16.msra.mxu0 %v2011
  %2882 = vmatprep.subr.bf16.mxu0 %v2014
  %2883 = vmatpush1.bf16.msra.mxu0 %v2013
  %2884 = vmatprep.mubr.bf16.mxu0 %v489
  %2885 = vmatmul.mubr.bf16.gmra.mrb[0].mxu0 %v488
  %v2886 = vpop.f32.mrb[0].mxu0
  %v2887 = vadd.f32 %v2846, %v2886
  %v2888 = vpop.f32.mrb[0].mxu0
  %v2889 = vadd.f32 %v2848, %v2888
  %v2890 = vpop.f32.mrb[0].mxu0
  %v2891 = vpop.f32.mrb[0].mxu0
  %2892 = vdwg.mxu0
  %2893 = vmatprep.subr.bf16.mxu0 %v2016
  %2894 = vmatpush1.bf16.msra.mxu0 %v2015
  %2895 = vmatprep.subr.bf16.mxu0 %v2018
  %2896 = vmatpush1.bf16.msra.mxu0 %v2017
  %2897 = vmatprep.subr.bf16.mxu0 %v2020
  %2898 = vmatpush1.bf16.msra.mxu0 %v2019
  %2899 = vmatprep.subr.bf16.mxu0 %v2022
  %2900 = vmatpush1.bf16.msra.mxu0 %v2021
  %2901 = vmatprep.subr.bf16.mxu0 %v2024
  %2902 = vmatpush1.bf16.msra.mxu0 %v2023
  %2903 = vmatprep.subr.bf16.mxu0 %v2026
  %2904 = vmatpush1.bf16.msra.mxu0 %v2025
  %2905 = vmatprep.subr.bf16.mxu0 %v2028
  %2906 = vmatpush1.bf16.msra.mxu0 %v2027
  %2907 = vmatprep.subr.bf16.mxu0 %v2030
  %2908 = vmatpush1.bf16.msra.mxu0 %v2029
  %2909 = vmatprep.subr.bf16.mxu0 %v2032
  %2910 = vmatpush1.bf16.msra.mxu0 %v2031
  %2911 = vmatprep.subr.bf16.mxu0 %v2034
  %2912 = vmatpush1.bf16.msra.mxu0 %v2033
  %2913 = vmatprep.subr.bf16.mxu0 %v2036
  %2914 = vmatpush1.bf16.msra.mxu0 %v2035
  %2915 = vmatprep.subr.bf16.mxu0 %v2038
  %2916 = vmatpush1.bf16.msra.mxu0 %v2037
  %2917 = vmatprep.subr.bf16.mxu0 %v2040
  %2918 = vmatpush1.bf16.msra.mxu0 %v2039
  %2919 = vmatprep.subr.bf16.mxu0 %v2042
  %2920 = vmatpush1.bf16.msra.mxu0 %v2041
  %2921 = vmatprep.subr.bf16.mxu0 %v2044
  %2922 = vmatpush1.bf16.msra.mxu0 %v2043
  %2923 = vmatprep.subr.bf16.mxu0 %v2046
  %2924 = vmatpush1.bf16.msra.mxu0 %v2045
  %2925 = vmatprep.mubr.bf16.mxu0 %v491
  %2926 = vmatmul.mubr.bf16.gmra.mrb[0].mxu0 %v490
  %v2927 = vpop.f32.mrb[0].mxu0
  %v2928 = vadd.f32 %v2887, %v2927
  %v2929 = vpop.f32.mrb[0].mxu0
  %v2930 = vadd.f32 %v2889, %v2929
  %v2931 = vpop.f32.mrb[0].mxu0
  %v2932 = vpop.f32.mrb[0].mxu0
  %2933 = vdwg.mxu0
  %2934 = vmatprep.subr.bf16.mxu0 %v2048
  %2935 = vmatpush1.bf16.msra.mxu0 %v2047
  %2936 = vmatprep.subr.bf16.mxu0 %v2050
  %2937 = vmatpush1.bf16.msra.mxu0 %v2049
  %2938 = vmatprep.subr.bf16.mxu0 %v2052
  %2939 = vmatpush1.bf16.msra.mxu0 %v2051
  %2940 = vmatprep.subr.bf16.mxu0 %v2054
  %2941 = vmatpush1.bf16.msra.mxu0 %v2053
  %2942 = vmatprep.subr.bf16.mxu0 %v2056
  %2943 = vmatpush1.bf16.msra.mxu0 %v2055
  %2944 = vmatprep.subr.bf16.mxu0 %v2058
  %2945 = vmatpush1.bf16.msra.mxu0 %v2057
  %2946 = vmatprep.subr.bf16.mxu0 %v2060
  %2947 = vmatpush1.bf16.msra.mxu0 %v2059
  %2948 = vmatprep.subr.bf16.mxu0 %v2062
  %2949 = vmatpush1.bf16.msra.mxu0 %v2061
  %2950 = vmatprep.subr.bf16.mxu0 %v2064
  %2951 = vmatpush1.bf16.msra.mxu0 %v2063
  %2952 = vmatprep.subr.bf16.mxu0 %v2066
  %2953 = vmatpush1.bf16.msra.mxu0 %v2065
  %2954 = vmatprep.subr.bf16.mxu0 %v2068
  %2955 = vmatpush1.bf16.msra.mxu0 %v2067
  %2956 = vmatprep.subr.bf16.mxu0 %v2070
  %2957 = vmatpush1.bf16.msra.mxu0 %v2069
  %2958 = vmatprep.subr.bf16.mxu0 %v2072
  %2959 = vmatpush1.bf16.msra.mxu0 %v2071
  %2960 = vmatprep.subr.bf16.mxu0 %v2074
  %2961 = vmatpush1.bf16.msra.mxu0 %v2073
  %2962 = vmatprep.subr.bf16.mxu0 %v2076
  %2963 = vmatpush1.bf16.msra.mxu0 %v2075
  %2964 = vmatprep.subr.bf16.mxu0 %v2078
  %2965 = vmatpush1.bf16.msra.mxu0 %v2077
  %2966 = vmatprep.mubr.bf16.mxu0 %v493
  %2967 = vmatmul.mubr.bf16.gmra.mrb[0].mxu0 %v492
  %v2968 = vpop.f32.mrb[0].mxu0
  %v2969 = vadd.f32 %v2928, %v2968
  %v2970 = vpop.f32.mrb[0].mxu0
  %v2971 = vadd.f32 %v2930, %v2970
  %v2972 = vpop.f32.mrb[0].mxu0
  %v2973 = vpop.f32.mrb[0].mxu0
  %2974 = vdwg.mxu0
  %2975 = vmatprep.subr.bf16.mxu0 %v2080
  %2976 = vmatpush1.bf16.msra.mxu0 %v2079
  %2977 = vmatprep.subr.bf16.mxu0 %v2082
  %2978 = vmatpush1.bf16.msra.mxu0 %v2081
  %2979 = vmatprep.subr.bf16.mxu0 %v2084
  %2980 = vmatpush1.bf16.msra.mxu0 %v2083
  %2981 = vmatprep.subr.bf16.mxu0 %v2086
  %2982 = vmatpush1.bf16.msra.mxu0 %v2085
  %2983 = vmatprep.subr.bf16.mxu0 0
  %2984 = vmatpush1.bf16.msra.mxu0 0
  %2985 = vmatprep.subr.bf16.mxu0 0
  %2986 = vmatpush1.bf16.msra.mxu0 0
  %2987 = vmatprep.subr.bf16.mxu0 0
  %2988 = vmatpush1.bf16.msra.mxu0 0
  %2989 = vmatprep.subr.bf16.mxu0 0
  %2990 = vmatpush1.bf16.msra.mxu0 0
  %2991 = vmatprep.subr.bf16.mxu0 0
  %2992 = vmatpush1.bf16.msra.mxu0 0
  %2993 = vmatprep.subr.bf16.mxu0 0
  %2994 = vmatpush1.bf16.msra.mxu0 0
  %2995 = vmatprep.subr.bf16.mxu0 0
  %2996 = vmatpush1.bf16.msra.mxu0 0
  %2997 = vmatprep.subr.bf16.mxu0 0
  %2998 = vmatpush1.bf16.msra.mxu0 0
  %2999 = vmatprep.subr.bf16.mxu0 0
  %3000 = vmatpush1.bf16.msra.mxu0 0
  %3001 = vmatprep.subr.bf16.mxu0 0
  %3002 = vmatpush1.bf16.msra.mxu0 0
  %3003 = vmatprep.subr.bf16.mxu0 0
  %3004 = vmatpush1.bf16.msra.mxu0 0
  %3005 = vmatprep.subr.bf16.mxu0 0
  %3006 = vmatpush1.bf16.msra.mxu0 0
  %3007 = vmatprep.mubr.bf16.mxu0 0
  %3008 = vmatmul.mubr.bf16.gmra.mrb[0].mxu0 %v2481
  %v3009 = vpop.f32.mrb[0].mxu0
  %v3010 = vadd.f32 %v2969, %v3009
  %v3011 = vpop.f32.mrb[0].mxu0
  %v3012 = vadd.f32 %v2971, %v3011
  %v3013 = vpop.f32.mrb[0].mxu0
  %v3014 = vpop.f32.mrb[0].mxu0
  %3015 = vdwg.mxu0
  %vm3016 = vcmp.ge.f32.partialorder %v3010, 0.0
  %vm3017 = vcmp.ge.f32.partialorder %v3012, 0.0
  %v3018 = vmul.f32 %v3010, 0.01
  %v3019 = vmul.f32 %v3012, 0.01
  %v3020 = vsel %vm3016, %v3010, %v3018
  %v3021 = vsel %vm3017, %v3012, %v3019
  %3022 = vst [vmem:[%s3] sm:$0xff] %v3020
  %3023 = vst [vmem:[%s3 + $0x8] sm:$0xff] %v3021
  // Predicated region
  $region14: #{actor_forward.7} parent=0 // pred_check
    _
  $region15: #{actor_forward.7} parent=0 // pred_check_branch
    %3025 = sbr.rel (0) target = $region17
  $region16: #{actor_forward.7} parent=0 // pred_region
    _
  $region17: #{actor_forward.7} parent=0 // pred_fallthru
    _
  // Predicated region
  $region18: #{actor_forward.7} parent=0 // pred_check
    _
  $region19: #{actor_forward.7} parent=0 // pred_check_branch
    %3027 = sbr.rel (0) target = $region21
  $region20: #{actor_forward.7} parent=0 // pred_region
    _
  $region21: #{actor_forward.7} parent=0 // pred_fallthru
    _

</llo_original>
